<compile_context>
chip_gen: v7x
topology: tpu7x:2x2x1
jax: 0.10.0
libtpu: 0.0.40
codegen_flags: <defaults>
</compile_context>

<pallas_src>
import math
import jax
import jax.numpy as jnp
from jax import lax
from jax.experimental import pallas as pl
from jax.experimental.pallas import tpu as pltpu

PARAM_ORDER = [
    "ln1_g", "ln1_b",      # LayerNorm 1                          (L, 1, D)   f32
    "wqkv", "bqkv",        # in_proj (transposed, q-scale folded) (L, D, 3D) bf16 / (L, 1, 3D) f32
    "wo", "bo",            # out_proj (transposed)                (L, D, D)  bf16 / (L, 1, D)  f32
    "ln2_g", "ln2_b",      # LayerNorm 2                          (L, 1, D)   f32
    "w1", "b1",            # MLP fc1 (transposed)                 (L, D, 4D) bf16 / (L, 1, 4D) f32
    "w2", "b2",            # MLP fc2 (transposed)                 (L, 4D, D) bf16 / (L, 1, D)  f32
]


def _make_transformer_kernel(TB, S, D, H, resident):
    """Full transformer stack for one (TB, S, D) batch block; grid = (B//TB, L)."""
    hd = D // H
    M = TB * S
    eps = 1e-5

    def layernorm(h, g, b):
        mu = jnp.mean(h, axis=-1, keepdims=True)
        var = jnp.mean(jnp.square(h - mu), axis=-1, keepdims=True)
        return (h - mu) * lax.rsqrt(var + eps) * g + b

    def kernel(x_ref, ln1_g, ln1_b, wqkv, bqkv, wo, bo,
               ln2_g, ln2_b, w1, b1, w2, b2, o_ref, x_acc):
        l = pl.program_id(1)

        def W(ref):
            # resident: full (L, ...) stack lives in VMEM, pick layer l here;
            # streaming: BlockSpec already delivered layer l as a (1, ...) block.
            return ref[l] if resident else ref[0]

        # Activation stays resident in VMEM across the whole layer stack.
        @pl.when(l == 0)
        def _():
            x_acc[...] = x_ref[...].reshape(M, D)

        x = x_acc[...]                                           # (M, D) f32

        # ---------- attention branch:  x + W_o(MHA(LN1(x))) + b_o ----------
        h = layernorm(x, W(ln1_g), W(ln1_b)).astype(jnp.bfloat16)
        qkv = (jnp.dot(h, W(wqkv), preferred_element_type=jnp.float32)
               + W(bqkv)).astype(jnp.bfloat16)                   # single bf16 cast
        qkv = qkv.reshape(TB, S, 3 * D)
        q = qkv[:, :, 0 * D:1 * D]                               # 1/sqrt(hd) pre-folded
        k = qkv[:, :, 1 * D:2 * D]
        v = qkv[:, :, 2 * D:3 * D]

        # Per-head attention batched over TB; head outputs form one (M, D) slab.
        # TODO(synk): for large H (e.g. CLIP H=12) switch this static unroll to
        # a lax.fori_loop(unroll=True) writing into a VMEM slab scratch.
        head_out = []
        for hh in range(H):
            sl = slice(hh * hd, (hh + 1) * hd)
            s = jnp.einsum('bqd,bkd->bqk', q[:, :, sl], k[:, :, sl],
                           preferred_element_type=jnp.float32)   # (TB, S, S)
            m = jnp.max(s, axis=-1, keepdims=True)
            p = jnp.exp(s - m)
            p = p * pl.reciprocal(jnp.sum(p, axis=-1, keepdims=True), approx=True)
            ho = jnp.einsum('bqk,bkd->bqd', p.astype(jnp.bfloat16), v[:, :, sl],
                            preferred_element_type=jnp.float32)  # (TB, S, hd)
            head_out.append(ho)
        slab = jnp.concatenate(head_out, axis=-1).reshape(M, D).astype(jnp.bfloat16)

        # ONE fused output projection for all heads.
        attn = jnp.dot(slab, W(wo), preferred_element_type=jnp.float32) + W(bo)
        x = x + attn

        # ---------- MLP branch:  x + FC2(ReLU(FC1(LN2(x)))) ----------
        h2 = layernorm(x, W(ln2_g), W(ln2_b)).astype(jnp.bfloat16)
        u = jnp.dot(h2, W(w1), preferred_element_type=jnp.float32) + W(b1)
        u = jnp.maximum(u, 0.0).astype(jnp.bfloat16)
        u = jnp.dot(u, W(w2), preferred_element_type=jnp.float32) + W(b2)
        x = x + u

        x_acc[...] = x

        @pl.when(l == pl.num_programs(1) - 1)
        def _():
            o_ref[...] = x.reshape(TB, S, D)

    return kernel


def transformer_pallas(x_sbd, stacked, H, tb=None,
                       vmem_limit_bytes=48 * 1024 * 1024,
                       resident_weight_budget=16 * 1024 * 1024):
    """x_sbd: (S, B, D) seq-first layout (PyTorch nn.MultiheadAttention default)."""
    S, B, D = x_sbd.shape
    L = stacked["wqkv"].shape[0]
    hd = D // H
    assert D % 128 == 0, "width must be a multiple of 128 (lane alignment)"
    assert D % H == 0 and hd % 16 == 0, "head_dim must be a multiple of 16 (bf16 packing)"

    if tb is None:
        # Largest divisor of B with TB*S <= 256 rows, keeping B//TB >= 2 when possible
        # so the parallel grid axis feeds both v7x TensorCores.
        tb = 1
        for t in range(1, B + 1):
            if B % t == 0 and t * S <= 256 and (B // t >= 2 or B <= 1):
                tb = t
    assert B % tb == 0, f"batch {B} not divisible by batch tile {tb}"

    x_bsd = jnp.transpose(x_sbd, (1, 0, 2))                      # (B, S, D)
    params = [stacked[name] for name in PARAM_ORDER]

    # Keep the whole stacked weight set VMEM-resident when it is small enough;
    # otherwise stream one layer at a time (auto-prefetched by the pipeline).
    total_w_bytes = sum(int(a.size) * a.dtype.itemsize for a in params)
    resident = total_w_bytes <= resident_weight_budget

    def wspec(a):
        if resident:
            return pl.BlockSpec(a.shape, lambda b, l: (0,) * a.ndim)
        return pl.BlockSpec((1,) + a.shape[1:],
                            lambda b, l: (l,) + (0,) * (a.ndim - 1))

    kernel = _make_transformer_kernel(tb, S, D, H, resident)
    in_specs = ([pl.BlockSpec((tb, S, D), lambda b, l: (b, 0, 0))]
                + [wspec(a) for a in params])
    out_specs = pl.BlockSpec((tb, S, D), lambda b, l: (b, 0, 0))

    out = pl.pallas_call(
        kernel,
        out_shape=jax.ShapeDtypeStruct((B, S, D), jnp.float32),
        grid_spec=pltpu.PrefetchScalarGridSpec(
            num_scalar_prefetch=0,
            grid=(B // tb, L),                 # batch blocks outer (parallel), L inner
            in_specs=in_specs,
            out_specs=out_specs,
            scratch_shapes=[pltpu.VMEM((tb * S, D), jnp.float32)]),
        compiler_params=pltpu.CompilerParams(
            dimension_semantics=("parallel", "arbitrary"),
            vmem_limit_bytes=vmem_limit_bytes),
    )(x_bsd, *params)
    return jnp.transpose(out, (1, 0, 2))                         # back to (S, B, D)


# ---------------- deterministic parameter init & preparation ----------------
def init_layer_params(key, D):
    ks = jax.random.split(key, 6)
    std = 0.02
    return {
        "ln1_g": jnp.ones((1, D), jnp.float32),
        "ln1_b": jnp.zeros((1, D), jnp.float32),
        "wqkv_t": std * jax.random.normal(ks[0], (D, 3 * D), jnp.float32),
        "bqkv": std * jax.random.normal(ks[1], (1, 3 * D), jnp.float32),
        "wo_t": std * jax.random.normal(ks[2], (D, D), jnp.float32),
        "bo": jnp.zeros((1, D), jnp.float32),
        "ln2_g": jnp.ones((1, D), jnp.float32),
        "ln2_b": jnp.zeros((1, D), jnp.float32),
        "w1_t": std * jax.random.normal(ks[3], (D, 4 * D), jnp.float32),
        "b1": std * jax.random.normal(ks[4], (1, 4 * D), jnp.float32),
        "w2_t": std * jax.random.normal(ks[5], (4 * D, D), jnp.float32),
        "b2": jnp.zeros((1, D), jnp.float32),
    }


def prepare_stacked_params(layer_params, D, H):
    """Stack per-layer params into (L,...) arrays, fold q-scale, bf16 weights."""
    scale = 1.0 / math.sqrt(D // H)

    def stk(name):
        return jnp.stack([p[name] for p in layer_params], axis=0)

    wqkv = stk("wqkv_t")                             # (L, D, 3D)
    bqkv = stk("bqkv")                               # (L, 1, 3D)
    wqkv = wqkv.at[:, :, :D].multiply(scale)         # pre-fold PyTorch q scaling
    bqkv = bqkv.at[:, :, :D].multiply(scale)

    return {
        "ln1_g": stk("ln1_g")[:, None], "ln1_b": stk("ln1_b")[:, None],
        "wqkv": wqkv.astype(jnp.bfloat16), "bqkv": bqkv[:, None] if bqkv.ndim == 2 else bqkv,
        "wo": stk("wo_t").astype(jnp.bfloat16), "bo": stk("bo"),
        "ln2_g": stk("ln2_g")[:, None], "ln2_b": stk("ln2_b")[:, None],
        "w1": stk("w1_t").astype(jnp.bfloat16), "b1": stk("b1"),
        "w2": stk("w2_t").astype(jnp.bfloat16), "b2": stk("b2"),
    } if False else {
        # (stk(name) already has shape (L, 1, X) because per-layer params are (1, X))
        "ln1_g": stk("ln1_g"), "ln1_b": stk("ln1_b"),
        "wqkv": wqkv.astype(jnp.bfloat16), "bqkv": bqkv,
        "wo": stk("wo_t").astype(jnp.bfloat16), "bo": stk("bo"),
        "ln2_g": stk("ln2_g"), "ln2_b": stk("ln2_b"),
        "w1": stk("w1_t").astype(jnp.bfloat16), "b1": stk("b1"),
        "w2": stk("w2_t").astype(jnp.bfloat16), "b2": stk("b2"),
    }


# ---------------- pure-JAX reference (mirrors PyTorch semantics) ----------------
def ref_transformer(x_sbd, stacked, H):
    """Reference consuming the SAME prepared weights (bf16 values upcast to f32,
    q-scale already folded) so the only deltas vs. the kernel are bf16 matmul
    inputs and the approx reciprocal."""
    def ln(h, g, b):
        mu = h.mean(-1, keepdims=True)
        var = ((h - mu) ** 2).mean(-1, keepdims=True)
        return (h - mu) / jnp.sqrt(var + 1e-5) * g + b

    f32 = lambda a: a.astype(jnp.float32)
    x = jnp.transpose(x_sbd, (1, 0, 2))              # (B, S, D)
    B, S, D = x.shape
    hd = D // H
    L = stacked["wqkv"].shape[0]
    for l in range(L):
        h = ln(x, stacked["ln1_g"][l], stacked["ln1_b"][l])
        qkv = h @ f32(stacked["wqkv"][l]) + stacked["bqkv"][l]
        q, k, v = jnp.split(qkv, 3, axis=-1)
        q = q.reshape(B, S, H, hd).transpose(0, 2, 1, 3)   # scale already folded
        k = k.reshape(B, S, H, hd).transpose(0, 2, 1, 3)
        v = v.reshape(B, S, H, hd).transpose(0, 2, 1, 3)
        s = q @ k.transpose(0, 1, 3, 2)
        p = jax.nn.softmax(s, axis=-1)
        o = (p @ v).transpose(0, 2, 1, 3).reshape(B, S, D)
        o = o @ f32(stacked["wo"][l]) + stacked["bo"][l]
        x = x + o
        h2 = ln(x, stacked["ln2_g"][l], stacked["ln2_b"][l])
        u = jnp.maximum(h2 @ f32(stacked["w1"][l]) + stacked["b1"][l], 0.0)
        u = u @ f32(stacked["w2"][l]) + stacked["b2"][l]
        x = x + u
    return x.transpose(1, 0, 2)


if __name__ == "__main__":
    # Small, lane-aligned shapes: width=128, heads=2, layers=2, seq=16, batch=8.
    # Batch tile TB=4 -> M = TB*S = 64 rows per matmul, parallel grid axis = 2.
    S, B, D, H, LAYERS, TB = 16, 8, 128, 2, 2, 4

    key = jax.random.PRNGKey(0)
    key, xk = jax.random.split(key)
    x = jax.random.normal(xk, (S, B, D), jnp.float32)   # PyTorch (seq, batch, width)

    layer_params = []
    for _ in range(LAYERS):
        key, lk = jax.random.split(key)
        layer_params.append(init_layer_params(lk, D))

    stacked = prepare_stacked_params(layer_params, D, H)

    out = jax.block_until_ready(transformer_pallas(x, stacked, H, tb=TB))
    ref = jax.block_until_ready(ref_transformer(x, stacked, H))

    assert out.shape == (S, B, D)
    max_err = float(jnp.max(jnp.abs(out - ref)))
    assert jnp.allclose(out, ref, atol=2e-2, rtol=2e-2), max_err

    print("KERNEL_OK")
</pallas_src>

<mosaic_0001>
module attributes {stable_mosaic.version = 11 : i64} {
  func.func @kernel(%arg0: i32, %arg1: i32, %arg2: memref<4x16x128xf32, #tpu.memory_space<vmem>>, %arg3: memref<2x1x128xf32, #tpu.memory_space<vmem>>, %arg4: memref<2x1x128xf32, #tpu.memory_space<vmem>>, %arg5: memref<2x128x384xbf16, #tpu.memory_space<vmem>>, %arg6: memref<2x1x384xf32, #tpu.memory_space<vmem>>, %arg7: memref<2x128x128xbf16, #tpu.memory_space<vmem>>, %arg8: memref<2x1x128xf32, #tpu.memory_space<vmem>>, %arg9: memref<2x1x128xf32, #tpu.memory_space<vmem>>, %arg10: memref<2x1x128xf32, #tpu.memory_space<vmem>>, %arg11: memref<2x128x512xbf16, #tpu.memory_space<vmem>>, %arg12: memref<2x1x512xf32, #tpu.memory_space<vmem>>, %arg13: memref<2x512x128xbf16, #tpu.memory_space<vmem>>, %arg14: memref<2x1x128xf32, #tpu.memory_space<vmem>>, %arg15: memref<4x16x128xf32, #tpu.memory_space<vmem>>, %arg16: memref<64x128xf32, #tpu.memory_space<vmem>>) attributes {dimension_semantics = [#tpu.dimension_semantics<parallel>, #tpu.dimension_semantics<arbitrary>], iteration_bounds = array<i64: 2, 2>, scalar_prefetch = 0 : i64, scratch_operands = 1 : i64, tpu.core_type = #tpu.core_type<tc>, window_params = [{transform_indices = @transform_0, window_bounds = array<i64: 4, 16, 128>}, {pipeline_mode = #tpu.pipeline_mode<synchronous>, transform_indices = @transform_1, window_bounds = array<i64: 2, 1, 128>}, {pipeline_mode = #tpu.pipeline_mode<synchronous>, transform_indices = @transform_2, window_bounds = array<i64: 2, 1, 128>}, {pipeline_mode = #tpu.pipeline_mode<synchronous>, transform_indices = @transform_3, window_bounds = array<i64: 2, 128, 384>}, {pipeline_mode = #tpu.pipeline_mode<synchronous>, transform_indices = @transform_4, window_bounds = array<i64: 2, 1, 384>}, {pipeline_mode = #tpu.pipeline_mode<synchronous>, transform_indices = @transform_5, window_bounds = array<i64: 2, 128, 128>}, {pipeline_mode = #tpu.pipeline_mode<synchronous>, transform_indices = @transform_6, window_bounds = array<i64: 2, 1, 128>}, {pipeline_mode = #tpu.pipeline_mode<synchronous>, transform_indices = @transform_7, window_bounds = array<i64: 2, 1, 128>}, {pipeline_mode = #tpu.pipeline_mode<synchronous>, transform_indices = @transform_8, window_bounds = array<i64: 2, 1, 128>}, {pipeline_mode = #tpu.pipeline_mode<synchronous>, transform_indices = @transform_9, window_bounds = array<i64: 2, 128, 512>}, {pipeline_mode = #tpu.pipeline_mode<synchronous>, transform_indices = @transform_10, window_bounds = array<i64: 2, 1, 512>}, {pipeline_mode = #tpu.pipeline_mode<synchronous>, transform_indices = @transform_11, window_bounds = array<i64: 2, 512, 128>}, {pipeline_mode = #tpu.pipeline_mode<synchronous>, transform_indices = @transform_12, window_bounds = array<i64: 2, 1, 128>}, {transform_indices = @transform_13, window_bounds = array<i64: 4, 16, 128>}]} {
    %c0_i32 = arith.constant 0 : i32
    %0 = arith.cmpi eq, %arg1, %c0_i32 : i32
    %1 = arith.extui %0 : i1 to i32
    %c0_i32_0 = arith.constant 0 : i32
    %2 = arith.cmpi ne, %1, %c0_i32_0 : i32
    scf.if %2 {
      %c0_51 = arith.constant 0 : index
      %c0_52 = arith.constant 0 : index
      %c0_53 = arith.constant 0 : index
      %147 = vector.load %arg2[%c0_51, %c0_52, %c0_53] : memref<4x16x128xf32, #tpu.memory_space<vmem>>, vector<4x16x128xf32>
      %148 = vector.shape_cast %147 : vector<4x16x128xf32> to vector<64x128xf32>
      %c0_54 = arith.constant 0 : index
      %c0_55 = arith.constant 0 : index
      %149 = vector.load %arg16[%c0_54, %c0_55] : memref<64x128xf32, #tpu.memory_space<vmem>>, vector<64x128xf32>
      tpu.vector_store %arg16[%c0_54, %c0_55], %148 {strides = array<i32>} : memref<64x128xf32, #tpu.memory_space<vmem>>, vector<64x128xf32>,
    } else {
    }
    %c0 = arith.constant 0 : index
    %c0_1 = arith.constant 0 : index
    %3 = vector.load %arg16[%c0, %c0_1] : memref<64x128xf32, #tpu.memory_space<vmem>>, vector<64x128xf32>
    %4 = arith.index_cast %arg1 : i32 to index
    %c0_2 = arith.constant 0 : index
    %c0_3 = arith.constant 0 : index
    %5 = vector.load %arg3[%4, %c0_2, %c0_3] : memref<2x1x128xf32, #tpu.memory_space<vmem>>, vector<1x1x128xf32>
    %6 = vector.shape_cast %5 : vector<1x1x128xf32> to vector<1x128xf32>
    %7 = arith.index_cast %arg1 : i32 to index
    %c0_4 = arith.constant 0 : index
    %c0_5 = arith.constant 0 : index
    %8 = vector.load %arg4[%7, %c0_4, %c0_5] : memref<2x1x128xf32, #tpu.memory_space<vmem>>, vector<1x1x128xf32>
    %9 = vector.shape_cast %8 : vector<1x1x128xf32> to vector<1x128xf32>
    %cst = arith.constant dense<0.000000e+00> : vector<64xf32>
    %10 = vector.multi_reduction <add>, %3, %cst [1] : vector<64x128xf32> to vector<64xf32>
    %11 = vector.shape_cast %10 : vector<64xf32> to vector<64x1xf32>
    %cst_6 = arith.constant 1.280000e+02 : f32
    %12 = vector.broadcast %cst_6 : f32 to vector<64x1xf32>
    %13 = arith.divf %11, %12 : vector<64x1xf32>
    %14 = vector.broadcast %13 : vector<64x1xf32> to vector<64x128xf32>
    %15 = arith.subf %3, %14 : vector<64x128xf32>
    %16 = arith.mulf %15, %15 : vector<64x128xf32>
    %cst_7 = arith.constant dense<0.000000e+00> : vector<64xf32>
    %17 = vector.multi_reduction <add>, %16, %cst_7 [1] : vector<64x128xf32> to vector<64xf32>
    %18 = vector.shape_cast %17 : vector<64xf32> to vector<64x1xf32>
    %cst_8 = arith.constant 1.280000e+02 : f32
    %19 = vector.broadcast %cst_8 : f32 to vector<64x1xf32>
    %20 = arith.divf %18, %19 : vector<64x1xf32>
    %21 = vector.broadcast %13 : vector<64x1xf32> to vector<64x128xf32>
    %22 = arith.subf %3, %21 : vector<64x128xf32>
    %cst_9 = arith.constant 9.99999974E-6 : f32
    %23 = vector.broadcast %cst_9 : f32 to vector<64x1xf32>
    %24 = arith.addf %20, %23 : vector<64x1xf32>
    %25 = math.rsqrt %24 : vector<64x1xf32>
    %26 = vector.broadcast %25 : vector<64x1xf32> to vector<64x128xf32>
    %27 = arith.mulf %22, %26 : vector<64x128xf32>
    %28 = vector.broadcast %6 : vector<1x128xf32> to vector<64x128xf32>
    %29 = arith.mulf %27, %28 : vector<64x128xf32>
    %30 = vector.broadcast %9 : vector<1x128xf32> to vector<64x128xf32>
    %31 = arith.addf %29, %30 : vector<64x128xf32>
    %32 = arith.truncf %31 : vector<64x128xf32> to vector<64x128xbf16>
    %33 = arith.index_cast %arg1 : i32 to index
    %c0_10 = arith.constant 0 : index
    %c0_11 = arith.constant 0 : index
    %34 = vector.load %arg5[%33, %c0_10, %c0_11] : memref<2x128x384xbf16, #tpu.memory_space<vmem>>, vector<1x128x384xbf16>
    %35 = vector.shape_cast %34 : vector<1x128x384xbf16> to vector<128x384xbf16>
    %cst_12 = arith.constant dense<0.000000e+00> : vector<64x384xf32>
    %36 = tpu.matmul %32, %35, %cst_12 {dimension_numbers = #tpu.dot_dimension_numbers<[1], [0], [0], [1], [0, 0, 1, 1], [], []>} : vector<64x128xbf16>, vector<128x384xbf16>, vector<64x384xf32> -> vector<64x384xf32>
    %37 = arith.index_cast %arg1 : i32 to index
    %c0_13 = arith.constant 0 : index
    %c0_14 = arith.constant 0 : index
    %38 = vector.load %arg6[%37, %c0_13, %c0_14] : memref<2x1x384xf32, #tpu.memory_space<vmem>>, vector<1x1x384xf32>
    %39 = vector.shape_cast %38 : vector<1x1x384xf32> to vector<1x384xf32>
    %40 = vector.broadcast %39 : vector<1x384xf32> to vector<64x384xf32>
    %41 = arith.addf %36, %40 : vector<64x384xf32>
    %42 = arith.truncf %41 : vector<64x384xf32> to vector<64x384xbf16>
    %43 = vector.shape_cast %42 : vector<64x384xbf16> to vector<4x16x384xbf16>
    %44 = vector.extract_strided_slice %43 {offsets = [0, 0, 0], sizes = [4, 16, 128], strides = [1, 1, 1]} : vector<4x16x384xbf16> to vector<4x16x128xbf16>
    %45 = vector.extract_strided_slice %43 {offsets = [0, 0, 128], sizes = [4, 16, 128], strides = [1, 1, 1]} : vector<4x16x384xbf16> to vector<4x16x128xbf16>
    %46 = vector.extract_strided_slice %43 {offsets = [0, 0, 256], sizes = [4, 16, 128], strides = [1, 1, 1]} : vector<4x16x384xbf16> to vector<4x16x128xbf16>
    %47 = vector.extract_strided_slice %44 {offsets = [0, 0, 0], sizes = [4, 16, 64], strides = [1, 1, 1]} : vector<4x16x128xbf16> to vector<4x16x64xbf16>
    %48 = vector.extract_strided_slice %45 {offsets = [0, 0, 0], sizes = [4, 16, 64], strides = [1, 1, 1]} : vector<4x16x128xbf16> to vector<4x16x64xbf16>
    "tpu.trace_start"() <{level = 10 : i32, message = "bqd,bkd->bqk"}> : () -> ()
    %cst_15 = arith.constant dense<0.000000e+00> : vector<4x16x16xf32>
    %49 = tpu.matmul %47, %48, %cst_15 {dimension_numbers = #tpu.dot_dimension_numbers<[2], [2], [1], [1], [0, 0, 0, 1, 1, 1], [0], [0]>} : vector<4x16x64xbf16>, vector<4x16x64xbf16>, vector<4x16x16xf32> -> vector<4x16x16xf32>
    "tpu.trace_stop"() : () -> ()
    %cst_16 = arith.constant dense<0xFF800000> : vector<4x16xf32>
    %50 = vector.multi_reduction <maximumf>, %49, %cst_16 [2] : vector<4x16x16xf32> to vector<4x16xf32>
    %51 = vector.shape_cast %50 : vector<4x16xf32> to vector<4x16x1xf32>
    %52 = vector.broadcast %51 : vector<4x16x1xf32> to vector<4x16x16xf32>
    %53 = arith.subf %49, %52 : vector<4x16x16xf32>
    %54 = math.exp %53 : vector<4x16x16xf32>
    %cst_17 = arith.constant dense<0.000000e+00> : vector<4x16xf32>
    %55 = vector.multi_reduction <add>, %54, %cst_17 [2] : vector<4x16x16xf32> to vector<4x16xf32>
    %56 = vector.shape_cast %55 : vector<4x16xf32> to vector<4x16x1xf32>
    %57 = tpu.reciprocal %56 {approx = true} : vector<4x16x1xf32> -> vector<4x16x1xf32>
    %58 = vector.broadcast %57 : vector<4x16x1xf32> to vector<4x16x16xf32>
    %59 = arith.mulf %54, %58 : vector<4x16x16xf32>
    %60 = arith.truncf %59 : vector<4x16x16xf32> to vector<4x16x16xbf16>
    %61 = vector.extract_strided_slice %46 {offsets = [0, 0, 0], sizes = [4, 16, 64], strides = [1, 1, 1]} : vector<4x16x128xbf16> to vector<4x16x64xbf16>
    "tpu.trace_start"() <{level = 10 : i32, message = "bqk,bkd->bqd"}> : () -> ()
    %cst_18 = arith.constant dense<0.000000e+00> : vector<4x16x64xf32>
    %62 = tpu.matmul %60, %61, %cst_18 {dimension_numbers = #tpu.dot_dimension_numbers<[2], [1], [1], [2], [0, 0, 0, 1, 1, 2], [0], [0]>} : vector<4x16x16xbf16>, vector<4x16x64xbf16>, vector<4x16x64xf32> -> vector<4x16x64xf32>
    "tpu.trace_stop"() : () -> ()
    %63 = vector.extract_strided_slice %44 {offsets = [0, 0, 64], sizes = [4, 16, 64], strides = [1, 1, 1]} : vector<4x16x128xbf16> to vector<4x16x64xbf16>
    %64 = vector.extract_strided_slice %45 {offsets = [0, 0, 64], sizes = [4, 16, 64], strides = [1, 1, 1]} : vector<4x16x128xbf16> to vector<4x16x64xbf16>
    "tpu.trace_start"() <{level = 10 : i32, message = "bqd,bkd->bqk"}> : () -> ()
    %cst_19 = arith.constant dense<0.000000e+00> : vector<4x16x16xf32>
    %65 = tpu.matmul %63, %64, %cst_19 {dimension_numbers = #tpu.dot_dimension_numbers<[2], [2], [1], [1], [0, 0, 0, 1, 1, 1], [0], [0]>} : vector<4x16x64xbf16>, vector<4x16x64xbf16>, vector<4x16x16xf32> -> vector<4x16x16xf32>
    "tpu.trace_stop"() : () -> ()
    %cst_20 = arith.constant dense<0xFF800000> : vector<4x16xf32>
    %66 = vector.multi_reduction <maximumf>, %65, %cst_20 [2] : vector<4x16x16xf32> to vector<4x16xf32>
    %67 = vector.shape_cast %66 : vector<4x16xf32> to vector<4x16x1xf32>
    %68 = vector.broadcast %67 : vector<4x16x1xf32> to vector<4x16x16xf32>
    %69 = arith.subf %65, %68 : vector<4x16x16xf32>
    %70 = math.exp %69 : vector<4x16x16xf32>
    %cst_21 = arith.constant dense<0.000000e+00> : vector<4x16xf32>
    %71 = vector.multi_reduction <add>, %70, %cst_21 [2] : vector<4x16x16xf32> to vector<4x16xf32>
    %72 = vector.shape_cast %71 : vector<4x16xf32> to vector<4x16x1xf32>
    %73 = tpu.reciprocal %72 {approx = true} : vector<4x16x1xf32> -> vector<4x16x1xf32>
    %74 = vector.broadcast %73 : vector<4x16x1xf32> to vector<4x16x16xf32>
    %75 = arith.mulf %70, %74 : vector<4x16x16xf32>
    %76 = arith.truncf %75 : vector<4x16x16xf32> to vector<4x16x16xbf16>
    %77 = vector.extract_strided_slice %46 {offsets = [0, 0, 64], sizes = [4, 16, 64], strides = [1, 1, 1]} : vector<4x16x128xbf16> to vector<4x16x64xbf16>
    "tpu.trace_start"() <{level = 10 : i32, message = "bqk,bkd->bqd"}> : () -> ()
    %cst_22 = arith.constant dense<0.000000e+00> : vector<4x16x64xf32>
    %78 = tpu.matmul %76, %77, %cst_22 {dimension_numbers = #tpu.dot_dimension_numbers<[2], [1], [1], [2], [0, 0, 0, 1, 1, 2], [0], [0]>} : vector<4x16x16xbf16>, vector<4x16x64xbf16>, vector<4x16x64xf32> -> vector<4x16x64xf32>
    "tpu.trace_stop"() : () -> ()
    %79 = tpu.concatenate %62, %78 in 2 : vector<4x16x64xf32>, vector<4x16x64xf32> -> vector<4x16x128xf32>
    %80 = vector.shape_cast %79 : vector<4x16x128xf32> to vector<64x128xf32>
    %81 = arith.truncf %80 : vector<64x128xf32> to vector<64x128xbf16>
    %82 = arith.index_cast %arg1 : i32 to index
    %c0_23 = arith.constant 0 : index
    %c0_24 = arith.constant 0 : index
    %83 = vector.load %arg7[%82, %c0_23, %c0_24] : memref<2x128x128xbf16, #tpu.memory_space<vmem>>, vector<1x128x128xbf16>
    %84 = vector.shape_cast %83 : vector<1x128x128xbf16> to vector<128x128xbf16>
    %cst_25 = arith.constant dense<0.000000e+00> : vector<64x128xf32>
    %85 = tpu.matmul %81, %84, %cst_25 {dimension_numbers = #tpu.dot_dimension_numbers<[1], [0], [0], [1], [0, 0, 1, 1], [], []>} : vector<64x128xbf16>, vector<128x128xbf16>, vector<64x128xf32> -> vector<64x128xf32>
    %86 = arith.index_cast %arg1 : i32 to index
    %c0_26 = arith.constant 0 : index
    %c0_27 = arith.constant 0 : index
    %87 = vector.load %arg8[%86, %c0_26, %c0_27] : memref<2x1x128xf32, #tpu.memory_space<vmem>>, vector<1x1x128xf32>
    %88 = vector.shape_cast %87 : vector<1x1x128xf32> to vector<1x128xf32>
    %89 = vector.broadcast %88 : vector<1x128xf32> to vector<64x128xf32>
    %90 = arith.addf %85, %89 : vector<64x128xf32>
    %91 = arith.addf %3, %90 : vector<64x128xf32>
    %92 = arith.index_cast %arg1 : i32 to index
    %c0_28 = arith.constant 0 : index
    %c0_29 = arith.constant 0 : index
    %93 = vector.load %arg9[%92, %c0_28, %c0_29] : memref<2x1x128xf32, #tpu.memory_space<vmem>>, vector<1x1x128xf32>
    %94 = vector.shape_cast %93 : vector<1x1x128xf32> to vector<1x128xf32>
    %95 = arith.index_cast %arg1 : i32 to index
    %c0_30 = arith.constant 0 : index
    %c0_31 = arith.constant 0 : index
    %96 = vector.load %arg10[%95, %c0_30, %c0_31] : memref<2x1x128xf32, #tpu.memory_space<vmem>>, vector<1x1x128xf32>
    %97 = vector.shape_cast %96 : vector<1x1x128xf32> to vector<1x128xf32>
    %cst_32 = arith.constant dense<0.000000e+00> : vector<64xf32>
    %98 = vector.multi_reduction <add>, %91, %cst_32 [1] : vector<64x128xf32> to vector<64xf32>
    %99 = vector.shape_cast %98 : vector<64xf32> to vector<64x1xf32>
    %cst_33 = arith.constant 1.280000e+02 : f32
    %100 = vector.broadcast %cst_33 : f32 to vector<64x1xf32>
    %101 = arith.divf %99, %100 : vector<64x1xf32>
    %102 = vector.broadcast %101 : vector<64x1xf32> to vector<64x128xf32>
    %103 = arith.subf %91, %102 : vector<64x128xf32>
    %104 = arith.mulf %103, %103 : vector<64x128xf32>
    %cst_34 = arith.constant dense<0.000000e+00> : vector<64xf32>
    %105 = vector.multi_reduction <add>, %104, %cst_34 [1] : vector<64x128xf32> to vector<64xf32>
    %106 = vector.shape_cast %105 : vector<64xf32> to vector<64x1xf32>
    %cst_35 = arith.constant 1.280000e+02 : f32
    %107 = vector.broadcast %cst_35 : f32 to vector<64x1xf32>
    %108 = arith.divf %106, %107 : vector<64x1xf32>
    %109 = vector.broadcast %101 : vector<64x1xf32> to vector<64x128xf32>
    %110 = arith.subf %91, %109 : vector<64x128xf32>
    %cst_36 = arith.constant 9.99999974E-6 : f32
    %111 = vector.broadcast %cst_36 : f32 to vector<64x1xf32>
    %112 = arith.addf %108, %111 : vector<64x1xf32>
    %113 = math.rsqrt %112 : vector<64x1xf32>
    %114 = vector.broadcast %113 : vector<64x1xf32> to vector<64x128xf32>
    %115 = arith.mulf %110, %114 : vector<64x128xf32>
    %116 = vector.broadcast %94 : vector<1x128xf32> to vector<64x128xf32>
    %117 = arith.mulf %115, %116 : vector<64x128xf32>
    %118 = vector.broadcast %97 : vector<1x128xf32> to vector<64x128xf32>
    %119 = arith.addf %117, %118 : vector<64x128xf32>
    %120 = arith.truncf %119 : vector<64x128xf32> to vector<64x128xbf16>
    %121 = arith.index_cast %arg1 : i32 to index
    %c0_37 = arith.constant 0 : index
    %c0_38 = arith.constant 0 : index
    %122 = vector.load %arg11[%121, %c0_37, %c0_38] : memref<2x128x512xbf16, #tpu.memory_space<vmem>>, vector<1x128x512xbf16>
    %123 = vector.shape_cast %122 : vector<1x128x512xbf16> to vector<128x512xbf16>
    %cst_39 = arith.constant dense<0.000000e+00> : vector<64x512xf32>
    %124 = tpu.matmul %120, %123, %cst_39 {dimension_numbers = #tpu.dot_dimension_numbers<[1], [0], [0], [1], [0, 0, 1, 1], [], []>} : vector<64x128xbf16>, vector<128x512xbf16>, vector<64x512xf32> -> vector<64x512xf32>
    %125 = arith.index_cast %arg1 : i32 to index
    %c0_40 = arith.constant 0 : index
    %c0_41 = arith.constant 0 : index
    %126 = vector.load %arg12[%125, %c0_40, %c0_41] : memref<2x1x512xf32, #tpu.memory_space<vmem>>, vector<1x1x512xf32>
    %127 = vector.shape_cast %126 : vector<1x1x512xf32> to vector<1x512xf32>
    %128 = vector.broadcast %127 : vector<1x512xf32> to vector<64x512xf32>
    %129 = arith.addf %124, %128 : vector<64x512xf32>
    %cst_42 = arith.constant 0.000000e+00 : f32
    %130 = vector.broadcast %cst_42 : f32 to vector<64x512xf32>
    %131 = arith.maximumf %129, %130 : vector<64x512xf32>
    %132 = arith.truncf %131 : vector<64x512xf32> to vector<64x512xbf16>
    %133 = arith.index_cast %arg1 : i32 to index
    %c0_43 = arith.constant 0 : index
    %c0_44 = arith.constant 0 : index
    %134 = vector.load %arg13[%133, %c0_43, %c0_44] : memref<2x512x128xbf16, #tpu.memory_space<vmem>>, vector<1x512x128xbf16>
    %135 = vector.shape_cast %134 : vector<1x512x128xbf16> to vector<512x128xbf16>
    %cst_45 = arith.constant dense<0.000000e+00> : vector<64x128xf32>
    %136 = tpu.matmul %132, %135, %cst_45 {dimension_numbers = #tpu.dot_dimension_numbers<[1], [0], [0], [1], [0, 0, 1, 1], [], []>} : vector<64x512xbf16>, vector<512x128xbf16>, vector<64x128xf32> -> vector<64x128xf32>
    %137 = arith.index_cast %arg1 : i32 to index
    %c0_46 = arith.constant 0 : index
    %c0_47 = arith.constant 0 : index
    %138 = vector.load %arg14[%137, %c0_46, %c0_47] : memref<2x1x128xf32, #tpu.memory_space<vmem>>, vector<1x1x128xf32>
    %139 = vector.shape_cast %138 : vector<1x1x128xf32> to vector<1x128xf32>
    %140 = vector.broadcast %139 : vector<1x128xf32> to vector<64x128xf32>
    %141 = arith.addf %136, %140 : vector<64x128xf32>
    %142 = arith.addf %91, %141 : vector<64x128xf32>
    %c0_48 = arith.constant 0 : index
    %c0_49 = arith.constant 0 : index
    %143 = vector.load %arg16[%c0_48, %c0_49] : memref<64x128xf32, #tpu.memory_space<vmem>>, vector<64x128xf32>
    tpu.vector_store %arg16[%c0_48, %c0_49], %142 {strides = array<i32>} : memref<64x128xf32, #tpu.memory_space<vmem>>, vector<64x128xf32>,
    %c1_i32 = arith.constant 1 : i32
    %144 = arith.cmpi eq, %arg1, %c1_i32 : i32
    %145 = arith.extui %144 : i1 to i32
    %c0_i32_50 = arith.constant 0 : i32
    %146 = arith.cmpi ne, %145, %c0_i32_50 : i32
    scf.if %146 {
      %147 = vector.shape_cast %142 : vector<64x128xf32> to vector<4x16x128xf32>
      %c0_51 = arith.constant 0 : index
      %c0_52 = arith.constant 0 : index
      %c0_53 = arith.constant 0 : index
      %148 = vector.load %arg15[%c0_51, %c0_52, %c0_53] : memref<4x16x128xf32, #tpu.memory_space<vmem>>, vector<4x16x128xf32>
      tpu.vector_store %arg15[%c0_51, %c0_52, %c0_53], %147 {strides = array<i32>} : memref<4x16x128xf32, #tpu.memory_space<vmem>>, vector<4x16x128xf32>,
    } else {
    }
    return
  }
  func.func @transform_0(%arg0: i32, %arg1: i32) -> (i32, i32, i32) {
    %c0_i32 = arith.constant 0 : i32
    %c0_i32_0 = arith.constant 0 : i32
    %c0_i32_1 = arith.constant 0 : i32
    return %arg0, %c0_i32, %c0_i32_0 : i32, i32, i32
  }
  func.func @transform_1(%arg0: i32, %arg1: i32) -> (i32, i32, i32) {
    %c0_i32 = arith.constant 0 : i32
    %c0_i32_0 = arith.constant 0 : i32
    %c0_i32_1 = arith.constant 0 : i32
    %c0_i32_2 = arith.constant 0 : i32
    return %c0_i32, %c0_i32_0, %c0_i32_1 : i32, i32, i32
  }
  func.func @transform_2(%arg0: i32, %arg1: i32) -> (i32, i32, i32) {
    %c0_i32 = arith.constant 0 : i32
    %c0_i32_0 = arith.constant 0 : i32
    %c0_i32_1 = arith.constant 0 : i32
    %c0_i32_2 = arith.constant 0 : i32
    return %c0_i32, %c0_i32_0, %c0_i32_1 : i32, i32, i32
  }
  func.func @transform_3(%arg0: i32, %arg1: i32) -> (i32, i32, i32) {
    %c0_i32 = arith.constant 0 : i32
    %c0_i32_0 = arith.constant 0 : i32
    %c0_i32_1 = arith.constant 0 : i32
    %c0_i32_2 = arith.constant 0 : i32
    return %c0_i32, %c0_i32_0, %c0_i32_1 : i32, i32, i32
  }
  func.func @transform_4(%arg0: i32, %arg1: i32) -> (i32, i32, i32) {
    %c0_i32 = arith.constant 0 : i32
    %c0_i32_0 = arith.constant 0 : i32
    %c0_i32_1 = arith.constant 0 : i32
    %c0_i32_2 = arith.constant 0 : i32
    return %c0_i32, %c0_i32_0, %c0_i32_1 : i32, i32, i32
  }
  func.func @transform_5(%arg0: i32, %arg1: i32) -> (i32, i32, i32) {
    %c0_i32 = arith.constant 0 : i32
    %c0_i32_0 = arith.constant 0 : i32
    %c0_i32_1 = arith.constant 0 : i32
    %c0_i32_2 = arith.constant 0 : i32
    return %c0_i32, %c0_i32_0, %c0_i32_1 : i32, i32, i32
  }
  func.func @transform_6(%arg0: i32, %arg1: i32) -> (i32, i32, i32) {
    %c0_i32 = arith.constant 0 : i32
    %c0_i32_0 = arith.constant 0 : i32
    %c0_i32_1 = arith.constant 0 : i32
    %c0_i32_2 = arith.constant 0 : i32
    return %c0_i32, %c0_i32_0, %c0_i32_1 : i32, i32, i32
  }
  func.func @transform_7(%arg0: i32, %arg1: i32) -> (i32, i32, i32) {
    %c0_i32 = arith.constant 0 : i32
    %c0_i32_0 = arith.constant 0 : i32
    %c0_i32_1 = arith.constant 0 : i32
    %c0_i32_2 = arith.constant 0 : i32
    return %c0_i32, %c0_i32_0, %c0_i32_1 : i32, i32, i32
  }
  func.func @transform_8(%arg0: i32, %arg1: i32) -> (i32, i32, i32) {
    %c0_i32 = arith.constant 0 : i32
    %c0_i32_0 = arith.constant 0 : i32
    %c0_i32_1 = arith.constant 0 : i32
    %c0_i32_2 = arith.constant 0 : i32
    return %c0_i32, %c0_i32_0, %c0_i32_1 : i32, i32, i32
  }
  func.func @transform_9(%arg0: i32, %arg1: i32) -> (i32, i32, i32) {
    %c0_i32 = arith.constant 0 : i32
    %c0_i32_0 = arith.constant 0 : i32
    %c0_i32_1 = arith.constant 0 : i32
    %c0_i32_2 = arith.constant 0 : i32
    return %c0_i32, %c0_i32_0, %c0_i32_1 : i32, i32, i32
  }
  func.func @transform_10(%arg0: i32, %arg1: i32) -> (i32, i32, i32) {
    %c0_i32 = arith.constant 0 : i32
    %c0_i32_0 = arith.constant 0 : i32
    %c0_i32_1 = arith.constant 0 : i32
    %c0_i32_2 = arith.constant 0 : i32
    return %c0_i32, %c0_i32_0, %c0_i32_1 : i32, i32, i32
  }
  func.func @transform_11(%arg0: i32, %arg1: i32) -> (i32, i32, i32) {
    %c0_i32 = arith.constant 0 : i32
    %c0_i32_0 = arith.constant 0 : i32
    %c0_i32_1 = arith.constant 0 : i32
    %c0_i32_2 = arith.constant 0 : i32
    return %c0_i32, %c0_i32_0, %c0_i32_1 : i32, i32, i32
  }
  func.func @transform_12(%arg0: i32, %arg1: i32) -> (i32, i32, i32) {
    %c0_i32 = arith.constant 0 : i32
    %c0_i32_0 = arith.constant 0 : i32
    %c0_i32_1 = arith.constant 0 : i32
    %c0_i32_2 = arith.constant 0 : i32
    return %c0_i32, %c0_i32_0, %c0_i32_1 : i32, i32, i32
  }
  func.func @transform_13(%arg0: i32, %arg1: i32) -> (i32, i32, i32) {
    %c0_i32 = arith.constant 0 : i32
    %c0_i32_0 = arith.constant 0 : i32
    %c0_i32_1 = arith.constant 0 : i32
    return %arg0, %c0_i32, %c0_i32_0 : i32, i32, i32
  }
}

</mosaic_0001>

<llo_original>
// kernel: tpu_custom_call.1
$region0: #{tpu_custom_call.1}
  #allocation0 [shape = 'u32[]', space=smem, size = 0x4, offset = 0x4, fixed_abs, tag = 'smem constant byte address 0x4 - core index']
  #allocation1 [shape = 'u32[144,128]{1,0:T(1,128)}', space=vmem, size = 0x12000, scoped, tag = 'internal scratch']
  #allocation2 [shape = 'f32[64,128]{1,0:T(8,128)}', space=vmem, size = 0x8000, scoped, tag = 'scratch operand']
  %s0 = inlined_call_operand.hbm [shape: f32[8,16,128], index: 0, kind: input, shape index: {}]
  %s1 = inlined_call_operand.hbm [shape: f32[2,1,128], index: 1, kind: input, shape index: {}]
  %s2 = inlined_call_operand.hbm [shape: f32[2,1,128], index: 2, kind: input, shape index: {}]
  %s3 = inlined_call_operand.hbm [shape: bf16[2,128,384], index: 3, kind: input, shape index: {}]
  %s4 = inlined_call_operand.vmem [shape: f32[2,1,384], index: 4, kind: input, shape index: {}]
  %s5 = inlined_call_operand.hbm [shape: bf16[2,128,128], index: 5, kind: input, shape index: {}]
  %s6 = inlined_call_operand.vmem [shape: f32[2,1,128], index: 6, kind: input, shape index: {}]
  %s7 = inlined_call_operand.vmem [shape: f32[2,1,128], index: 7, kind: input, shape index: {}]
  %s8 = inlined_call_operand.vmem [shape: f32[2,1,128], index: 8, kind: input, shape index: {}]
  %s9 = inlined_call_operand.hbm [shape: bf16[2,128,512], index: 9, kind: input, shape index: {}]
  %s10 = inlined_call_operand.vmem [shape: f32[2,1,512], index: 10, kind: input, shape index: {}]
  %s11 = inlined_call_operand.hbm [shape: bf16[2,512,128], index: 11, kind: input, shape index: {}]
  %s12 = inlined_call_operand.vmem [shape: f32[2,1,128], index: 12, kind: input, shape index: {}]
  %s13 = inlined_call_operand.hbm [shape: f32[8,16,128], index: 13, kind: output, shape index: {}]
  %s14 = sld [smem:[#allocation0]]
  $region121: #{tpu_custom_call.1} parent=0
    _
  %s16 = ssub.s32 1, %s14
  %s17 = scalar_select 0, %s16, %s14
  $region1: #{tpu_custom_call.1} parent=0
    #allocation3 [shape = 'u8[65536]{0}', space=vmem, size = 0x10000, scoped, tag = 'input window, operand 0']
    #allocation4 [shape = 's32[2]{0}', space=sflag, size = 0x8, scoped, tag = 'scoped memory for tpu_custom_call.1']
    #allocation5 [shape = 's32[2]{0}', space=sflag, size = 0x8, scoped, tag = 'scoped memory for tpu_custom_call.1']
    #allocation6 [shape = 'u8[1024]{0}', space=vmem, size = 0x400, scoped, tag = 'input window, operand 1, single buffered']
    #allocation7 [shape = 's32[1]{0}', space=sflag, size = 0x4, scoped, tag = 'scoped memory for tpu_custom_call.1']
    #allocation8 [shape = 'u8[1024]{0}', space=vmem, size = 0x400, scoped, tag = 'input window, operand 2, single buffered']
    #allocation9 [shape = 'u8[196608]{0}', space=vmem, size = 0x30000, scoped, tag = 'input window, operand 3, single buffered']
    #allocation10 [shape = 's32[1]{0}', space=sflag, size = 0x4, scoped, tag = 'scoped memory for tpu_custom_call.1']
    #allocation11 [shape = 'u8[65536]{0}', space=vmem, size = 0x10000, scoped, tag = 'input window, operand 5, single buffered']
    #allocation12 [shape = 'u8[262144]{0}', space=vmem, size = 0x40000, scoped, tag = 'input window, operand 9, single buffered']
    #allocation13 [shape = 's32[1]{0}', space=sflag, size = 0x4, scoped, tag = 'scoped memory for tpu_custom_call.1']
    #allocation14 [shape = 'u8[262144]{0}', space=vmem, size = 0x40000, scoped, tag = 'input window, operand 11, single buffered']
    #allocation15 [shape = 'u8[65536]{0}', space=vmem, size = 0x10000, scoped, tag = 'output window, operand 0']
    %18 = vsyncpa [#allocation4], 0
    %s19 = scalar_lea.sflag [#allocation4], 1
    %20 = vsyncpa %s19, 0
    %21 = vsyncpa [#allocation7], 0
    %22 = vsyncpa [#allocation10], 0
    %23 = vsyncpa [#allocation13], 0
    %24 = vsyncpa [#allocation5], 0
    %s25 = scalar_lea.sflag [#allocation5], 1
    %26 = vsyncpa %s25, 0
    loop: start=0, step=1, limit=6
    $region2: #{tpu_custom_call.1} parent=1 // loop_pre_header
      _
    $region3: #{tpu_custom_call.1} parent=1 // loop_header
      %s28 = sphi 0, %s32
      %p29 = scmp.ge.s32.totalorder %s28, 6
      %s35 = sphi 0, %s47
      %s36 = sphi 0, %s43
      %s37 = sphi 0, %s35
      %s38 = sphi 0, %s36
      %s39 = sphi 0, %s37
      %s40 = sphi 0, %s38
      %s50 = sphi 0, %s52
      %s53 = sphi 0, %s50
      %s54 = sphi 0, %s53
      %s70 = sphi 0, %s54
      %s74 = sphi 0, %s74
      %s76 = sphi 0, %s74
      %s77 = sphi 0, %s76
      %s91 = sphi 0, %s77
      %s95 = sphi 0, %s95
      %s97 = sphi 0, %s95
      %s98 = sphi 0, %s97
      %s112 = sphi 0, %s98
      %s116 = sphi 0, %s116
      %s118 = sphi 0, %s116
      %s119 = sphi 0, %s118
      %s133 = sphi 0, %s119
      %s137 = sphi 0, %s137
      %s139 = sphi 0, %s137
      %s140 = sphi 0, %s139
      %s154 = sphi 0, %s140
      %s158 = sphi 0, %s158
      %s160 = sphi 0, %s158
      %s161 = sphi 0, %s160
      %s175 = sphi 0, %s161
      %s179 = sphi 0, %s179
      %s181 = sphi 0, %s179
      %s182 = sphi 0, %s181
      %s196 = sphi 0, %s182
      %s200 = sphi 0, %s200
      %s202 = sphi 0, %s200
      %s203 = sphi 0, %s202
      %s217 = sphi 0, %s203
      %s221 = sphi 0, %s221
      %s223 = sphi 0, %s221
      %s224 = sphi 0, %s223
      %s238 = sphi 0, %s224
      %s242 = sphi 0, %s242
      %s244 = sphi 0, %s242
      %s245 = sphi 0, %s244
      %s259 = sphi 0, %s245
      %s263 = sphi 0, %s263
      %s265 = sphi 0, %s263
      %s266 = sphi 0, %s265
      %s280 = sphi 0, %s266
      %s284 = sphi 0, %s284
      %s286 = sphi 0, %s284
      %s287 = sphi 0, %s286
      %s301 = sphi 0, %s287
      %s305 = sphi 0, %s305
      %s307 = sphi 0, %s305
      %s308 = sphi 0, %s307
      %s322 = sphi 0, %s308
      %s328 = sphi 0, %s330
      %s331 = sphi 0, %s328
      %s332 = sphi 0, %s331
      %s348 = sphi 0, %s332
    $region4: #{tpu_custom_call.1} parent=1 // loop_header_branch
      %31 = sbr.rel (%p29) target = $region8
    $region5: #{tpu_custom_call.1} parent=1 // loop_body
      %s33 = ssub.s32 %s28, 1
      %s34 = ssub.s32 %s28, 2
      %s41 = sadd.s32 1, %s36
      %p42 = scmp.ge.s32.totalorder %s41, 2
      %s43 = scalar_select %p42, 0, %s41
      %s44 = sadd.s32 1, %s35
      %s45 = scalar_select %p42, %s44, %s35
      %p46 = scmp.ge.s32.totalorder %s45, 2
      %s47 = scalar_select %p46, 0, %s45
      %s48 = ssub.s32 %s35, %s47
      %p49 = scmp.eq.s32.totalorder %s48, 0
      %s51 = sadd.s32 %s50, 1
      %s52 = scalar_select %p49, %s50, %s51
      %p55 = pneg %p49
      %p56 = scmp.eq.s32.totalorder %s28, 3
      %p57 = por %p55, %p56
      %p58 = scmp.ne.s32.totalorder %s50, %s53
      %p59 = scmp.eq.s32.totalorder %s28, 0
      %p60 = por %p58, %p59
      %p61 = scmp.ne.s32.totalorder %s50, %s53
      %p62 = scmp.eq.s32.totalorder %s33, 3
      %p63 = por %p61, %p62
      %p64 = scmp.ne.s32.totalorder %s53, %s54
      %p65 = scmp.eq.s32.totalorder %s33, 0
      %p66 = por %p64, %p65
      %p67 = scmp.ne.s32.totalorder %s53, %s54
      %p68 = scmp.eq.s32.totalorder %s34, 3
      %p69 = por %p67, %p68
      %p71 = scmp.ne.s32.totalorder %s54, %s70
      %p72 = scmp.eq.s32.totalorder %s34, 0
      %p73 = por %p71, %p72
      %s75 = sadd.s32 %s74, 1
      %p78 = scmp.eq.s32.totalorder %s28, 3
      %p79 = scmp.ne.s32.totalorder %s74, %s76
      %p80 = scmp.eq.s32.totalorder %s28, 0
      %p81 = por %p79, %p80
      %p82 = scmp.ne.s32.totalorder %s74, %s76
      %p83 = scmp.eq.s32.totalorder %s33, 3
      %p84 = por %p82, %p83
      %p85 = scmp.ne.s32.totalorder %s76, %s77
      %p86 = scmp.eq.s32.totalorder %s33, 0
      %p87 = por %p85, %p86
      %p88 = scmp.ne.s32.totalorder %s76, %s77
      %p89 = scmp.eq.s32.totalorder %s34, 3
      %p90 = por %p88, %p89
      %p92 = scmp.ne.s32.totalorder %s77, %s91
      %p93 = scmp.eq.s32.totalorder %s34, 0
      %p94 = por %p92, %p93
      %s96 = sadd.s32 %s95, 1
      %p99 = scmp.eq.s32.totalorder %s28, 3
      %p100 = scmp.ne.s32.totalorder %s95, %s97
      %p101 = scmp.eq.s32.totalorder %s28, 0
      %p102 = por %p100, %p101
      %p103 = scmp.ne.s32.totalorder %s95, %s97
      %p104 = scmp.eq.s32.totalorder %s33, 3
      %p105 = por %p103, %p104
      %p106 = scmp.ne.s32.totalorder %s97, %s98
      %p107 = scmp.eq.s32.totalorder %s33, 0
      %p108 = por %p106, %p107
      %p109 = scmp.ne.s32.totalorder %s97, %s98
      %p110 = scmp.eq.s32.totalorder %s34, 3
      %p111 = por %p109, %p110
      %p113 = scmp.ne.s32.totalorder %s98, %s112
      %p114 = scmp.eq.s32.totalorder %s34, 0
      %p115 = por %p113, %p114
      %s117 = sadd.s32 %s116, 1
      %p120 = scmp.eq.s32.totalorder %s28, 3
      %p121 = scmp.ne.s32.totalorder %s116, %s118
      %p122 = scmp.eq.s32.totalorder %s28, 0
      %p123 = por %p121, %p122
      %p124 = scmp.ne.s32.totalorder %s116, %s118
      %p125 = scmp.eq.s32.totalorder %s33, 3
      %p126 = por %p124, %p125
      %p127 = scmp.ne.s32.totalorder %s118, %s119
      %p128 = scmp.eq.s32.totalorder %s33, 0
      %p129 = por %p127, %p128
      %p130 = scmp.ne.s32.totalorder %s118, %s119
      %p131 = scmp.eq.s32.totalorder %s34, 3
      %p132 = por %p130, %p131
      %p134 = scmp.ne.s32.totalorder %s119, %s133
      %p135 = scmp.eq.s32.totalorder %s34, 0
      %p136 = por %p134, %p135
      %s138 = sadd.s32 %s137, 1
      %p141 = scmp.eq.s32.totalorder %s28, 3
      %p142 = scmp.ne.s32.totalorder %s137, %s139
      %p143 = scmp.eq.s32.totalorder %s28, 0
      %p144 = por %p142, %p143
      %p145 = scmp.ne.s32.totalorder %s137, %s139
      %p146 = scmp.eq.s32.totalorder %s33, 3
      %p147 = por %p145, %p146
      %p148 = scmp.ne.s32.totalorder %s139, %s140
      %p149 = scmp.eq.s32.totalorder %s33, 0
      %p150 = por %p148, %p149
      %p151 = scmp.ne.s32.totalorder %s139, %s140
      %p152 = scmp.eq.s32.totalorder %s34, 3
      %p153 = por %p151, %p152
      %p155 = scmp.ne.s32.totalorder %s140, %s154
      %p156 = scmp.eq.s32.totalorder %s34, 0
      %p157 = por %p155, %p156
      %s159 = sadd.s32 %s158, 1
      %p162 = scmp.eq.s32.totalorder %s28, 3
      %p163 = scmp.ne.s32.totalorder %s158, %s160
      %p164 = scmp.eq.s32.totalorder %s28, 0
      %p165 = por %p163, %p164
      %p166 = scmp.ne.s32.totalorder %s158, %s160
      %p167 = scmp.eq.s32.totalorder %s33, 3
      %p168 = por %p166, %p167
      %p169 = scmp.ne.s32.totalorder %s160, %s161
      %p170 = scmp.eq.s32.totalorder %s33, 0
      %p171 = por %p169, %p170
      %p172 = scmp.ne.s32.totalorder %s160, %s161
      %p173 = scmp.eq.s32.totalorder %s34, 3
      %p174 = por %p172, %p173
      %p176 = scmp.ne.s32.totalorder %s161, %s175
      %p177 = scmp.eq.s32.totalorder %s34, 0
      %p178 = por %p176, %p177
      %s180 = sadd.s32 %s179, 1
      %p183 = scmp.eq.s32.totalorder %s28, 3
      %p184 = scmp.ne.s32.totalorder %s179, %s181
      %p185 = scmp.eq.s32.totalorder %s28, 0
      %p186 = por %p184, %p185
      %p187 = scmp.ne.s32.totalorder %s179, %s181
      %p188 = scmp.eq.s32.totalorder %s33, 3
      %p189 = por %p187, %p188
      %p190 = scmp.ne.s32.totalorder %s181, %s182
      %p191 = scmp.eq.s32.totalorder %s33, 0
      %p192 = por %p190, %p191
      %p193 = scmp.ne.s32.totalorder %s181, %s182
      %p194 = scmp.eq.s32.totalorder %s34, 3
      %p195 = por %p193, %p194
      %p197 = scmp.ne.s32.totalorder %s182, %s196
      %p198 = scmp.eq.s32.totalorder %s34, 0
      %p199 = por %p197, %p198
      %s201 = sadd.s32 %s200, 1
      %p204 = scmp.eq.s32.totalorder %s28, 3
      %p205 = scmp.ne.s32.totalorder %s200, %s202
      %p206 = scmp.eq.s32.totalorder %s28, 0
      %p207 = por %p205, %p206
      %p208 = scmp.ne.s32.totalorder %s200, %s202
      %p209 = scmp.eq.s32.totalorder %s33, 3
      %p210 = por %p208, %p209
      %p211 = scmp.ne.s32.totalorder %s202, %s203
      %p212 = scmp.eq.s32.totalorder %s33, 0
      %p213 = por %p211, %p212
      %p214 = scmp.ne.s32.totalorder %s202, %s203
      %p215 = scmp.eq.s32.totalorder %s34, 3
      %p216 = por %p214, %p215
      %p218 = scmp.ne.s32.totalorder %s203, %s217
      %p219 = scmp.eq.s32.totalorder %s34, 0
      %p220 = por %p218, %p219
      %s222 = sadd.s32 %s221, 1
      %p225 = scmp.eq.s32.totalorder %s28, 3
      %p226 = scmp.ne.s32.totalorder %s221, %s223
      %p227 = scmp.eq.s32.totalorder %s28, 0
      %p228 = por %p226, %p227
      %p229 = scmp.ne.s32.totalorder %s221, %s223
      %p230 = scmp.eq.s32.totalorder %s33, 3
      %p231 = por %p229, %p230
      %p232 = scmp.ne.s32.totalorder %s223, %s224
      %p233 = scmp.eq.s32.totalorder %s33, 0
      %p234 = por %p232, %p233
      %p235 = scmp.ne.s32.totalorder %s223, %s224
      %p236 = scmp.eq.s32.totalorder %s34, 3
      %p237 = por %p235, %p236
      %p239 = scmp.ne.s32.totalorder %s224, %s238
      %p240 = scmp.eq.s32.totalorder %s34, 0
      %p241 = por %p239, %p240
      %s243 = sadd.s32 %s242, 1
      %p246 = scmp.eq.s32.totalorder %s28, 3
      %p247 = scmp.ne.s32.totalorder %s242, %s244
      %p248 = scmp.eq.s32.totalorder %s28, 0
      %p249 = por %p247, %p248
      %p250 = scmp.ne.s32.totalorder %s242, %s244
      %p251 = scmp.eq.s32.totalorder %s33, 3
      %p252 = por %p250, %p251
      %p253 = scmp.ne.s32.totalorder %s244, %s245
      %p254 = scmp.eq.s32.totalorder %s33, 0
      %p255 = por %p253, %p254
      %p256 = scmp.ne.s32.totalorder %s244, %s245
      %p257 = scmp.eq.s32.totalorder %s34, 3
      %p258 = por %p256, %p257
      %p260 = scmp.ne.s32.totalorder %s245, %s259
      %p261 = scmp.eq.s32.totalorder %s34, 0
      %p262 = por %p260, %p261
      %s264 = sadd.s32 %s263, 1
      %p267 = scmp.eq.s32.totalorder %s28, 3
      %p268 = scmp.ne.s32.totalorder %s263, %s265
      %p269 = scmp.eq.s32.totalorder %s28, 0
      %p270 = por %p268, %p269
      %p271 = scmp.ne.s32.totalorder %s263, %s265
      %p272 = scmp.eq.s32.totalorder %s33, 3
      %p273 = por %p271, %p272
      %p274 = scmp.ne.s32.totalorder %s265, %s266
      %p275 = scmp.eq.s32.totalorder %s33, 0
      %p276 = por %p274, %p275
      %p277 = scmp.ne.s32.totalorder %s265, %s266
      %p278 = scmp.eq.s32.totalorder %s34, 3
      %p279 = por %p277, %p278
      %p281 = scmp.ne.s32.totalorder %s266, %s280
      %p282 = scmp.eq.s32.totalorder %s34, 0
      %p283 = por %p281, %p282
      %s285 = sadd.s32 %s284, 1
      %p288 = scmp.eq.s32.totalorder %s28, 3
      %p289 = scmp.ne.s32.totalorder %s284, %s286
      %p290 = scmp.eq.s32.totalorder %s28, 0
      %p291 = por %p289, %p290
      %p292 = scmp.ne.s32.totalorder %s284, %s286
      %p293 = scmp.eq.s32.totalorder %s33, 3
      %p294 = por %p292, %p293
      %p295 = scmp.ne.s32.totalorder %s286, %s287
      %p296 = scmp.eq.s32.totalorder %s33, 0
      %p297 = por %p295, %p296
      %p298 = scmp.ne.s32.totalorder %s286, %s287
      %p299 = scmp.eq.s32.totalorder %s34, 3
      %p300 = por %p298, %p299
      %p302 = scmp.ne.s32.totalorder %s287, %s301
      %p303 = scmp.eq.s32.totalorder %s34, 0
      %p304 = por %p302, %p303
      %s306 = sadd.s32 %s305, 1
      %p309 = scmp.eq.s32.totalorder %s28, 3
      %p310 = scmp.ne.s32.totalorder %s305, %s307
      %p311 = scmp.eq.s32.totalorder %s28, 0
      %p312 = por %p310, %p311
      %p313 = scmp.ne.s32.totalorder %s305, %s307
      %p314 = scmp.eq.s32.totalorder %s33, 3
      %p315 = por %p313, %p314
      %p316 = scmp.ne.s32.totalorder %s307, %s308
      %p317 = scmp.eq.s32.totalorder %s33, 0
      %p318 = por %p316, %p317
      %p319 = scmp.ne.s32.totalorder %s307, %s308
      %p320 = scmp.eq.s32.totalorder %s34, 3
      %p321 = por %p319, %p320
      %p323 = scmp.ne.s32.totalorder %s308, %s322
      %p324 = scmp.eq.s32.totalorder %s34, 0
      %p325 = por %p323, %p324
      %s326 = ssub.s32 %s35, %s47
      %p327 = scmp.eq.s32.totalorder %s326, 0
      %s329 = sadd.s32 %s328, 1
      %s330 = scalar_select %p327, %s328, %s329
      %p333 = pneg %p327
      %p334 = scmp.eq.s32.totalorder %s28, 3
      %p335 = por %p333, %p334
      %p336 = scmp.ne.s32.totalorder %s328, %s331
      %p337 = scmp.eq.s32.totalorder %s28, 0
      %p338 = por %p336, %p337
      %p339 = scmp.ne.s32.totalorder %s328, %s331
      %p340 = scmp.eq.s32.totalorder %s33, 3
      %p341 = por %p339, %p340
      %p342 = scmp.ne.s32.totalorder %s331, %s332
      %p343 = scmp.eq.s32.totalorder %s33, 0
      %p344 = por %p342, %p343
      %p345 = scmp.ne.s32.totalorder %s331, %s332
      %p346 = scmp.eq.s32.totalorder %s34, 3
      %p347 = por %p345, %p346
      %p349 = scmp.ne.s32.totalorder %s332, %s348
      %p350 = scmp.eq.s32.totalorder %s34, 0
      %p351 = por %p349, %p350
      %p352 = scmp.le.s32.totalorder 1, %s28
      %p353 = scmp.lt.s32.totalorder %s28, 5
      %p354 = pnand %p352, %p353
      %p355 = pneg %p354
      // Predicated region
      $region9: #{tpu_custom_call.1} parent=5 // pred_check
        _
      $region10: #{tpu_custom_call.1} parent=5 // pred_check_branch
        %357 = sbr.rel (%p354) target = $region12
      $region11: #{tpu_custom_call.1} parent=5 // pred_region
        %s358 = ssub.s32 %s28, 1
        // Predicated region
        $region13: #{tpu_custom_call.1} parent=11 // pred_check
          %p359 = pneg %p87
        $region14: #{tpu_custom_call.1} parent=11 // pred_check_branch
          %361 = sbr.rel (%p359) target = $region16
        $region15: #{tpu_custom_call.1} parent=11 // pred_region
          %s363 = ssub.s32 32, 32
          %364 = vsyncadd [#allocation7], %s363
          %s365 = sshll.u32 [#allocation6], 4
          %s366 = int_to_ptr.vmem [resolvable:$true] %s365
          %371 = dma.hbm_to_vmem [thread:$0]  %s1, 32, %s366, [#allocation7], 16, 16, 1
        $region16: #{tpu_custom_call.1} parent=11 // pred_fallthru
          _
        // Predicated region
        $region17: #{tpu_custom_call.1} parent=11 // pred_check
          %p372 = pneg %p108
        $region18: #{tpu_custom_call.1} parent=11 // pred_check_branch
          %374 = sbr.rel (%p372) target = $region20
        $region19: #{tpu_custom_call.1} parent=11 // pred_region
          %s376 = ssub.s32 32, 32
          %377 = vsyncadd [#allocation7], %s376
          %s378 = sshll.u32 [#allocation8], 4
          %s379 = int_to_ptr.vmem [resolvable:$true] %s378
          %384 = dma.hbm_to_vmem [thread:$0]  %s2, 32, %s379, [#allocation7], 16, 16, 1
        $region20: #{tpu_custom_call.1} parent=11 // pred_fallthru
          _
        // Predicated region
        $region21: #{tpu_custom_call.1} parent=11 // pred_check
          %p385 = pneg %p129
        $region22: #{tpu_custom_call.1} parent=11 // pred_check_branch
          %387 = sbr.rel (%p385) target = $region24
        $region23: #{tpu_custom_call.1} parent=11 // pred_region
          %s389 = ssub.s32 6144, 6144
          %390 = vsyncadd [#allocation10], %s389
          %s391 = sshll.u32 [#allocation9], 4
          %s392 = int_to_ptr.vmem [resolvable:$true] %s391
          %397 = dma.hbm_to_vmem [thread:$0]  %s3, 6144, %s392, [#allocation10], 192, 192, 12
        $region24: #{tpu_custom_call.1} parent=11 // pred_fallthru
          _
        // Predicated region
        $region25: #{tpu_custom_call.1} parent=11 // pred_check
          %p398 = pneg %p150
        $region26: #{tpu_custom_call.1} parent=11 // pred_check_branch
          %400 = sbr.rel (%p398) target = $region28
        $region27: #{tpu_custom_call.1} parent=11 // pred_region
          _
        $region28: #{tpu_custom_call.1} parent=11 // pred_fallthru
          _
        // Predicated region
        $region29: #{tpu_custom_call.1} parent=11 // pred_check
          %p401 = pneg %p171
        $region30: #{tpu_custom_call.1} parent=11 // pred_check_branch
          %403 = sbr.rel (%p401) target = $region32
        $region31: #{tpu_custom_call.1} parent=11 // pred_region
          %s405 = ssub.s32 2048, 2048
          %406 = vsyncadd [#allocation10], %s405
          %s407 = sshll.u32 [#allocation11], 4
          %s408 = int_to_ptr.vmem [resolvable:$true] %s407
          %413 = dma.hbm_to_vmem [thread:$0]  %s5, 2048, %s408, [#allocation10], 64, 64, 4
        $region32: #{tpu_custom_call.1} parent=11 // pred_fallthru
          _
        // Predicated region
        $region33: #{tpu_custom_call.1} parent=11 // pred_check
          %p414 = pneg %p192
        $region34: #{tpu_custom_call.1} parent=11 // pred_check_branch
          %416 = sbr.rel (%p414) target = $region36
        $region35: #{tpu_custom_call.1} parent=11 // pred_region
          _
        $region36: #{tpu_custom_call.1} parent=11 // pred_fallthru
          _
        // Predicated region
        $region37: #{tpu_custom_call.1} parent=11 // pred_check
          %p417 = pneg %p213
        $region38: #{tpu_custom_call.1} parent=11 // pred_check_branch
          %419 = sbr.rel (%p417) target = $region40
        $region39: #{tpu_custom_call.1} parent=11 // pred_region
          _
        $region40: #{tpu_custom_call.1} parent=11 // pred_fallthru
          _
        // Predicated region
        $region41: #{tpu_custom_call.1} parent=11 // pred_check
          %p420 = pneg %p234
        $region42: #{tpu_custom_call.1} parent=11 // pred_check_branch
          %422 = sbr.rel (%p420) target = $region44
        $region43: #{tpu_custom_call.1} parent=11 // pred_region
          _
        $region44: #{tpu_custom_call.1} parent=11 // pred_fallthru
          _
        // Predicated region
        $region45: #{tpu_custom_call.1} parent=11 // pred_check
          %p423 = pneg %p255
        $region46: #{tpu_custom_call.1} parent=11 // pred_check_branch
          %425 = sbr.rel (%p423) target = $region48
        $region47: #{tpu_custom_call.1} parent=11 // pred_region
          %s427 = ssub.s32 8192, 8192
          %428 = vsyncadd [#allocation13], %s427
          %s429 = sshll.u32 [#allocation12], 4
          %s430 = int_to_ptr.vmem [resolvable:$true] %s429
          %435 = dma.hbm_to_vmem [thread:$0]  %s9, 8192, %s430, [#allocation13], 256, 256, 16
        $region48: #{tpu_custom_call.1} parent=11 // pred_fallthru
          _
        // Predicated region
        $region49: #{tpu_custom_call.1} parent=11 // pred_check
          %p436 = pneg %p276
        $region50: #{tpu_custom_call.1} parent=11 // pred_check_branch
          %438 = sbr.rel (%p436) target = $region52
        $region51: #{tpu_custom_call.1} parent=11 // pred_region
          _
        $region52: #{tpu_custom_call.1} parent=11 // pred_fallthru
          _
        // Predicated region
        $region53: #{tpu_custom_call.1} parent=11 // pred_check
          %p439 = pneg %p297
        $region54: #{tpu_custom_call.1} parent=11 // pred_check_branch
          %441 = sbr.rel (%p439) target = $region56
        $region55: #{tpu_custom_call.1} parent=11 // pred_region
          %s443 = ssub.s32 8192, 8192
          %444 = vsyncadd [#allocation13], %s443
          %s445 = sshll.u32 [#allocation14], 4
          %s446 = int_to_ptr.vmem [resolvable:$true] %s445
          %451 = dma.hbm_to_vmem [thread:$0]  %s11, 8192, %s446, [#allocation13], 64, 64, 4
        $region56: #{tpu_custom_call.1} parent=11 // pred_fallthru
          _
        // Predicated region
        $region57: #{tpu_custom_call.1} parent=11 // pred_check
          %p452 = pneg %p318
        $region58: #{tpu_custom_call.1} parent=11 // pred_check_branch
          %454 = sbr.rel (%p452) target = $region60
        $region59: #{tpu_custom_call.1} parent=11 // pred_region
          _
        $region60: #{tpu_custom_call.1} parent=11 // pred_fallthru
          _
      $region12: #{tpu_custom_call.1} parent=5 // pred_fallthru
        _
      %p455 = scmp.lt.s32.totalorder %s28, 4
      // Predicated region
      $region61: #{tpu_custom_call.1} parent=5 // pred_check
        %p456 = pneg %p455
      $region62: #{tpu_custom_call.1} parent=5 // pred_check_branch
        %458 = sbr.rel (%p456) target = $region64
      $region63: #{tpu_custom_call.1} parent=5 // pred_region
        // Predicated region
        $region65: #{tpu_custom_call.1} parent=63 // pred_check
          %p459 = pneg %p60
        $region66: #{tpu_custom_call.1} parent=63 // pred_check_branch
          %461 = sbr.rel (%p459) target = $region68
        $region67: #{tpu_custom_call.1} parent=63 // pred_region
          %s462 = sand.u32 %s50, 1
          %s463 = scalar_lea.sflag [#allocation4], %s462
          %s464 = sand.u32 %s50, 1
          %s465 = smul.addr %s464, 64
          %s466 = scalar_lea.vmem [#allocation3], %s465
          %s467 = smul.u32 4, %s35
          %s469 = ssub.s32 1024, 1024
          %470 = vsyncadd %s463, %s469
          %s471 = smul.addr %s467, 2
          %s472 = smul.addr %s471, 128
          %s473 = scalar_lea.hbm %s0, %s472
          %s474 = sshll.u32 %s466, 4
          %s475 = int_to_ptr.vmem [resolvable:$true] %s474
          %480 = dma.hbm_to_vmem [thread:$0]  %s473, 1024, %s475, %s463, 128, 128, 8
        $region68: #{tpu_custom_call.1} parent=63 // pred_fallthru
          _
      $region64: #{tpu_custom_call.1} parent=5 // pred_fallthru
        _
      %p481 = scmp.le.s32.totalorder 1, %s28
      %p482 = scmp.lt.s32.totalorder %s28, 5
      %p483 = pnand %p481, %p482
      %p484 = pneg %p483
      // Predicated region
      $region69: #{tpu_custom_call.1} parent=5 // pred_check
        _
      $region70: #{tpu_custom_call.1} parent=5 // pred_check_branch
        %486 = sbr.rel (%p483) target = $region72
      $region71: #{tpu_custom_call.1} parent=5 // pred_region
        %s487 = ssub.s32 %s28, 1
        %s488 = sand.u32 %s53, 1
        %s489 = scalar_lea.sflag [#allocation4], %s488
        %s490 = sand.u32 %s53, 1
        %s491 = smul.addr %s490, 64
        %s492 = scalar_lea.vmem [#allocation3], %s491
        // Predicated region
        $region73: #{tpu_custom_call.1} parent=71 // pred_check
          %p493 = pneg %p66
        $region74: #{tpu_custom_call.1} parent=71 // pred_check_branch
          %495 = sbr.rel (%p493) target = $region76
        $region75: #{tpu_custom_call.1} parent=71 // pred_region
          %496 = dma.done %s489, 1024
        $region76: #{tpu_custom_call.1} parent=71 // pred_fallthru
          _
        // Predicated region
        $region77: #{tpu_custom_call.1} parent=71 // pred_check
          %p497 = pneg %p87
        $region78: #{tpu_custom_call.1} parent=71 // pred_check_branch
          %499 = sbr.rel (%p497) target = $region80
        $region79: #{tpu_custom_call.1} parent=71 // pred_region
          %500 = dma.done [#allocation7], 32
        $region80: #{tpu_custom_call.1} parent=71 // pred_fallthru
          _
        // Predicated region
        $region81: #{tpu_custom_call.1} parent=71 // pred_check
          %p501 = pneg %p108
        $region82: #{tpu_custom_call.1} parent=71 // pred_check_branch
          %503 = sbr.rel (%p501) target = $region84
        $region83: #{tpu_custom_call.1} parent=71 // pred_region
          %504 = dma.done [#allocation7], 32
        $region84: #{tpu_custom_call.1} parent=71 // pred_fallthru
          _
        // Predicated region
        $region85: #{tpu_custom_call.1} parent=71 // pred_check
          %p505 = pneg %p129
        $region86: #{tpu_custom_call.1} parent=71 // pred_check_branch
          %507 = sbr.rel (%p505) target = $region88
        $region87: #{tpu_custom_call.1} parent=71 // pred_region
          %508 = dma.done [#allocation10], 6144
        $region88: #{tpu_custom_call.1} parent=71 // pred_fallthru
          _
        // Predicated region
        $region89: #{tpu_custom_call.1} parent=71 // pred_check
          %p509 = pneg %p171
        $region90: #{tpu_custom_call.1} parent=71 // pred_check_branch
          %511 = sbr.rel (%p509) target = $region92
        $region91: #{tpu_custom_call.1} parent=71 // pred_region
          %512 = dma.done [#allocation10], 2048
        $region92: #{tpu_custom_call.1} parent=71 // pred_fallthru
          _
        // Predicated region
        $region93: #{tpu_custom_call.1} parent=71 // pred_check
          %p513 = pneg %p255
        $region94: #{tpu_custom_call.1} parent=71 // pred_check_branch
          %515 = sbr.rel (%p513) target = $region96
        $region95: #{tpu_custom_call.1} parent=71 // pred_region
          %516 = dma.done [#allocation13], 8192
        $region96: #{tpu_custom_call.1} parent=71 // pred_fallthru
          _
        // Predicated region
        $region97: #{tpu_custom_call.1} parent=71 // pred_check
          %p517 = pneg %p297
        $region98: #{tpu_custom_call.1} parent=71 // pred_check_branch
          %519 = sbr.rel (%p517) target = $region100
        $region99: #{tpu_custom_call.1} parent=71 // pred_region
          %520 = dma.done [#allocation13], 8192
        $region100: #{tpu_custom_call.1} parent=71 // pred_fallthru
          _
        %s521 = sand.u32 %s53, 1
        %s522 = scalar_lea.sflag [#allocation4], %s521
        %s523 = sand.u32 %s53, 1
        %s524 = smul.addr %s523, 64
        %s525 = scalar_lea.vmem [#allocation3], %s524
        %p526 = pneg %p66
        %p527 = pneg %p63
        %p528 = pneg %p87
        %p529 = pneg %p84
        %p530 = pneg %p108
        %p531 = pneg %p105
        %p532 = pneg %p129
        %p533 = pneg %p126
        %p534 = pneg %p150
        %p535 = pneg %p147
        %p536 = pneg %p171
        %p537 = pneg %p168
        %p538 = pneg %p192
        %p539 = pneg %p189
        %p540 = pneg %p213
        %p541 = pneg %p210
        %p542 = pneg %p234
        %p543 = pneg %p231
        %p544 = pneg %p255
        %p545 = pneg %p252
        %p546 = pneg %p276
        %p547 = pneg %p273
        %p548 = pneg %p297
        %p549 = pneg %p294
        %p550 = pneg %p318
        %p551 = pneg %p315
        %p552 = pneg %p344
        %p553 = pneg %p341
        %s554 = sand.u32 %s331, 1
        %s555 = scalar_lea.sflag [#allocation5], %s554
        %s556 = sand.u32 %s331, 1
        %s557 = smul.addr %s556, 64
        %s558 = scalar_lea.vmem [#allocation15], %s557
        %s559 = smul.u32 4, %s37
        %s560 = smul.u32 4, %s37
        %p562 = scmp.eq.s32.totalorder %s38, 0
        // Predicated region
        $region101: #{tpu_custom_call.1} parent=71 // pred_check
          %p563 = pneg %p562
        $region102: #{tpu_custom_call.1} parent=71 // pred_check_branch
          %565 = sbr.rel (%p563) target = $region104
        $region103: #{tpu_custom_call.1} parent=71 // pred_region
          %v566 = vld [vmem:[%s492] sm:$0xff]
          %v567 = vld [vmem:[%s492 + $0x8] sm:$0xff]
          %v568 = vld [vmem:[%s492 + $0x10] sm:$0xff]
          %v569 = vld [vmem:[%s492 + $0x18] sm:$0xff]
          %v570 = vld [vmem:[%s492 + $0x20] sm:$0xff]
          %v571 = vld [vmem:[%s492 + $0x28] sm:$0xff]
          %v572 = vld [vmem:[%s492 + $0x30] sm:$0xff]
          %v573 = vld [vmem:[%s492 + $0x38] sm:$0xff]
          %574 = vst [vmem:[#allocation2] sm:$0xff] %v566
          %575 = vst [vmem:[#allocation2 + $0x8] sm:$0xff] %v567
          %576 = vst [vmem:[#allocation2 + $0x10] sm:$0xff] %v568
          %577 = vst [vmem:[#allocation2 + $0x18] sm:$0xff] %v569
          %578 = vst [vmem:[#allocation2 + $0x20] sm:$0xff] %v570
          %579 = vst [vmem:[#allocation2 + $0x28] sm:$0xff] %v571
          %580 = vst [vmem:[#allocation2 + $0x30] sm:$0xff] %v572
          %581 = vst [vmem:[#allocation2 + $0x38] sm:$0xff] %v573
        $region104: #{tpu_custom_call.1} parent=71 // pred_fallthru
          _
        %v582 = vld [vmem:[#allocation2] sm:$0xff]
        %v583 = vld [vmem:[#allocation2 + $0x8] sm:$0xff]
        %v584 = vld [vmem:[#allocation2 + $0x10] sm:$0xff]
        %v585 = vld [vmem:[#allocation2 + $0x18] sm:$0xff]
        %v586 = vld [vmem:[#allocation2 + $0x20] sm:$0xff]
        %v587 = vld [vmem:[#allocation2 + $0x28] sm:$0xff]
        %v588 = vld [vmem:[#allocation2 + $0x30] sm:$0xff]
        %v589 = vld [vmem:[#allocation2 + $0x38] sm:$0xff]
        %s590 = scalar_lea.vmem [#allocation6], %s38
        %v591 = vld [vmem:[%s590] sm:$0x1]
        %s592 = scalar_lea.vmem [#allocation8], %s38
        %v593 = vld [vmem:[%s592] sm:$0x1]
        %594 = vadd.xlane.f32.xlu0 %v582
        %v595 = vpop.xlane.xlu0 %594
        %596 = vadd.xlane.f32.xlu0 %v583
        %v597 = vpop.xlane.xlu0 %596
        %598 = vadd.xlane.f32.xlu0 %v584
        %v599 = vpop.xlane.xlu0 %598
        %600 = vadd.xlane.f32.xlu0 %v585
        %v601 = vpop.xlane.xlu0 %600
        %602 = vadd.xlane.f32.xlu0 %v586
        %v603 = vpop.xlane.xlu0 %602
        %604 = vadd.xlane.f32.xlu0 %v587
        %v605 = vpop.xlane.xlu0 %604
        %606 = vadd.xlane.f32.xlu0 %v588
        %v607 = vpop.xlane.xlu0 %606
        %608 = vadd.xlane.f32.xlu0 %v589
        %v609 = vpop.xlane.xlu0 %608
        %v610 = vrcp.pop 128.0
        %v611 = vmul.f32 %v595, %v610
        %v612 = vmul.f32 %v597, %v610
        %v613 = vmul.f32 %v599, %v610
        %v614 = vmul.f32 %v601, %v610
        %v615 = vmul.f32 %v603, %v610
        %v616 = vmul.f32 %v605, %v610
        %v617 = vmul.f32 %v607, %v610
        %v618 = vmul.f32 %v609, %v610
        %v619 = vsub.f32 %v582, %v611
        %v620 = vsub.f32 %v583, %v612
        %v621 = vsub.f32 %v584, %v613
        %v622 = vsub.f32 %v585, %v614
        %v623 = vsub.f32 %v586, %v615
        %v624 = vsub.f32 %v587, %v616
        %v625 = vsub.f32 %v588, %v617
        %v626 = vsub.f32 %v589, %v618
        %v627 = vmul.f32 %v619, %v619
        %v628 = vmul.f32 %v620, %v620
        %v629 = vmul.f32 %v621, %v621
        %v630 = vmul.f32 %v622, %v622
        %v631 = vmul.f32 %v623, %v623
        %v632 = vmul.f32 %v624, %v624
        %v633 = vmul.f32 %v625, %v625
        %v634 = vmul.f32 %v626, %v626
        %635 = vadd.xlane.f32.xlu0 %v627
        %v636 = vpop.xlane.xlu0 %635
        %637 = vadd.xlane.f32.xlu0 %v628
        %v638 = vpop.xlane.xlu0 %637
        %639 = vadd.xlane.f32.xlu0 %v629
        %v640 = vpop.xlane.xlu0 %639
        %641 = vadd.xlane.f32.xlu0 %v630
        %v642 = vpop.xlane.xlu0 %641
        %643 = vadd.xlane.f32.xlu0 %v631
        %v644 = vpop.xlane.xlu0 %643
        %645 = vadd.xlane.f32.xlu0 %v632
        %v646 = vpop.xlane.xlu0 %645
        %647 = vadd.xlane.f32.xlu0 %v633
        %v648 = vpop.xlane.xlu0 %647
        %649 = vadd.xlane.f32.xlu0 %v634
        %v650 = vpop.xlane.xlu0 %649
        %v651 = vmul.f32 %v636, %v610
        %v652 = vmul.f32 %v638, %v610
        %v653 = vmul.f32 %v640, %v610
        %v654 = vmul.f32 %v642, %v610
        %v655 = vmul.f32 %v644, %v610
        %v656 = vmul.f32 %v646, %v610
        %v657 = vmul.f32 %v648, %v610
        %v658 = vmul.f32 %v650, %v610
        %v659 = vadd.f32 %v651, 1e-05
        %v660 = vadd.f32 %v652, 1e-05
        %v661 = vadd.f32 %v653, 1e-05
        %v662 = vadd.f32 %v654, 1e-05
        %v663 = vadd.f32 %v655, 1e-05
        %v664 = vadd.f32 %v656, 1e-05
        %v665 = vadd.f32 %v657, 1e-05
        %v666 = vadd.f32 %v658, 1e-05
        %v667 = vrsqrt.pop %v659
        %v668 = vrsqrt.pop %v660
        %v669 = vrsqrt.pop %v661
        %v670 = vrsqrt.pop %v662
        %v671 = vrsqrt.pop %v663
        %v672 = vrsqrt.pop %v664
        %v673 = vrsqrt.pop %v665
        %v674 = vrsqrt.pop %v666
        %v675 = vmul.f32 %v619, %v667
        %v676 = vmul.f32 %v620, %v668
        %v677 = vmul.f32 %v621, %v669
        %v678 = vmul.f32 %v622, %v670
        %v679 = vmul.f32 %v623, %v671
        %v680 = vmul.f32 %v624, %v672
        %v681 = vmul.f32 %v625, %v673
        %v682 = vmul.f32 %v626, %v674
        %v684 = vlaneseq
        %v685 = vshrl.u32 %v684, 7
        %v686 = vsub.s32 0, %v685
        %v687 = vrot.slane %v591, %v686
        %v689 = vmul.f32 %v675, %v687
        %v690 = vmul.f32 %v676, %v687
        %v691 = vmul.f32 %v677, %v687
        %v692 = vmul.f32 %v678, %v687
        %v693 = vmul.f32 %v679, %v687
        %v694 = vmul.f32 %v680, %v687
        %v695 = vmul.f32 %v681, %v687
        %v696 = vmul.f32 %v682, %v687
        %v698 = vlaneseq
        %v699 = vshrl.u32 %v698, 7
        %v700 = vsub.s32 0, %v699
        %v701 = vrot.slane %v593, %v700
        %v703 = vadd.f32 %v689, %v701
        %v704 = vadd.f32 %v690, %v701
        %v705 = vadd.f32 %v691, %v701
        %v706 = vadd.f32 %v692, %v701
        %v707 = vadd.f32 %v693, %v701
        %v708 = vadd.f32 %v694, %v701
        %v709 = vadd.f32 %v695, %v701
        %v710 = vadd.f32 %v696, %v701
        %v711 = vpack.c.bf16 %v704, %v703
        %v712 = vpack.c.bf16 %v706, %v705
        %v713 = vpack.c.bf16 %v708, %v707
        %v714 = vpack.c.bf16 %v710, %v709
        %s715 = smul.u32 %s38, 48
        %s716 = smul.addr %s715, 4
        %s717 = scalar_lea.vmem [#allocation9], %s716
        %v718 = vld [vmem:[%s717] sm:$0xff]
        %v719 = vld [vmem:[%s717 + $0x8] sm:$0xf]
        %v720 = vld [vmem:[%s717 + $0xc] sm:$0xff]
        %v721 = vld [vmem:[%s717 + $0x14] sm:$0xf]
        %v722 = vld [vmem:[%s717 + $0x18] sm:$0xff]
        %v723 = vld [vmem:[%s717 + $0x20] sm:$0xf]
        %v724 = vld [vmem:[%s717 + $0x24] sm:$0xff]
        %v725 = vld [vmem:[%s717 + $0x2c] sm:$0xf]
        %v726 = vld [vmem:[%s717 + $0x30] sm:$0xff]
        %v727 = vld [vmem:[%s717 + $0x38] sm:$0xf]
        %v728 = vld [vmem:[%s717 + $0x3c] sm:$0xff]
        %v729 = vld [vmem:[%s717 + $0x44] sm:$0xf]
        %v730 = vld [vmem:[%s717 + $0x48] sm:$0xff]
        %v731 = vld [vmem:[%s717 + $0x50] sm:$0xf]
        %v732 = vld [vmem:[%s717 + $0x54] sm:$0xff]
        %v733 = vld [vmem:[%s717 + $0x5c] sm:$0xf]
        %v734 = vld [vmem:[%s717 + $0x60] sm:$0xff]
        %v735 = vld [vmem:[%s717 + $0x68] sm:$0xf]
        %v736 = vld [vmem:[%s717 + $0x6c] sm:$0xff]
        %v737 = vld [vmem:[%s717 + $0x74] sm:$0xf]
        %v738 = vld [vmem:[%s717 + $0x78] sm:$0xff]
        %v739 = vld [vmem:[%s717 + $0x80] sm:$0xf]
        %v740 = vld [vmem:[%s717 + $0x84] sm:$0xff]
        %v741 = vld [vmem:[%s717 + $0x8c] sm:$0xf]
        %v742 = vld [vmem:[%s717 + $0x90] sm:$0xff]
        %v743 = vld [vmem:[%s717 + $0x98] sm:$0xf]
        %v744 = vld [vmem:[%s717 + $0x9c] sm:$0xff]
        %v745 = vld [vmem:[%s717 + $0xa4] sm:$0xf]
        %v746 = vld [vmem:[%s717 + $0xa8] sm:$0xff]
        %v747 = vld [vmem:[%s717 + $0xb0] sm:$0xf]
        %v748 = vld [vmem:[%s717 + $0xb4] sm:$0xff]
        %v749 = vld [vmem:[%s717 + $0xbc] sm:$0xf]
        %s750 = smul.u32 %s38, 3
        %s751 = scalar_lea.vmem %s4, %s750
        %v752 = vld [vmem:[%s751] sm:$0x7]
        %v754 = vlaneseq
        %v755 = vshrl.u32 %v754, 7
        %v756 = vsub.s32 0, %v755
        %v757 = vrot.slane %v752, %v756
        %v758 = vlaneseq
        %v759 = vshrl.u32 %v758, 7
        %v760 = vsub.s32 1, %v759
        %v761 = vrot.slane %v752, %v760
        %v762 = vlaneseq
        %v763 = vshrl.u32 %v762, 7
        %v764 = vsub.s32 2, %v763
        %v765 = vrot.slane %v752, %v764
        %v801 = vunpack.c.l.b16 %v718
        %v802 = vunpack.c.h.b16 %v718
        %v803 = vunpack.c.l.b16 %v719
        %v804 = vunpack.c.l.b16 %v720
        %v805 = vunpack.c.h.b16 %v720
        %v806 = vunpack.c.l.b16 %v721
        %v807 = vunpack.c.l.b16 %v722
        %v808 = vunpack.c.h.b16 %v722
        %v809 = vunpack.c.l.b16 %v723
        %v810 = vunpack.c.l.b16 %v724
        %v811 = vunpack.c.h.b16 %v724
        %v812 = vunpack.c.l.b16 %v725
        %v813 = vunpack.c.l.b16 %v726
        %v814 = vunpack.c.h.b16 %v726
        %v815 = vunpack.c.l.b16 %v727
        %v816 = vunpack.c.l.b16 %v728
        %v817 = vunpack.c.h.b16 %v728
        %v818 = vunpack.c.l.b16 %v729
        %v819 = vunpack.c.l.b16 %v730
        %v820 = vunpack.c.h.b16 %v730
        %v821 = vunpack.c.l.b16 %v731
        %v822 = vunpack.c.l.b16 %v732
        %v823 = vunpack.c.h.b16 %v732
        %v824 = vunpack.c.l.b16 %v733
        %v825 = vunpack.c.l.b16 %v734
        %v826 = vunpack.c.h.b16 %v734
        %v827 = vunpack.c.l.b16 %v735
        %v828 = vunpack.c.l.b16 %v736
        %v829 = vunpack.c.h.b16 %v736
        %v830 = vunpack.c.l.b16 %v737
        %v831 = vunpack.c.l.b16 %v738
        %v832 = vunpack.c.h.b16 %v738
        %v833 = vunpack.c.l.b16 %v739
        %v834 = vunpack.c.l.b16 %v740
        %v835 = vunpack.c.h.b16 %v740
        %v836 = vunpack.c.l.b16 %v741
        %v837 = vunpack.c.l.b16 %v742
        %v838 = vunpack.c.h.b16 %v742
        %v839 = vunpack.c.l.b16 %v743
        %v840 = vunpack.c.l.b16 %v744
        %v841 = vunpack.c.h.b16 %v744
        %v842 = vunpack.c.l.b16 %v745
        %v843 = vunpack.c.l.b16 %v746
        %v844 = vunpack.c.h.b16 %v746
        %v845 = vunpack.c.l.b16 %v747
        %v846 = vunpack.c.l.b16 %v748
        %v847 = vunpack.c.h.b16 %v748
        %v848 = vunpack.c.l.b16 %v749
        %v849 = vpack.c.b16 %v804, %v801
        %v850 = vpack.c.b16 %v805, %v802
        %v851 = vpack.c.b16 %v806, %v803
        %v852 = vpack.c.b16 %v810, %v807
        %v853 = vpack.c.b16 %v811, %v808
        %v854 = vpack.c.b16 %v812, %v809
        %v855 = vpack.c.b16 %v816, %v813
        %v856 = vpack.c.b16 %v817, %v814
        %v857 = vpack.c.b16 %v818, %v815
        %v858 = vpack.c.b16 %v822, %v819
        %v859 = vpack.c.b16 %v823, %v820
        %v860 = vpack.c.b16 %v824, %v821
        %v861 = vpack.c.b16 %v828, %v825
        %v862 = vpack.c.b16 %v829, %v826
        %v863 = vpack.c.b16 %v830, %v827
        %v864 = vpack.c.b16 %v834, %v831
        %v865 = vpack.c.b16 %v835, %v832
        %v866 = vpack.c.b16 %v836, %v833
        %v867 = vpack.c.b16 %v840, %v837
        %v868 = vpack.c.b16 %v841, %v838
        %v869 = vpack.c.b16 %v842, %v839
        %v870 = vpack.c.b16 %v846, %v843
        %v871 = vpack.c.b16 %v847, %v844
        %v872 = vpack.c.b16 %v848, %v845
        %897 = vmatprep.subr.bf16.mxu0 %v850
        %898 = vmatpush1.bf16.msra.mxu0 %v849
        %899 = vmatprep.subr.bf16.mxu0 %v853
        %900 = vmatpush1.bf16.msra.mxu0 %v852
        %901 = vmatprep.subr.bf16.mxu0 %v856
        %902 = vmatpush1.bf16.msra.mxu0 %v855
        %903 = vmatprep.subr.bf16.mxu0 %v859
        %904 = vmatpush1.bf16.msra.mxu0 %v858
        %905 = vmatprep.subr.bf16.mxu0 %v862
        %906 = vmatpush1.bf16.msra.mxu0 %v861
        %907 = vmatprep.subr.bf16.mxu0 %v865
        %908 = vmatpush1.bf16.msra.mxu0 %v864
        %909 = vmatprep.subr.bf16.mxu0 %v868
        %910 = vmatpush1.bf16.msra.mxu0 %v867
        %911 = vmatprep.subr.bf16.mxu0 %v871
        %912 = vmatpush1.bf16.msra.mxu0 %v870
        %913 = vmatprep.subr.bf16.mxu0 0
        %914 = vmatpush1.bf16.msra.mxu0 0
        %915 = vmatprep.subr.bf16.mxu0 0
        %916 = vmatpush1.bf16.msra.mxu0 0
        %917 = vmatprep.subr.bf16.mxu0 0
        %918 = vmatpush1.bf16.msra.mxu0 0
        %919 = vmatprep.subr.bf16.mxu0 0
        %920 = vmatpush1.bf16.msra.mxu0 0
        %921 = vmatprep.subr.bf16.mxu0 0
        %922 = vmatpush1.bf16.msra.mxu0 0
        %923 = vmatprep.subr.bf16.mxu0 0
        %924 = vmatpush1.bf16.msra.mxu0 0
        %925 = vmatprep.subr.bf16.mxu0 0
        %926 = vmatpush1.bf16.msra.mxu0 0
        %927 = vmatprep.subr.bf16.mxu0 0
        %928 = vmatpush1.bf16.msra.mxu0 0
        %929 = vmatprep.mubr.bf16.mxu0 0
        %930 = vmatmul.mubr.bf16.gmra.mrb[0].mxu0 %v711
        %v931 = vpop.f32.mrb[0].mxu0
        %v932 = vadd.f32 %v757, %v931
        %v933 = vpop.f32.mrb[0].mxu0
        %v934 = vadd.f32 %v761, %v933
        %v935 = vpop.f32.mrb[0].mxu0
        %v936 = vadd.f32 %v757, %v935
        %v937 = vpop.f32.mrb[0].mxu0
        %v938 = vadd.f32 %v761, %v937
        %939 = vmatprep.mubr.bf16.mxu0 0
        %940 = vmatmul.mubr.bf16.gmra.mrb[0].mxu0 %v712
        %v941 = vpop.f32.mrb[0].mxu0
        %v942 = vadd.f32 %v757, %v941
        %v943 = vpop.f32.mrb[0].mxu0
        %v944 = vadd.f32 %v761, %v943
        %v945 = vpop.f32.mrb[0].mxu0
        %v946 = vadd.f32 %v757, %v945
        %v947 = vpop.f32.mrb[0].mxu0
        %v948 = vadd.f32 %v761, %v947
        %949 = vmatprep.mubr.bf16.mxu0 0
        %950 = vmatmul.mubr.bf16.gmra.mrb[0].mxu0 %v713
        %v951 = vpop.f32.mrb[0].mxu0
        %v952 = vadd.f32 %v757, %v951
        %v953 = vpop.f32.mrb[0].mxu0
        %v954 = vadd.f32 %v761, %v953
        %v955 = vpop.f32.mrb[0].mxu0
        %v956 = vadd.f32 %v757, %v955
        %v957 = vpop.f32.mrb[0].mxu0
        %v958 = vadd.f32 %v761, %v957
        %959 = vmatprep.mubr.bf16.mxu0 0
        %960 = vmatmul.mubr.bf16.gmra.mrb[0].mxu0 %v714
        %v961 = vpop.f32.mrb[0].mxu0
        %v962 = vadd.f32 %v757, %v961
        %v963 = vpop.f32.mrb[0].mxu0
        %v964 = vadd.f32 %v761, %v963
        %v965 = vpop.f32.mrb[0].mxu0
        %v966 = vadd.f32 %v757, %v965
        %v967 = vpop.f32.mrb[0].mxu0
        %v968 = vadd.f32 %v761, %v967
        %969 = vdwg.mxu0
        %970 = vmatprep.subr.bf16.mxu0 0
        %971 = vmatpush1.bf16.msra.mxu0 %v851
        %972 = vmatprep.subr.bf16.mxu0 0
        %973 = vmatpush1.bf16.msra.mxu0 %v854
        %974 = vmatprep.subr.bf16.mxu0 0
        %975 = vmatpush1.bf16.msra.mxu0 %v857
        %976 = vmatprep.subr.bf16.mxu0 0
        %977 = vmatpush1.bf16.msra.mxu0 %v860
        %978 = vmatprep.subr.bf16.mxu0 0
        %979 = vmatpush1.bf16.msra.mxu0 %v863
        %980 = vmatprep.subr.bf16.mxu0 0
        %981 = vmatpush1.bf16.msra.mxu0 %v866
        %982 = vmatprep.subr.bf16.mxu0 0
        %983 = vmatpush1.bf16.msra.mxu0 %v869
        %984 = vmatprep.subr.bf16.mxu0 0
        %985 = vmatpush1.bf16.msra.mxu0 %v872
        %986 = vmatprep.subr.bf16.mxu0 0
        %987 = vmatpush1.bf16.msra.mxu0 0
        %988 = vmatprep.subr.bf16.mxu0 0
        %989 = vmatpush1.bf16.msra.mxu0 0
        %990 = vmatprep.subr.bf16.mxu0 0
        %991 = vmatpush1.bf16.msra.mxu0 0
        %992 = vmatprep.subr.bf16.mxu0 0
        %993 = vmatpush1.bf16.msra.mxu0 0
        %994 = vmatprep.subr.bf16.mxu0 0
        %995 = vmatpush1.bf16.msra.mxu0 0
        %996 = vmatprep.subr.bf16.mxu0 0
        %997 = vmatpush1.bf16.msra.mxu0 0
        %998 = vmatprep.subr.bf16.mxu0 0
        %999 = vmatpush1.bf16.msra.mxu0 0
        %1000 = vmatprep.subr.bf16.mxu0 0
        %1001 = vmatpush1.bf16.msra.mxu0 0
        %1002 = vmatprep.mubr.bf16.mxu0 0
        %1003 = vmatmul.mubr.bf16.gmra.mrb[0].mxu0 %v711
        %v1004 = vpop.f32.mrb[0].mxu0
        %v1005 = vadd.f32 %v765, %v1004
        %v1006 = vpop.f32.mrb[0].mxu0
        %v1007 = vpop.f32.mrb[0].mxu0
        %v1008 = vadd.f32 %v765, %v1007
        %v1009 = vpop.f32.mrb[0].mxu0
        %1010 = vmatprep.mubr.bf16.mxu0 0
        %1011 = vmatmul.mubr.bf16.gmra.mrb[0].mxu0 %v712
        %v1012 = vpop.f32.mrb[0].mxu0
        %v1013 = vadd.f32 %v765, %v1012
        %v1014 = vpop.f32.mrb[0].mxu0
        %v1015 = vpop.f32.mrb[0].mxu0
        %v1016 = vadd.f32 %v765, %v1015
        %v1017 = vpop.f32.mrb[0].mxu0
        %1018 = vmatprep.mubr.bf16.mxu0 0
        %1019 = vmatmul.mubr.bf16.gmra.mrb[0].mxu0 %v713
        %v1020 = vpop.f32.mrb[0].mxu0
        %v1021 = vadd.f32 %v765, %v1020
        %v1022 = vpop.f32.mrb[0].mxu0
        %v1023 = vpop.f32.mrb[0].mxu0
        %v1024 = vadd.f32 %v765, %v1023
        %v1025 = vpop.f32.mrb[0].mxu0
        %1026 = vmatprep.mubr.bf16.mxu0 0
        %1027 = vmatmul.mubr.bf16.gmra.mrb[0].mxu0 %v714
        %v1028 = vpop.f32.mrb[0].mxu0
        %v1029 = vadd.f32 %v765, %v1028
        %v1030 = vpop.f32.mrb[0].mxu0
        %v1031 = vpop.f32.mrb[0].mxu0
        %v1032 = vadd.f32 %v765, %v1031
        %v1033 = vpop.f32.mrb[0].mxu0
        %1034 = vdwg.mxu0
        %v1035 = vpack.c.bf16 %v936, %v932
        %v1036 = vpack.c.bf16 %v938, %v934
        %v1037 = vpack.c.bf16 %v1008, %v1005
        %v1038 = vpack.c.bf16 %v946, %v942
        %v1039 = vpack.c.bf16 %v948, %v944
        %v1040 = vpack.c.bf16 %v1016, %v1013
        %v1041 = vpack.c.bf16 %v956, %v952
        %v1042 = vpack.c.bf16 %v958, %v954
        %v1043 = vpack.c.bf16 %v1024, %v1021
        %v1044 = vpack.c.bf16 %v966, %v962
        %v1045 = vpack.c.bf16 %v968, %v964
        %v1046 = vpack.c.bf16 %v1032, %v1029
        %vm1047 = vcmask 523264
        %v1049 = vsel %vm1047, %v1035, 0
        %v1052 = vsel %vm1047, %v1036, 0
        %1054 = vmatprep.subr.bf16.mxu0 0
        %1055 = vmatpush1.bf16.xpose.msra.mxu0 %v1052
        %1056 = vmatprep.subr.bf16.mxu0 0
        %1057 = vmatpush1.bf16.xpose.msra.mxu0 0
        %1058 = vmatprep.subr.bf16.mxu0 0
        %1059 = vmatpush1.bf16.xpose.msra.mxu0 0
        %1060 = vmatprep.subr.bf16.mxu0 0
        %1061 = vmatpush1.bf16.xpose.msra.mxu0 0
        %1062 = vmatprep.subr.bf16.mxu0 0
        %1063 = vmatpush1.bf16.xpose.msra.mxu0 0
        %1064 = vmatprep.subr.bf16.mxu0 0
        %1065 = vmatpush1.bf16.xpose.msra.mxu0 0
        %1066 = vmatprep.subr.bf16.mxu0 0
        %1067 = vmatpush1.bf16.xpose.msra.mxu0 0
        %1068 = vmatprep.subr.bf16.mxu0 0
        %1069 = vmatpush1.bf16.xpose.msra.mxu0 0
        %1070 = vmatprep.subr.bf16.mxu0 0
        %1071 = vmatpush1.bf16.xpose.msra.mxu0 0
        %1072 = vmatprep.subr.bf16.mxu0 0
        %1073 = vmatpush1.bf16.xpose.msra.mxu0 0
        %1074 = vmatprep.subr.bf16.mxu0 0
        %1075 = vmatpush1.bf16.xpose.msra.mxu0 0
        %1076 = vmatprep.subr.bf16.mxu0 0
        %1077 = vmatpush1.bf16.xpose.msra.mxu0 0
        %1078 = vmatprep.subr.bf16.mxu0 0
        %1079 = vmatpush1.bf16.xpose.msra.mxu0 0
        %1080 = vmatprep.subr.bf16.mxu0 0
        %1081 = vmatpush1.bf16.xpose.msra.mxu0 0
        %1082 = vmatprep.subr.bf16.mxu0 0
        %1083 = vmatpush1.bf16.xpose.msra.mxu0 0
        %1084 = vmatprep.subr.bf16.mxu0 0
        %1085 = vmatpush1.bf16.xpose.msra.mxu0 0
        %1086 = vmatprep.mubr.bf16.mxu0 0
        %1087 = vmatmul.mubr.bf16.gmra.mrb[0].mxu0 %v1049
        %v1088 = vpop.f32.mrb[0].mxu0
        %v1089 = vadd.f32 0.0, %v1088
        %v1090 = vpop.f32.mrb[0].mxu0
        %v1091 = vpop.f32.mrb[0].mxu0
        %v1092 = vadd.f32 0.0, %v1091
        %v1093 = vpop.f32.mrb[0].mxu0
        %1094 = vdwg.mxu0
        %v1096 = vsel %vm1047, %v1038, 0
        %v1099 = vsel %vm1047, %v1039, 0
        %1101 = vmatprep.subr.bf16.mxu0 0
        %1102 = vmatpush1.bf16.xpose.msra.mxu0 %v1099
        %1103 = vmatprep.subr.bf16.mxu0 0
        %1104 = vmatpush1.bf16.xpose.msra.mxu0 0
        %1105 = vmatprep.subr.bf16.mxu0 0
        %1106 = vmatpush1.bf16.xpose.msra.mxu0 0
        %1107 = vmatprep.subr.bf16.mxu0 0
        %1108 = vmatpush1.bf16.xpose.msra.mxu0 0
        %1109 = vmatprep.subr.bf16.mxu0 0
        %1110 = vmatpush1.bf16.xpose.msra.mxu0 0
        %1111 = vmatprep.subr.bf16.mxu0 0
        %1112 = vmatpush1.bf16.xpose.msra.mxu0 0
        %1113 = vmatprep.subr.bf16.mxu0 0
        %1114 = vmatpush1.bf16.xpose.msra.mxu0 0
        %1115 = vmatprep.subr.bf16.mxu0 0
        %1116 = vmatpush1.bf16.xpose.msra.mxu0 0
        %1117 = vmatprep.subr.bf16.mxu0 0
        %1118 = vmatpush1.bf16.xpose.msra.mxu0 0
        %1119 = vmatprep.subr.bf16.mxu0 0
        %1120 = vmatpush1.bf16.xpose.msra.mxu0 0
        %1121 = vmatprep.subr.bf16.mxu0 0
        %1122 = vmatpush1.bf16.xpose.msra.mxu0 0
        %1123 = vmatprep.subr.bf16.mxu0 0
        %1124 = vmatpush1.bf16.xpose.msra.mxu0 0
        %1125 = vmatprep.subr.bf16.mxu0 0
        %1126 = vmatpush1.bf16.xpose.msra.mxu0 0
        %1127 = vmatprep.subr.bf16.mxu0 0
        %1128 = vmatpush1.bf16.xpose.msra.mxu0 0
        %1129 = vmatprep.subr.bf16.mxu0 0
        %1130 = vmatpush1.bf16.xpose.msra.mxu0 0
        %1131 = vmatprep.subr.bf16.mxu0 0
        %1132 = vmatpush1.bf16.xpose.msra.mxu0 0
        %1133 = vmatprep.mubr.bf16.mxu0 0
        %1134 = vmatmul.mubr.bf16.gmra.mrb[0].mxu0 %v1096
        %v1135 = vpop.f32.mrb[0].mxu0
        %v1136 = vadd.f32 0.0, %v1135
        %v1137 = vpop.f32.mrb[0].mxu0
        %v1138 = vpop.f32.mrb[0].mxu0
        %v1139 = vadd.f32 0.0, %v1138
        %v1140 = vpop.f32.mrb[0].mxu0
        %1141 = vdwg.mxu0
        %v1143 = vsel %vm1047, %v1041, 0
        %v1146 = vsel %vm1047, %v1042, 0
        %1148 = vmatprep.subr.bf16.mxu0 0
        %1149 = vmatpush1.bf16.xpose.msra.mxu0 %v1146
        %1150 = vmatprep.subr.bf16.mxu0 0
        %1151 = vmatpush1.bf16.xpose.msra.mxu0 0
        %1152 = vmatprep.subr.bf16.mxu0 0
        %1153 = vmatpush1.bf16.xpose.msra.mxu0 0
        %1154 = vmatprep.subr.bf16.mxu0 0
        %1155 = vmatpush1.bf16.xpose.msra.mxu0 0
        %1156 = vmatprep.subr.bf16.mxu0 0
        %1157 = vmatpush1.bf16.xpose.msra.mxu0 0
        %1158 = vmatprep.subr.bf16.mxu0 0
        %1159 = vmatpush1.bf16.xpose.msra.mxu0 0
        %1160 = vmatprep.subr.bf16.mxu0 0
        %1161 = vmatpush1.bf16.xpose.msra.mxu0 0
        %1162 = vmatprep.subr.bf16.mxu0 0
        %1163 = vmatpush1.bf16.xpose.msra.mxu0 0
        %1164 = vmatprep.subr.bf16.mxu0 0
        %1165 = vmatpush1.bf16.xpose.msra.mxu0 0
        %1166 = vmatprep.subr.bf16.mxu0 0
        %1167 = vmatpush1.bf16.xpose.msra.mxu0 0
        %1168 = vmatprep.subr.bf16.mxu0 0
        %1169 = vmatpush1.bf16.xpose.msra.mxu0 0
        %1170 = vmatprep.subr.bf16.mxu0 0
        %1171 = vmatpush1.bf16.xpose.msra.mxu0 0
        %1172 = vmatprep.subr.bf16.mxu0 0
        %1173 = vmatpush1.bf16.xpose.msra.mxu0 0
        %1174 = vmatprep.subr.bf16.mxu0 0
        %1175 = vmatpush1.bf16.xpose.msra.mxu0 0
        %1176 = vmatprep.subr.bf16.mxu0 0
        %1177 = vmatpush1.bf16.xpose.msra.mxu0 0
        %1178 = vmatprep.subr.bf16.mxu0 0
        %1179 = vmatpush1.bf16.xpose.msra.mxu0 0
        %1180 = vmatprep.mubr.bf16.mxu0 0
        %1181 = vmatmul.mubr.bf16.gmra.mrb[0].mxu0 %v1143
        %v1182 = vpop.f32.mrb[0].mxu0
        %v1183 = vadd.f32 0.0, %v1182
        %v1184 = vpop.f32.mrb[0].mxu0
        %v1185 = vpop.f32.mrb[0].mxu0
        %v1186 = vadd.f32 0.0, %v1185
        %v1187 = vpop.f32.mrb[0].mxu0
        %1188 = vdwg.mxu0
        %v1190 = vsel %vm1047, %v1044, 0
        %v1193 = vsel %vm1047, %v1045, 0
        %1195 = vmatprep.subr.bf16.mxu0 0
        %1196 = vmatpush1.bf16.xpose.msra.mxu0 %v1193
        %1197 = vmatprep.subr.bf16.mxu0 0
        %1198 = vmatpush1.bf16.xpose.msra.mxu0 0
        %1199 = vmatprep.subr.bf16.mxu0 0
        %1200 = vmatpush1.bf16.xpose.msra.mxu0 0
        %1201 = vmatprep.subr.bf16.mxu0 0
        %1202 = vmatpush1.bf16.xpose.msra.mxu0 0
        %1203 = vmatprep.subr.bf16.mxu0 0
        %1204 = vmatpush1.bf16.xpose.msra.mxu0 0
        %1205 = vmatprep.subr.bf16.mxu0 0
        %1206 = vmatpush1.bf16.xpose.msra.mxu0 0
        %1207 = vmatprep.subr.bf16.mxu0 0
        %1208 = vmatpush1.bf16.xpose.msra.mxu0 0
        %1209 = vmatprep.subr.bf16.mxu0 0
        %1210 = vmatpush1.bf16.xpose.msra.mxu0 0
        %1211 = vmatprep.subr.bf16.mxu0 0
        %1212 = vmatpush1.bf16.xpose.msra.mxu0 0
        %1213 = vmatprep.subr.bf16.mxu0 0
        %1214 = vmatpush1.bf16.xpose.msra.mxu0 0
        %1215 = vmatprep.subr.bf16.mxu0 0
        %1216 = vmatpush1.bf16.xpose.msra.mxu0 0
        %1217 = vmatprep.subr.bf16.mxu0 0
        %1218 = vmatpush1.bf16.xpose.msra.mxu0 0
        %1219 = vmatprep.subr.bf16.mxu0 0
        %1220 = vmatpush1.bf16.xpose.msra.mxu0 0
        %1221 = vmatprep.subr.bf16.mxu0 0
        %1222 = vmatpush1.bf16.xpose.msra.mxu0 0
        %1223 = vmatprep.subr.bf16.mxu0 0
        %1224 = vmatpush1.bf16.xpose.msra.mxu0 0
        %1225 = vmatprep.subr.bf16.mxu0 0
        %1226 = vmatpush1.bf16.xpose.msra.mxu0 0
        %1227 = vmatprep.mubr.bf16.mxu0 0
        %1228 = vmatmul.mubr.bf16.gmra.mrb[0].mxu0 %v1190
        %v1229 = vpop.f32.mrb[0].mxu0
        %v1230 = vadd.f32 0.0, %v1229
        %v1231 = vpop.f32.mrb[0].mxu0
        %v1232 = vpop.f32.mrb[0].mxu0
        %v1233 = vadd.f32 0.0, %v1232
        %v1234 = vpop.f32.mrb[0].mxu0
        %1235 = vdwg.mxu0
        %vm1236 = vcmask 130048
        %v1237 = vsel %vm1236, %v1089, -inf
        %1238 = vmax.xlane.f32.xlu0 %v1237
        %v1239 = vpop.xlane.xlu0 %1238
        %v1240 = vsel %vm1236, %v1092, -inf
        %1241 = vmax.xlane.f32.xlu0 %v1240
        %v1242 = vpop.xlane.xlu0 %1241
        %v1243 = vsel %vm1236, %v1136, -inf
        %1244 = vmax.xlane.f32.xlu0 %v1243
        %v1245 = vpop.xlane.xlu0 %1244
        %v1246 = vsel %vm1236, %v1139, -inf
        %1247 = vmax.xlane.f32.xlu0 %v1246
        %v1248 = vpop.xlane.xlu0 %1247
        %v1249 = vsel %vm1236, %v1183, -inf
        %1250 = vmax.xlane.f32.xlu0 %v1249
        %v1251 = vpop.xlane.xlu0 %1250
        %v1252 = vsel %vm1236, %v1186, -inf
        %1253 = vmax.xlane.f32.xlu0 %v1252
        %v1254 = vpop.xlane.xlu0 %1253
        %v1255 = vsel %vm1236, %v1230, -inf
        %1256 = vmax.xlane.f32.xlu0 %v1255
        %v1257 = vpop.xlane.xlu0 %1256
        %v1258 = vsel %vm1236, %v1233, -inf
        %1259 = vmax.xlane.f32.xlu0 %v1258
        %v1260 = vpop.xlane.xlu0 %1259
        %v1261 = vsub.f32 %v1089, %v1239
        %v1262 = vsub.f32 %v1092, %v1242
        %v1263 = vsub.f32 %v1136, %v1245
        %v1264 = vsub.f32 %v1139, %v1248
        %v1265 = vsub.f32 %v1183, %v1251
        %v1266 = vsub.f32 %v1186, %v1254
        %v1267 = vsub.f32 %v1230, %v1257
        %v1268 = vsub.f32 %v1233, %v1260
        %v1269 = vmul.f32 %v1261, 1.442695
        %v1270 = vpow.pop %v1269
        %v1271 = vmul.f32 %v1262, 1.442695
        %v1272 = vpow.pop %v1271
        %v1273 = vmul.f32 %v1263, 1.442695
        %v1274 = vpow.pop %v1273
        %v1275 = vmul.f32 %v1264, 1.442695
        %v1276 = vpow.pop %v1275
        %v1277 = vmul.f32 %v1265, 1.442695
        %v1278 = vpow.pop %v1277
        %v1279 = vmul.f32 %v1266, 1.442695
        %v1280 = vpow.pop %v1279
        %v1281 = vmul.f32 %v1267, 1.442695
        %v1282 = vpow.pop %v1281
        %v1283 = vmul.f32 %v1268, 1.442695
        %v1284 = vpow.pop %v1283
        %v1285 = vsel %vm1236, %v1270, 0.0
        %1286 = vadd.xlane.f32.xlu0 %v1285
        %v1287 = vpop.xlane.xlu0 %1286
        %v1288 = vsel %vm1236, %v1272, 0.0
        %1289 = vadd.xlane.f32.xlu0 %v1288
        %v1290 = vpop.xlane.xlu0 %1289
        %v1291 = vsel %vm1236, %v1274, 0.0
        %1292 = vadd.xlane.f32.xlu0 %v1291
        %v1293 = vpop.xlane.xlu0 %1292
        %v1294 = vsel %vm1236, %v1276, 0.0
        %1295 = vadd.xlane.f32.xlu0 %v1294
        %v1296 = vpop.xlane.xlu0 %1295
        %v1297 = vsel %vm1236, %v1278, 0.0
        %1298 = vadd.xlane.f32.xlu0 %v1297
        %v1299 = vpop.xlane.xlu0 %1298
        %v1300 = vsel %vm1236, %v1280, 0.0
        %1301 = vadd.xlane.f32.xlu0 %v1300
        %v1302 = vpop.xlane.xlu0 %1301
        %v1303 = vsel %vm1236, %v1282, 0.0
        %1304 = vadd.xlane.f32.xlu0 %v1303
        %v1305 = vpop.xlane.xlu0 %1304
        %v1306 = vsel %vm1236, %v1284, 0.0
        %1307 = vadd.xlane.f32.xlu0 %v1306
        %v1308 = vpop.xlane.xlu0 %1307
        %v1309 = vrcp.pop %v1287
        %v1310 = vrcp.pop %v1290
        %v1311 = vrcp.pop %v1293
        %v1312 = vrcp.pop %v1296
        %v1313 = vrcp.pop %v1299
        %v1314 = vrcp.pop %v1302
        %v1315 = vrcp.pop %v1305
        %v1316 = vrcp.pop %v1308
        %v1317 = vmul.f32 %v1270, %v1309
        %v1318 = vmul.f32 %v1272, %v1310
        %v1319 = vmul.f32 %v1274, %v1311
        %v1320 = vmul.f32 %v1276, %v1312
        %v1321 = vmul.f32 %v1278, %v1313
        %v1322 = vmul.f32 %v1280, %v1314
        %v1323 = vmul.f32 %v1282, %v1315
        %v1324 = vmul.f32 %v1284, %v1316
        %v1325 = vpack.c.bf16 %v1318, %v1317
        %v1326 = vpack.c.bf16 %v1320, %v1319
        %v1327 = vpack.c.bf16 %v1322, %v1321
        %v1328 = vpack.c.bf16 %v1324, %v1323
        %v1330 = vsel %vm1236, %v1325, 0
        %1332 = vmatprep.subr.bf16.mxu0 0
        %1333 = vmatpush1.bf16.msra.mxu0 %v1037
        %1334 = vmatprep.subr.bf16.mxu0 0
        %1335 = vmatpush1.bf16.msra.mxu0 0
        %1336 = vmatprep.subr.bf16.mxu0 0
        %1337 = vmatpush1.bf16.msra.mxu0 0
        %1338 = vmatprep.subr.bf16.mxu0 0
        %1339 = vmatpush1.bf16.msra.mxu0 0
        %1340 = vmatprep.subr.bf16.mxu0 0
        %1341 = vmatpush1.bf16.msra.mxu0 0
        %1342 = vmatprep.subr.bf16.mxu0 0
        %1343 = vmatpush1.bf16.msra.mxu0 0
        %1344 = vmatprep.subr.bf16.mxu0 0
        %1345 = vmatpush1.bf16.msra.mxu0 0
        %1346 = vmatprep.subr.bf16.mxu0 0
        %1347 = vmatpush1.bf16.msra.mxu0 0
        %1348 = vmatprep.subr.bf16.mxu0 0
        %1349 = vmatpush1.bf16.msra.mxu0 0
        %1350 = vmatprep.subr.bf16.mxu0 0
        %1351 = vmatpush1.bf16.msra.mxu0 0
        %1352 = vmatprep.subr.bf16.mxu0 0
        %1353 = vmatpush1.bf16.msra.mxu0 0
        %1354 = vmatprep.subr.bf16.mxu0 0
        %1355 = vmatpush1.bf16.msra.mxu0 0
        %1356 = vmatprep.subr.bf16.mxu0 0
        %1357 = vmatpush1.bf16.msra.mxu0 0
        %1358 = vmatprep.subr.bf16.mxu0 0
        %1359 = vmatpush1.bf16.msra.mxu0 0
        %1360 = vmatprep.subr.bf16.mxu0 0
        %1361 = vmatpush1.bf16.msra.mxu0 0
        %1362 = vmatprep.subr.bf16.mxu0 0
        %1363 = vmatpush1.bf16.msra.mxu0 0
        %1364 = vmatprep.mubr.bf16.mxu0 0
        %1365 = vmatmul.mubr.bf16.gmra.mrb[0].mxu0 %v1330
        %v1366 = vpop.f32.mrb[0].mxu0
        %v1367 = vadd.f32 0.0, %v1366
        %v1368 = vpop.f32.mrb[0].mxu0
        %v1369 = vpop.f32.mrb[0].mxu0
        %v1370 = vadd.f32 0.0, %v1369
        %v1371 = vpop.f32.mrb[0].mxu0
        %1372 = vdwg.mxu0
        %v1374 = vsel %vm1236, %v1326, 0
        %1376 = vmatprep.subr.bf16.mxu0 0
        %1377 = vmatpush1.bf16.msra.mxu0 %v1040
        %1378 = vmatprep.subr.bf16.mxu0 0
        %1379 = vmatpush1.bf16.msra.mxu0 0
        %1380 = vmatprep.subr.bf16.mxu0 0
        %1381 = vmatpush1.bf16.msra.mxu0 0
        %1382 = vmatprep.subr.bf16.mxu0 0
        %1383 = vmatpush1.bf16.msra.mxu0 0
        %1384 = vmatprep.subr.bf16.mxu0 0
        %1385 = vmatpush1.bf16.msra.mxu0 0
        %1386 = vmatprep.subr.bf16.mxu0 0
        %1387 = vmatpush1.bf16.msra.mxu0 0
        %1388 = vmatprep.subr.bf16.mxu0 0
        %1389 = vmatpush1.bf16.msra.mxu0 0
        %1390 = vmatprep.subr.bf16.mxu0 0
        %1391 = vmatpush1.bf16.msra.mxu0 0
        %1392 = vmatprep.subr.bf16.mxu0 0
        %1393 = vmatpush1.bf16.msra.mxu0 0
        %1394 = vmatprep.subr.bf16.mxu0 0
        %1395 = vmatpush1.bf16.msra.mxu0 0
        %1396 = vmatprep.subr.bf16.mxu0 0
        %1397 = vmatpush1.bf16.msra.mxu0 0
        %1398 = vmatprep.subr.bf16.mxu0 0
        %1399 = vmatpush1.bf16.msra.mxu0 0
        %1400 = vmatprep.subr.bf16.mxu0 0
        %1401 = vmatpush1.bf16.msra.mxu0 0
        %1402 = vmatprep.subr.bf16.mxu0 0
        %1403 = vmatpush1.bf16.msra.mxu0 0
        %1404 = vmatprep.subr.bf16.mxu0 0
        %1405 = vmatpush1.bf16.msra.mxu0 0
        %1406 = vmatprep.subr.bf16.mxu0 0
        %1407 = vmatpush1.bf16.msra.mxu0 0
        %1408 = vmatprep.mubr.bf16.mxu0 0
        %1409 = vmatmul.mubr.bf16.gmra.mrb[0].mxu0 %v1374
        %v1410 = vpop.f32.mrb[0].mxu0
        %v1411 = vadd.f32 0.0, %v1410
        %v1412 = vpop.f32.mrb[0].mxu0
        %v1413 = vpop.f32.mrb[0].mxu0
        %v1414 = vadd.f32 0.0, %v1413
        %v1415 = vpop.f32.mrb[0].mxu0
        %1416 = vdwg.mxu0
        %v1418 = vsel %vm1236, %v1327, 0
        %1420 = vmatprep.subr.bf16.mxu0 0
        %1421 = vmatpush1.bf16.msra.mxu0 %v1043
        %1422 = vmatprep.subr.bf16.mxu0 0
        %1423 = vmatpush1.bf16.msra.mxu0 0
        %1424 = vmatprep.subr.bf16.mxu0 0
        %1425 = vmatpush1.bf16.msra.mxu0 0
        %1426 = vmatprep.subr.bf16.mxu0 0
        %1427 = vmatpush1.bf16.msra.mxu0 0
        %1428 = vmatprep.subr.bf16.mxu0 0
        %1429 = vmatpush1.bf16.msra.mxu0 0
        %1430 = vmatprep.subr.bf16.mxu0 0
        %1431 = vmatpush1.bf16.msra.mxu0 0
        %1432 = vmatprep.subr.bf16.mxu0 0
        %1433 = vmatpush1.bf16.msra.mxu0 0
        %1434 = vmatprep.subr.bf16.mxu0 0
        %1435 = vmatpush1.bf16.msra.mxu0 0
        %1436 = vmatprep.subr.bf16.mxu0 0
        %1437 = vmatpush1.bf16.msra.mxu0 0
        %1438 = vmatprep.subr.bf16.mxu0 0
        %1439 = vmatpush1.bf16.msra.mxu0 0
        %1440 = vmatprep.subr.bf16.mxu0 0
        %1441 = vmatpush1.bf16.msra.mxu0 0
        %1442 = vmatprep.subr.bf16.mxu0 0
        %1443 = vmatpush1.bf16.msra.mxu0 0
        %1444 = vmatprep.subr.bf16.mxu0 0
        %1445 = vmatpush1.bf16.msra.mxu0 0
        %1446 = vmatprep.subr.bf16.mxu0 0
        %1447 = vmatpush1.bf16.msra.mxu0 0
        %1448 = vmatprep.subr.bf16.mxu0 0
        %1449 = vmatpush1.bf16.msra.mxu0 0
        %1450 = vmatprep.subr.bf16.mxu0 0
        %1451 = vmatpush1.bf16.msra.mxu0 0
        %1452 = vmatprep.mubr.bf16.mxu0 0
        %1453 = vmatmul.mubr.bf16.gmra.mrb[0].mxu0 %v1418
        %v1454 = vpop.f32.mrb[0].mxu0
        %v1455 = vadd.f32 0.0, %v1454
        %v1456 = vpop.f32.mrb[0].mxu0
        %v1457 = vpop.f32.mrb[0].mxu0
        %v1458 = vadd.f32 0.0, %v1457
        %v1459 = vpop.f32.mrb[0].mxu0
        %1460 = vdwg.mxu0
        %v1462 = vsel %vm1236, %v1328, 0
        %1464 = vmatprep.subr.bf16.mxu0 0
        %1465 = vmatpush1.bf16.msra.mxu0 %v1046
        %1466 = vmatprep.subr.bf16.mxu0 0
        %1467 = vmatpush1.bf16.msra.mxu0 0
        %1468 = vmatprep.subr.bf16.mxu0 0
        %1469 = vmatpush1.bf16.msra.mxu0 0
        %1470 = vmatprep.subr.bf16.mxu0 0
        %1471 = vmatpush1.bf16.msra.mxu0 0
        %1472 = vmatprep.subr.bf16.mxu0 0
        %1473 = vmatpush1.bf16.msra.mxu0 0
        %1474 = vmatprep.subr.bf16.mxu0 0
        %1475 = vmatpush1.bf16.msra.mxu0 0
        %1476 = vmatprep.subr.bf16.mxu0 0
        %1477 = vmatpush1.bf16.msra.mxu0 0
        %1478 = vmatprep.subr.bf16.mxu0 0
        %1479 = vmatpush1.bf16.msra.mxu0 0
        %1480 = vmatprep.subr.bf16.mxu0 0
        %1481 = vmatpush1.bf16.msra.mxu0 0
        %1482 = vmatprep.subr.bf16.mxu0 0
        %1483 = vmatpush1.bf16.msra.mxu0 0
        %1484 = vmatprep.subr.bf16.mxu0 0
        %1485 = vmatpush1.bf16.msra.mxu0 0
        %1486 = vmatprep.subr.bf16.mxu0 0
        %1487 = vmatpush1.bf16.msra.mxu0 0
        %1488 = vmatprep.subr.bf16.mxu0 0
        %1489 = vmatpush1.bf16.msra.mxu0 0
        %1490 = vmatprep.subr.bf16.mxu0 0
        %1491 = vmatpush1.bf16.msra.mxu0 0
        %1492 = vmatprep.subr.bf16.mxu0 0
        %1493 = vmatpush1.bf16.msra.mxu0 0
        %1494 = vmatprep.subr.bf16.mxu0 0
        %1495 = vmatpush1.bf16.msra.mxu0 0
        %1496 = vmatprep.mubr.bf16.mxu0 0
        %1497 = vmatmul.mubr.bf16.gmra.mrb[0].mxu0 %v1462
        %v1498 = vpop.f32.mrb[0].mxu0
        %v1499 = vadd.f32 0.0, %v1498
        %v1500 = vpop.f32.mrb[0].mxu0
        %v1501 = vpop.f32.mrb[0].mxu0
        %v1502 = vadd.f32 0.0, %v1501
        %v1503 = vpop.f32.mrb[0].mxu0
        %1504 = vdwg.mxu0
        %1506 = vrot.lane.b32.xlu0 %v1035, 64
        %v1507 = vpop.permute.xlu0 %1506
        %1509 = vrot.lane.b32.xlu0 %v1036, 64
        %v1510 = vpop.permute.xlu0 %1509
        %v1512 = vsel %vm1047, %v1507, 0
        %v1515 = vsel %vm1047, %v1510, 0
        %1517 = vmatprep.subr.bf16.mxu0 0
        %1518 = vmatpush1.bf16.xpose.msra.mxu0 %v1515
        %1519 = vmatprep.subr.bf16.mxu0 0
        %1520 = vmatpush1.bf16.xpose.msra.mxu0 0
        %1521 = vmatprep.subr.bf16.mxu0 0
        %1522 = vmatpush1.bf16.xpose.msra.mxu0 0
        %1523 = vmatprep.subr.bf16.mxu0 0
        %1524 = vmatpush1.bf16.xpose.msra.mxu0 0
        %1525 = vmatprep.subr.bf16.mxu0 0
        %1526 = vmatpush1.bf16.xpose.msra.mxu0 0
        %1527 = vmatprep.subr.bf16.mxu0 0
        %1528 = vmatpush1.bf16.xpose.msra.mxu0 0
        %1529 = vmatprep.subr.bf16.mxu0 0
        %1530 = vmatpush1.bf16.xpose.msra.mxu0 0
        %1531 = vmatprep.subr.bf16.mxu0 0
        %1532 = vmatpush1.bf16.xpose.msra.mxu0 0
        %1533 = vmatprep.subr.bf16.mxu0 0
        %1534 = vmatpush1.bf16.xpose.msra.mxu0 0
        %1535 = vmatprep.subr.bf16.mxu0 0
        %1536 = vmatpush1.bf16.xpose.msra.mxu0 0
        %1537 = vmatprep.subr.bf16.mxu0 0
        %1538 = vmatpush1.bf16.xpose.msra.mxu0 0
        %1539 = vmatprep.subr.bf16.mxu0 0
        %1540 = vmatpush1.bf16.xpose.msra.mxu0 0
        %1541 = vmatprep.subr.bf16.mxu0 0
        %1542 = vmatpush1.bf16.xpose.msra.mxu0 0
        %1543 = vmatprep.subr.bf16.mxu0 0
        %1544 = vmatpush1.bf16.xpose.msra.mxu0 0
        %1545 = vmatprep.subr.bf16.mxu0 0
        %1546 = vmatpush1.bf16.xpose.msra.mxu0 0
        %1547 = vmatprep.subr.bf16.mxu0 0
        %1548 = vmatpush1.bf16.xpose.msra.mxu0 0
        %1549 = vmatprep.mubr.bf16.mxu0 0
        %1550 = vmatmul.mubr.bf16.gmra.mrb[0].mxu0 %v1512
        %v1551 = vpop.f32.mrb[0].mxu0
        %v1552 = vadd.f32 0.0, %v1551
        %v1553 = vpop.f32.mrb[0].mxu0
        %v1554 = vpop.f32.mrb[0].mxu0
        %v1555 = vadd.f32 0.0, %v1554
        %v1556 = vpop.f32.mrb[0].mxu0
        %1557 = vdwg.mxu0
        %1559 = vrot.lane.b32.xlu0 %v1038, 64
        %v1560 = vpop.permute.xlu0 %1559
        %1562 = vrot.lane.b32.xlu0 %v1039, 64
        %v1563 = vpop.permute.xlu0 %1562
        %v1565 = vsel %vm1047, %v1560, 0
        %v1568 = vsel %vm1047, %v1563, 0
        %1570 = vmatprep.subr.bf16.mxu0 0
        %1571 = vmatpush1.bf16.xpose.msra.mxu0 %v1568
        %1572 = vmatprep.subr.bf16.mxu0 0
        %1573 = vmatpush1.bf16.xpose.msra.mxu0 0
        %1574 = vmatprep.subr.bf16.mxu0 0
        %1575 = vmatpush1.bf16.xpose.msra.mxu0 0
        %1576 = vmatprep.subr.bf16.mxu0 0
        %1577 = vmatpush1.bf16.xpose.msra.mxu0 0
        %1578 = vmatprep.subr.bf16.mxu0 0
        %1579 = vmatpush1.bf16.xpose.msra.mxu0 0
        %1580 = vmatprep.subr.bf16.mxu0 0
        %1581 = vmatpush1.bf16.xpose.msra.mxu0 0
        %1582 = vmatprep.subr.bf16.mxu0 0
        %1583 = vmatpush1.bf16.xpose.msra.mxu0 0
        %1584 = vmatprep.subr.bf16.mxu0 0
        %1585 = vmatpush1.bf16.xpose.msra.mxu0 0
        %1586 = vmatprep.subr.bf16.mxu0 0
        %1587 = vmatpush1.bf16.xpose.msra.mxu0 0
        %1588 = vmatprep.subr.bf16.mxu0 0
        %1589 = vmatpush1.bf16.xpose.msra.mxu0 0
        %1590 = vmatprep.subr.bf16.mxu0 0
        %1591 = vmatpush1.bf16.xpose.msra.mxu0 0
        %1592 = vmatprep.subr.bf16.mxu0 0
        %1593 = vmatpush1.bf16.xpose.msra.mxu0 0
        %1594 = vmatprep.subr.bf16.mxu0 0
        %1595 = vmatpush1.bf16.xpose.msra.mxu0 0
        %1596 = vmatprep.subr.bf16.mxu0 0
        %1597 = vmatpush1.bf16.xpose.msra.mxu0 0
        %1598 = vmatprep.subr.bf16.mxu0 0
        %1599 = vmatpush1.bf16.xpose.msra.mxu0 0
        %1600 = vmatprep.subr.bf16.mxu0 0
        %1601 = vmatpush1.bf16.xpose.msra.mxu0 0
        %1602 = vmatprep.mubr.bf16.mxu0 0
        %1603 = vmatmul.mubr.bf16.gmra.mrb[0].mxu0 %v1565
        %v1604 = vpop.f32.mrb[0].mxu0
        %v1605 = vadd.f32 0.0, %v1604
        %v1606 = vpop.f32.mrb[0].mxu0
        %v1607 = vpop.f32.mrb[0].mxu0
        %v1608 = vadd.f32 0.0, %v1607
        %v1609 = vpop.f32.mrb[0].mxu0
        %1610 = vdwg.mxu0
        %1612 = vrot.lane.b32.xlu0 %v1041, 64
        %v1613 = vpop.permute.xlu0 %1612
        %1615 = vrot.lane.b32.xlu0 %v1042, 64
        %v1616 = vpop.permute.xlu0 %1615
        %v1618 = vsel %vm1047, %v1613, 0
        %v1621 = vsel %vm1047, %v1616, 0
        %1623 = vmatprep.subr.bf16.mxu0 0
        %1624 = vmatpush1.bf16.xpose.msra.mxu0 %v1621
        %1625 = vmatprep.subr.bf16.mxu0 0
        %1626 = vmatpush1.bf16.xpose.msra.mxu0 0
        %1627 = vmatprep.subr.bf16.mxu0 0
        %1628 = vmatpush1.bf16.xpose.msra.mxu0 0
        %1629 = vmatprep.subr.bf16.mxu0 0
        %1630 = vmatpush1.bf16.xpose.msra.mxu0 0
        %1631 = vmatprep.subr.bf16.mxu0 0
        %1632 = vmatpush1.bf16.xpose.msra.mxu0 0
        %1633 = vmatprep.subr.bf16.mxu0 0
        %1634 = vmatpush1.bf16.xpose.msra.mxu0 0
        %1635 = vmatprep.subr.bf16.mxu0 0
        %1636 = vmatpush1.bf16.xpose.msra.mxu0 0
        %1637 = vmatprep.subr.bf16.mxu0 0
        %1638 = vmatpush1.bf16.xpose.msra.mxu0 0
        %1639 = vmatprep.subr.bf16.mxu0 0
        %1640 = vmatpush1.bf16.xpose.msra.mxu0 0
        %1641 = vmatprep.subr.bf16.mxu0 0
        %1642 = vmatpush1.bf16.xpose.msra.mxu0 0
        %1643 = vmatprep.subr.bf16.mxu0 0
        %1644 = vmatpush1.bf16.xpose.msra.mxu0 0
        %1645 = vmatprep.subr.bf16.mxu0 0
        %1646 = vmatpush1.bf16.xpose.msra.mxu0 0
        %1647 = vmatprep.subr.bf16.mxu0 0
        %1648 = vmatpush1.bf16.xpose.msra.mxu0 0
        %1649 = vmatprep.subr.bf16.mxu0 0
        %1650 = vmatpush1.bf16.xpose.msra.mxu0 0
        %1651 = vmatprep.subr.bf16.mxu0 0
        %1652 = vmatpush1.bf16.xpose.msra.mxu0 0
        %1653 = vmatprep.subr.bf16.mxu0 0
        %1654 = vmatpush1.bf16.xpose.msra.mxu0 0
        %1655 = vmatprep.mubr.bf16.mxu0 0
        %1656 = vmatmul.mubr.bf16.gmra.mrb[0].mxu0 %v1618
        %v1657 = vpop.f32.mrb[0].mxu0
        %v1658 = vadd.f32 0.0, %v1657
        %v1659 = vpop.f32.mrb[0].mxu0
        %v1660 = vpop.f32.mrb[0].mxu0
        %v1661 = vadd.f32 0.0, %v1660
        %v1662 = vpop.f32.mrb[0].mxu0
        %1663 = vdwg.mxu0
        %1665 = vrot.lane.b32.xlu0 %v1044, 64
        %v1666 = vpop.permute.xlu0 %1665
        %1668 = vrot.lane.b32.xlu0 %v1045, 64
        %v1669 = vpop.permute.xlu0 %1668
        %v1671 = vsel %vm1047, %v1666, 0
        %v1674 = vsel %vm1047, %v1669, 0
        %1676 = vmatprep.subr.bf16.mxu0 0
        %1677 = vmatpush1.bf16.xpose.msra.mxu0 %v1674
        %1678 = vmatprep.subr.bf16.mxu0 0
        %1679 = vmatpush1.bf16.xpose.msra.mxu0 0
        %1680 = vmatprep.subr.bf16.mxu0 0
        %1681 = vmatpush1.bf16.xpose.msra.mxu0 0
        %1682 = vmatprep.subr.bf16.mxu0 0
        %1683 = vmatpush1.bf16.xpose.msra.mxu0 0
        %1684 = vmatprep.subr.bf16.mxu0 0
        %1685 = vmatpush1.bf16.xpose.msra.mxu0 0
        %1686 = vmatprep.subr.bf16.mxu0 0
        %1687 = vmatpush1.bf16.xpose.msra.mxu0 0
        %1688 = vmatprep.subr.bf16.mxu0 0
        %1689 = vmatpush1.bf16.xpose.msra.mxu0 0
        %1690 = vmatprep.subr.bf16.mxu0 0
        %1691 = vmatpush1.bf16.xpose.msra.mxu0 0
        %1692 = vmatprep.subr.bf16.mxu0 0
        %1693 = vmatpush1.bf16.xpose.msra.mxu0 0
        %1694 = vmatprep.subr.bf16.mxu0 0
        %1695 = vmatpush1.bf16.xpose.msra.mxu0 0
        %1696 = vmatprep.subr.bf16.mxu0 0
        %1697 = vmatpush1.bf16.xpose.msra.mxu0 0
        %1698 = vmatprep.subr.bf16.mxu0 0
        %1699 = vmatpush1.bf16.xpose.msra.mxu0 0
        %1700 = vmatprep.subr.bf16.mxu0 0
        %1701 = vmatpush1.bf16.xpose.msra.mxu0 0
        %1702 = vmatprep.subr.bf16.mxu0 0
        %1703 = vmatpush1.bf16.xpose.msra.mxu0 0
        %1704 = vmatprep.subr.bf16.mxu0 0
        %1705 = vmatpush1.bf16.xpose.msra.mxu0 0
        %1706 = vmatprep.subr.bf16.mxu0 0
        %1707 = vmatpush1.bf16.xpose.msra.mxu0 0
        %1708 = vmatprep.mubr.bf16.mxu0 0
        %1709 = vmatmul.mubr.bf16.gmra.mrb[0].mxu0 %v1671
        %v1710 = vpop.f32.mrb[0].mxu0
        %v1711 = vadd.f32 0.0, %v1710
        %v1712 = vpop.f32.mrb[0].mxu0
        %v1713 = vpop.f32.mrb[0].mxu0
        %v1714 = vadd.f32 0.0, %v1713
        %v1715 = vpop.f32.mrb[0].mxu0
        %1716 = vdwg.mxu0
        %v1717 = vsel %vm1236, %v1552, -inf
        %1718 = vmax.xlane.f32.xlu0 %v1717
        %v1719 = vpop.xlane.xlu0 %1718
        %v1720 = vsel %vm1236, %v1555, -inf
        %1721 = vmax.xlane.f32.xlu0 %v1720
        %v1722 = vpop.xlane.xlu0 %1721
        %v1723 = vsel %vm1236, %v1605, -inf
        %1724 = vmax.xlane.f32.xlu0 %v1723
        %v1725 = vpop.xlane.xlu0 %1724
        %v1726 = vsel %vm1236, %v1608, -inf
        %1727 = vmax.xlane.f32.xlu0 %v1726
        %v1728 = vpop.xlane.xlu0 %1727
        %v1729 = vsel %vm1236, %v1658, -inf
        %1730 = vmax.xlane.f32.xlu0 %v1729
        %v1731 = vpop.xlane.xlu0 %1730
        %v1732 = vsel %vm1236, %v1661, -inf
        %1733 = vmax.xlane.f32.xlu0 %v1732
        %v1734 = vpop.xlane.xlu0 %1733
        %v1735 = vsel %vm1236, %v1711, -inf
        %1736 = vmax.xlane.f32.xlu0 %v1735
        %v1737 = vpop.xlane.xlu0 %1736
        %v1738 = vsel %vm1236, %v1714, -inf
        %1739 = vmax.xlane.f32.xlu0 %v1738
        %v1740 = vpop.xlane.xlu0 %1739
        %v1741 = vsub.f32 %v1552, %v1719
        %v1742 = vsub.f32 %v1555, %v1722
        %v1743 = vsub.f32 %v1605, %v1725
        %v1744 = vsub.f32 %v1608, %v1728
        %v1745 = vsub.f32 %v1658, %v1731
        %v1746 = vsub.f32 %v1661, %v1734
        %v1747 = vsub.f32 %v1711, %v1737
        %v1748 = vsub.f32 %v1714, %v1740
        %v1749 = vmul.f32 %v1741, 1.442695
        %v1750 = vpow.pop %v1749
        %v1751 = vmul.f32 %v1742, 1.442695
        %v1752 = vpow.pop %v1751
        %v1753 = vmul.f32 %v1743, 1.442695
        %v1754 = vpow.pop %v1753
        %v1755 = vmul.f32 %v1744, 1.442695
        %v1756 = vpow.pop %v1755
        %v1757 = vmul.f32 %v1745, 1.442695
        %v1758 = vpow.pop %v1757
        %v1759 = vmul.f32 %v1746, 1.442695
        %v1760 = vpow.pop %v1759
        %v1761 = vmul.f32 %v1747, 1.442695
        %v1762 = vpow.pop %v1761
        %v1763 = vmul.f32 %v1748, 1.442695
        %v1764 = vpow.pop %v1763
        %v1765 = vsel %vm1236, %v1750, 0.0
        %1766 = vadd.xlane.f32.xlu0 %v1765
        %v1767 = vpop.xlane.xlu0 %1766
        %v1768 = vsel %vm1236, %v1752, 0.0
        %1769 = vadd.xlane.f32.xlu0 %v1768
        %v1770 = vpop.xlane.xlu0 %1769
        %v1771 = vsel %vm1236, %v1754, 0.0
        %1772 = vadd.xlane.f32.xlu0 %v1771
        %v1773 = vpop.xlane.xlu0 %1772
        %v1774 = vsel %vm1236, %v1756, 0.0
        %1775 = vadd.xlane.f32.xlu0 %v1774
        %v1776 = vpop.xlane.xlu0 %1775
        %v1777 = vsel %vm1236, %v1758, 0.0
        %1778 = vadd.xlane.f32.xlu0 %v1777
        %v1779 = vpop.xlane.xlu0 %1778
        %v1780 = vsel %vm1236, %v1760, 0.0
        %1781 = vadd.xlane.f32.xlu0 %v1780
        %v1782 = vpop.xlane.xlu0 %1781
        %v1783 = vsel %vm1236, %v1762, 0.0
        %1784 = vadd.xlane.f32.xlu0 %v1783
        %v1785 = vpop.xlane.xlu0 %1784
        %v1786 = vsel %vm1236, %v1764, 0.0
        %1787 = vadd.xlane.f32.xlu0 %v1786
        %v1788 = vpop.xlane.xlu0 %1787
        %v1789 = vrcp.pop %v1767
        %v1790 = vrcp.pop %v1770
        %v1791 = vrcp.pop %v1773
        %v1792 = vrcp.pop %v1776
        %v1793 = vrcp.pop %v1779
        %v1794 = vrcp.pop %v1782
        %v1795 = vrcp.pop %v1785
        %v1796 = vrcp.pop %v1788
        %v1797 = vmul.f32 %v1750, %v1789
        %v1798 = vmul.f32 %v1752, %v1790
        %v1799 = vmul.f32 %v1754, %v1791
        %v1800 = vmul.f32 %v1756, %v1792
        %v1801 = vmul.f32 %v1758, %v1793
        %v1802 = vmul.f32 %v1760, %v1794
        %v1803 = vmul.f32 %v1762, %v1795
        %v1804 = vmul.f32 %v1764, %v1796
        %v1805 = vpack.c.bf16 %v1798, %v1797
        %v1806 = vpack.c.bf16 %v1800, %v1799
        %v1807 = vpack.c.bf16 %v1802, %v1801
        %v1808 = vpack.c.bf16 %v1804, %v1803
        %1810 = vrot.lane.b32.xlu0 %v1037, 64
        %v1811 = vpop.permute.xlu0 %1810
        %v1814 = vsel %vm1236, %v1805, 0
        %1816 = vmatprep.subr.bf16.mxu0 0
        %1817 = vmatpush1.bf16.msra.mxu0 %v1811
        %1818 = vmatprep.subr.bf16.mxu0 0
        %1819 = vmatpush1.bf16.msra.mxu0 0
        %1820 = vmatprep.subr.bf16.mxu0 0
        %1821 = vmatpush1.bf16.msra.mxu0 0
        %1822 = vmatprep.subr.bf16.mxu0 0
        %1823 = vmatpush1.bf16.msra.mxu0 0
        %1824 = vmatprep.subr.bf16.mxu0 0
        %1825 = vmatpush1.bf16.msra.mxu0 0
        %1826 = vmatprep.subr.bf16.mxu0 0
        %1827 = vmatpush1.bf16.msra.mxu0 0
        %1828 = vmatprep.subr.bf16.mxu0 0
        %1829 = vmatpush1.bf16.msra.mxu0 0
        %1830 = vmatprep.subr.bf16.mxu0 0
        %1831 = vmatpush1.bf16.msra.mxu0 0
        %1832 = vmatprep.subr.bf16.mxu0 0
        %1833 = vmatpush1.bf16.msra.mxu0 0
        %1834 = vmatprep.subr.bf16.mxu0 0
        %1835 = vmatpush1.bf16.msra.mxu0 0
        %1836 = vmatprep.subr.bf16.mxu0 0
        %1837 = vmatpush1.bf16.msra.mxu0 0
        %1838 = vmatprep.subr.bf16.mxu0 0
        %1839 = vmatpush1.bf16.msra.mxu0 0
        %1840 = vmatprep.subr.bf16.mxu0 0
        %1841 = vmatpush1.bf16.msra.mxu0 0
        %1842 = vmatprep.subr.bf16.mxu0 0
        %1843 = vmatpush1.bf16.msra.mxu0 0
        %1844 = vmatprep.subr.bf16.mxu0 0
        %1845 = vmatpush1.bf16.msra.mxu0 0
        %1846 = vmatprep.subr.bf16.mxu0 0
        %1847 = vmatpush1.bf16.msra.mxu0 0
        %1848 = vmatprep.mubr.bf16.mxu0 0
        %1849 = vmatmul.mubr.bf16.gmra.mrb[0].mxu0 %v1814
        %v1850 = vpop.f32.mrb[0].mxu0
        %v1851 = vadd.f32 0.0, %v1850
        %v1852 = vpop.f32.mrb[0].mxu0
        %v1853 = vpop.f32.mrb[0].mxu0
        %v1854 = vadd.f32 0.0, %v1853
        %v1855 = vpop.f32.mrb[0].mxu0
        %1856 = vdwg.mxu0
        %1858 = vrot.lane.b32.xlu0 %v1040, 64
        %v1859 = vpop.permute.xlu0 %1858
        %v1862 = vsel %vm1236, %v1806, 0
        %1864 = vmatprep.subr.bf16.mxu0 0
        %1865 = vmatpush1.bf16.msra.mxu0 %v1859
        %1866 = vmatprep.subr.bf16.mxu0 0
        %1867 = vmatpush1.bf16.msra.mxu0 0
        %1868 = vmatprep.subr.bf16.mxu0 0
        %1869 = vmatpush1.bf16.msra.mxu0 0
        %1870 = vmatprep.subr.bf16.mxu0 0
        %1871 = vmatpush1.bf16.msra.mxu0 0
        %1872 = vmatprep.subr.bf16.mxu0 0
        %1873 = vmatpush1.bf16.msra.mxu0 0
        %1874 = vmatprep.subr.bf16.mxu0 0
        %1875 = vmatpush1.bf16.msra.mxu0 0
        %1876 = vmatprep.subr.bf16.mxu0 0
        %1877 = vmatpush1.bf16.msra.mxu0 0
        %1878 = vmatprep.subr.bf16.mxu0 0
        %1879 = vmatpush1.bf16.msra.mxu0 0
        %1880 = vmatprep.subr.bf16.mxu0 0
        %1881 = vmatpush1.bf16.msra.mxu0 0
        %1882 = vmatprep.subr.bf16.mxu0 0
        %1883 = vmatpush1.bf16.msra.mxu0 0
        %1884 = vmatprep.subr.bf16.mxu0 0
        %1885 = vmatpush1.bf16.msra.mxu0 0
        %1886 = vmatprep.subr.bf16.mxu0 0
        %1887 = vmatpush1.bf16.msra.mxu0 0
        %1888 = vmatprep.subr.bf16.mxu0 0
        %1889 = vmatpush1.bf16.msra.mxu0 0
        %1890 = vmatprep.subr.bf16.mxu0 0
        %1891 = vmatpush1.bf16.msra.mxu0 0
        %1892 = vmatprep.subr.bf16.mxu0 0
        %1893 = vmatpush1.bf16.msra.mxu0 0
        %1894 = vmatprep.subr.bf16.mxu0 0
        %1895 = vmatpush1.bf16.msra.mxu0 0
        %1896 = vmatprep.mubr.bf16.mxu0 0
        %1897 = vmatmul.mubr.bf16.gmra.mrb[0].mxu0 %v1862
        %v1898 = vpop.f32.mrb[0].mxu0
        %v1899 = vadd.f32 0.0, %v1898
        %v1900 = vpop.f32.mrb[0].mxu0
        %v1901 = vpop.f32.mrb[0].mxu0
        %v1902 = vadd.f32 0.0, %v1901
        %v1903 = vpop.f32.mrb[0].mxu0
        %1904 = vdwg.mxu0
        %1906 = vrot.lane.b32.xlu0 %v1043, 64
        %v1907 = vpop.permute.xlu0 %1906
        %v1910 = vsel %vm1236, %v1807, 0
        %1912 = vmatprep.subr.bf16.mxu0 0
        %1913 = vmatpush1.bf16.msra.mxu0 %v1907
        %1914 = vmatprep.subr.bf16.mxu0 0
        %1915 = vmatpush1.bf16.msra.mxu0 0
        %1916 = vmatprep.subr.bf16.mxu0 0
        %1917 = vmatpush1.bf16.msra.mxu0 0
        %1918 = vmatprep.subr.bf16.mxu0 0
        %1919 = vmatpush1.bf16.msra.mxu0 0
        %1920 = vmatprep.subr.bf16.mxu0 0
        %1921 = vmatpush1.bf16.msra.mxu0 0
        %1922 = vmatprep.subr.bf16.mxu0 0
        %1923 = vmatpush1.bf16.msra.mxu0 0
        %1924 = vmatprep.subr.bf16.mxu0 0
        %1925 = vmatpush1.bf16.msra.mxu0 0
        %1926 = vmatprep.subr.bf16.mxu0 0
        %1927 = vmatpush1.bf16.msra.mxu0 0
        %1928 = vmatprep.subr.bf16.mxu0 0
        %1929 = vmatpush1.bf16.msra.mxu0 0
        %1930 = vmatprep.subr.bf16.mxu0 0
        %1931 = vmatpush1.bf16.msra.mxu0 0
        %1932 = vmatprep.subr.bf16.mxu0 0
        %1933 = vmatpush1.bf16.msra.mxu0 0
        %1934 = vmatprep.subr.bf16.mxu0 0
        %1935 = vmatpush1.bf16.msra.mxu0 0
        %1936 = vmatprep.subr.bf16.mxu0 0
        %1937 = vmatpush1.bf16.msra.mxu0 0
        %1938 = vmatprep.subr.bf16.mxu0 0
        %1939 = vmatpush1.bf16.msra.mxu0 0
        %1940 = vmatprep.subr.bf16.mxu0 0
        %1941 = vmatpush1.bf16.msra.mxu0 0
        %1942 = vmatprep.subr.bf16.mxu0 0
        %1943 = vmatpush1.bf16.msra.mxu0 0
        %1944 = vmatprep.mubr.bf16.mxu0 0
        %1945 = vmatmul.mubr.bf16.gmra.mrb[0].mxu0 %v1910
        %v1946 = vpop.f32.mrb[0].mxu0
        %v1947 = vadd.f32 0.0, %v1946
        %v1948 = vpop.f32.mrb[0].mxu0
        %v1949 = vpop.f32.mrb[0].mxu0
        %v1950 = vadd.f32 0.0, %v1949
        %v1951 = vpop.f32.mrb[0].mxu0
        %1952 = vdwg.mxu0
        %1954 = vrot.lane.b32.xlu0 %v1046, 64
        %v1955 = vpop.permute.xlu0 %1954
        %v1958 = vsel %vm1236, %v1808, 0
        %1960 = vmatprep.subr.bf16.mxu0 0
        %1961 = vmatpush1.bf16.msra.mxu0 %v1955
        %1962 = vmatprep.subr.bf16.mxu0 0
        %1963 = vmatpush1.bf16.msra.mxu0 0
        %1964 = vmatprep.subr.bf16.mxu0 0
        %1965 = vmatpush1.bf16.msra.mxu0 0
        %1966 = vmatprep.subr.bf16.mxu0 0
        %1967 = vmatpush1.bf16.msra.mxu0 0
        %1968 = vmatprep.subr.bf16.mxu0 0
        %1969 = vmatpush1.bf16.msra.mxu0 0
        %1970 = vmatprep.subr.bf16.mxu0 0
        %1971 = vmatpush1.bf16.msra.mxu0 0
        %1972 = vmatprep.subr.bf16.mxu0 0
        %1973 = vmatpush1.bf16.msra.mxu0 0
        %1974 = vmatprep.subr.bf16.mxu0 0
        %1975 = vmatpush1.bf16.msra.mxu0 0
        %1976 = vmatprep.subr.bf16.mxu0 0
        %1977 = vmatpush1.bf16.msra.mxu0 0
        %1978 = vmatprep.subr.bf16.mxu0 0
        %1979 = vmatpush1.bf16.msra.mxu0 0
        %1980 = vmatprep.subr.bf16.mxu0 0
        %1981 = vmatpush1.bf16.msra.mxu0 0
        %1982 = vmatprep.subr.bf16.mxu0 0
        %1983 = vmatpush1.bf16.msra.mxu0 0
        %1984 = vmatprep.subr.bf16.mxu0 0
        %1985 = vmatpush1.bf16.msra.mxu0 0
        %1986 = vmatprep.subr.bf16.mxu0 0
        %1987 = vmatpush1.bf16.msra.mxu0 0
        %1988 = vmatprep.subr.bf16.mxu0 0
        %1989 = vmatpush1.bf16.msra.mxu0 0
        %1990 = vmatprep.subr.bf16.mxu0 0
        %1991 = vmatpush1.bf16.msra.mxu0 0
        %1992 = vmatprep.mubr.bf16.mxu0 0
        %1993 = vmatmul.mubr.bf16.gmra.mrb[0].mxu0 %v1958
        %v1994 = vpop.f32.mrb[0].mxu0
        %v1995 = vadd.f32 0.0, %v1994
        %v1996 = vpop.f32.mrb[0].mxu0
        %v1997 = vpop.f32.mrb[0].mxu0
        %v1998 = vadd.f32 0.0, %v1997
        %v1999 = vpop.f32.mrb[0].mxu0
        %2000 = vdwg.mxu0
        %2009 = vrot.lane.b32.xlu0 %v1851, 64
        %v2010 = vpop.permute.xlu0 %2009
        %2011 = vrot.lane.b32.xlu0 %v1854, 64
        %v2012 = vpop.permute.xlu0 %2011
        %2013 = vrot.lane.b32.xlu0 %v1899, 64
        %v2014 = vpop.permute.xlu0 %2013
        %2015 = vrot.lane.b32.xlu0 %v1902, 64
        %v2016 = vpop.permute.xlu0 %2015
        %2017 = vrot.lane.b32.xlu0 %v1947, 64
        %v2018 = vpop.permute.xlu0 %2017
        %2019 = vrot.lane.b32.xlu0 %v1950, 64
        %v2020 = vpop.permute.xlu0 %2019
        %2021 = vrot.lane.b32.xlu0 %v1995, 64
        %v2022 = vpop.permute.xlu0 %2021
        %2023 = vrot.lane.b32.xlu0 %v1998, 64
        %v2024 = vpop.permute.xlu0 %2023
        %v2033 = vsel %vm1047, %v1367, %v2010
        %v2034 = vsel %vm1047, %v1370, %v2012
        %v2035 = vsel %vm1047, %v1411, %v2014
        %v2036 = vsel %vm1047, %v1414, %v2016
        %v2037 = vsel %vm1047, %v1455, %v2018
        %v2038 = vsel %vm1047, %v1458, %v2020
        %v2039 = vsel %vm1047, %v1499, %v2022
        %v2040 = vsel %vm1047, %v1502, %v2024
        %v2041 = vpack.c.bf16 %v2034, %v2033
        %v2042 = vpack.c.bf16 %v2036, %v2035
        %v2043 = vpack.c.bf16 %v2038, %v2037
        %v2044 = vpack.c.bf16 %v2040, %v2039
        %s2045 = smul.u32 %s38, 16
        %s2046 = smul.addr %s2045, 4
        %s2047 = scalar_lea.vmem [#allocation11], %s2046
        %v2048 = vld [vmem:[%s2047] sm:$0xf]
        %v2049 = vld [vmem:[%s2047 + $0x4] sm:$0xf]
        %v2050 = vld [vmem:[%s2047 + $0x8] sm:$0xf]
        %v2051 = vld [vmem:[%s2047 + $0xc] sm:$0xf]
        %v2052 = vld [vmem:[%s2047 + $0x10] sm:$0xf]
        %v2053 = vld [vmem:[%s2047 + $0x14] sm:$0xf]
        %v2054 = vld [vmem:[%s2047 + $0x18] sm:$0xf]
        %v2055 = vld [vmem:[%s2047 + $0x1c] sm:$0xf]
        %v2056 = vld [vmem:[%s2047 + $0x20] sm:$0xf]
        %v2057 = vld [vmem:[%s2047 + $0x24] sm:$0xf]
        %v2058 = vld [vmem:[%s2047 + $0x28] sm:$0xf]
        %v2059 = vld [vmem:[%s2047 + $0x2c] sm:$0xf]
        %v2060 = vld [vmem:[%s2047 + $0x30] sm:$0xf]
        %v2061 = vld [vmem:[%s2047 + $0x34] sm:$0xf]
        %v2062 = vld [vmem:[%s2047 + $0x38] sm:$0xf]
        %v2063 = vld [vmem:[%s2047 + $0x3c] sm:$0xf]
        %s2064 = scalar_lea.vmem %s6, %s38
        %v2065 = vld [vmem:[%s2064] sm:$0x1]
        %v2067 = vlaneseq
        %v2068 = vshrl.u32 %v2067, 7
        %v2069 = vsub.s32 0, %v2068
        %v2070 = vrot.slane %v2065, %v2069
        %v2088 = vunpack.c.l.b16 %v2048
        %v2089 = vunpack.c.l.b16 %v2049
        %v2090 = vunpack.c.l.b16 %v2050
        %v2091 = vunpack.c.l.b16 %v2051
        %v2092 = vunpack.c.l.b16 %v2052
        %v2093 = vunpack.c.l.b16 %v2053
        %v2094 = vunpack.c.l.b16 %v2054
        %v2095 = vunpack.c.l.b16 %v2055
        %v2096 = vunpack.c.l.b16 %v2056
        %v2097 = vunpack.c.l.b16 %v2057
        %v2098 = vunpack.c.l.b16 %v2058
        %v2099 = vunpack.c.l.b16 %v2059
        %v2100 = vunpack.c.l.b16 %v2060
        %v2101 = vunpack.c.l.b16 %v2061
        %v2102 = vunpack.c.l.b16 %v2062
        %v2103 = vunpack.c.l.b16 %v2063
        %v2104 = vpack.c.b16 %v2089, %v2088
        %v2105 = vpack.c.b16 %v2091, %v2090
        %v2106 = vpack.c.b16 %v2093, %v2092
        %v2107 = vpack.c.b16 %v2095, %v2094
        %v2108 = vpack.c.b16 %v2097, %v2096
        %v2109 = vpack.c.b16 %v2099, %v2098
        %v2110 = vpack.c.b16 %v2101, %v2100
        %v2111 = vpack.c.b16 %v2103, %v2102
        %2120 = vmatprep.subr.bf16.mxu0 0
        %2121 = vmatpush1.bf16.msra.mxu0 %v2104
        %2122 = vmatprep.subr.bf16.mxu0 0
        %2123 = vmatpush1.bf16.msra.mxu0 %v2105
        %2124 = vmatprep.subr.bf16.mxu0 0
        %2125 = vmatpush1.bf16.msra.mxu0 %v2106
        %2126 = vmatprep.subr.bf16.mxu0 0
        %2127 = vmatpush1.bf16.msra.mxu0 %v2107
        %2128 = vmatprep.subr.bf16.mxu0 0
        %2129 = vmatpush1.bf16.msra.mxu0 %v2108
        %2130 = vmatprep.subr.bf16.mxu0 0
        %2131 = vmatpush1.bf16.msra.mxu0 %v2109
        %2132 = vmatprep.subr.bf16.mxu0 0
        %2133 = vmatpush1.bf16.msra.mxu0 %v2110
        %2134 = vmatprep.subr.bf16.mxu0 0
        %2135 = vmatpush1.bf16.msra.mxu0 %v2111
        %2136 = vmatprep.subr.bf16.mxu0 0
        %2137 = vmatpush1.bf16.msra.mxu0 0
        %2138 = vmatprep.subr.bf16.mxu0 0
        %2139 = vmatpush1.bf16.msra.mxu0 0
        %2140 = vmatprep.subr.bf16.mxu0 0
        %2141 = vmatpush1.bf16.msra.mxu0 0
        %2142 = vmatprep.subr.bf16.mxu0 0
        %2143 = vmatpush1.bf16.msra.mxu0 0
        %2144 = vmatprep.subr.bf16.mxu0 0
        %2145 = vmatpush1.bf16.msra.mxu0 0
        %2146 = vmatprep.subr.bf16.mxu0 0
        %2147 = vmatpush1.bf16.msra.mxu0 0
        %2148 = vmatprep.subr.bf16.mxu0 0
        %2149 = vmatpush1.bf16.msra.mxu0 0
        %2150 = vmatprep.subr.bf16.mxu0 0
        %2151 = vmatpush1.bf16.msra.mxu0 0
        %2152 = vmatprep.mubr.bf16.mxu0 0
        %2153 = vmatmul.mubr.bf16.gmra.mrb[0].mxu0 %v2041
        %v2154 = vpop.f32.mrb[0].mxu0
        %v2155 = vadd.f32 %v2070, %v2154
        %v2156 = vpop.f32.mrb[0].mxu0
        %v2157 = vpop.f32.mrb[0].mxu0
        %v2158 = vadd.f32 %v2070, %v2157
        %v2159 = vpop.f32.mrb[0].mxu0
        %2160 = vmatprep.mubr.bf16.mxu0 0
        %2161 = vmatmul.mubr.bf16.gmra.mrb[0].mxu0 %v2042
        %v2162 = vpop.f32.mrb[0].mxu0
        %v2163 = vadd.f32 %v2070, %v2162
        %v2164 = vpop.f32.mrb[0].mxu0
        %v2165 = vpop.f32.mrb[0].mxu0
        %v2166 = vadd.f32 %v2070, %v2165
        %v2167 = vpop.f32.mrb[0].mxu0
        %2168 = vmatprep.mubr.bf16.mxu0 0
        %2169 = vmatmul.mubr.bf16.gmra.mrb[0].mxu0 %v2043
        %v2170 = vpop.f32.mrb[0].mxu0
        %v2171 = vadd.f32 %v2070, %v2170
        %v2172 = vpop.f32.mrb[0].mxu0
        %v2173 = vpop.f32.mrb[0].mxu0
        %v2174 = vadd.f32 %v2070, %v2173
        %v2175 = vpop.f32.mrb[0].mxu0
        %2176 = vmatprep.mubr.bf16.mxu0 0
        %2177 = vmatmul.mubr.bf16.gmra.mrb[0].mxu0 %v2044
        %v2178 = vpop.f32.mrb[0].mxu0
        %v2179 = vadd.f32 %v2070, %v2178
        %v2180 = vpop.f32.mrb[0].mxu0
        %v2181 = vpop.f32.mrb[0].mxu0
        %v2182 = vadd.f32 %v2070, %v2181
        %v2183 = vpop.f32.mrb[0].mxu0
        %2184 = vdwg.mxu0
        %v2185 = vadd.f32 %v582, %v2155
        %v2186 = vadd.f32 %v583, %v2158
        %v2187 = vadd.f32 %v584, %v2163
        %v2188 = vadd.f32 %v585, %v2166
        %v2189 = vadd.f32 %v586, %v2171
        %v2190 = vadd.f32 %v587, %v2174
        %v2191 = vadd.f32 %v588, %v2179
        %v2192 = vadd.f32 %v589, %v2182
        %s2193 = scalar_lea.vmem %s7, %s38
        %v2194 = vld [vmem:[%s2193] sm:$0x1]
        %s2195 = scalar_lea.vmem %s8, %s38
        %v2196 = vld [vmem:[%s2195] sm:$0x1]
        %2197 = vadd.xlane.f32.xlu0 %v2185
        %v2198 = vpop.xlane.xlu0 %2197
        %2199 = vadd.xlane.f32.xlu0 %v2186
        %v2200 = vpop.xlane.xlu0 %2199
        %2201 = vadd.xlane.f32.xlu0 %v2187
        %v2202 = vpop.xlane.xlu0 %2201
        %2203 = vadd.xlane.f32.xlu0 %v2188
        %v2204 = vpop.xlane.xlu0 %2203
        %2205 = vadd.xlane.f32.xlu0 %v2189
        %v2206 = vpop.xlane.xlu0 %2205
        %2207 = vadd.xlane.f32.xlu0 %v2190
        %v2208 = vpop.xlane.xlu0 %2207
        %2209 = vadd.xlane.f32.xlu0 %v2191
        %v2210 = vpop.xlane.xlu0 %2209
        %2211 = vadd.xlane.f32.xlu0 %v2192
        %v2212 = vpop.xlane.xlu0 %2211
        %v2213 = vmul.f32 %v2198, %v610
        %v2214 = vmul.f32 %v2200, %v610
        %v2215 = vmul.f32 %v2202, %v610
        %v2216 = vmul.f32 %v2204, %v610
        %v2217 = vmul.f32 %v2206, %v610
        %v2218 = vmul.f32 %v2208, %v610
        %v2219 = vmul.f32 %v2210, %v610
        %v2220 = vmul.f32 %v2212, %v610
        %v2221 = vsub.f32 %v2185, %v2213
        %v2222 = vsub.f32 %v2186, %v2214
        %v2223 = vsub.f32 %v2187, %v2215
        %v2224 = vsub.f32 %v2188, %v2216
        %v2225 = vsub.f32 %v2189, %v2217
        %v2226 = vsub.f32 %v2190, %v2218
        %v2227 = vsub.f32 %v2191, %v2219
        %v2228 = vsub.f32 %v2192, %v2220
        %v2229 = vmul.f32 %v2221, %v2221
        %v2230 = vmul.f32 %v2222, %v2222
        %v2231 = vmul.f32 %v2223, %v2223
        %v2232 = vmul.f32 %v2224, %v2224
        %v2233 = vmul.f32 %v2225, %v2225
        %v2234 = vmul.f32 %v2226, %v2226
        %v2235 = vmul.f32 %v2227, %v2227
        %v2236 = vmul.f32 %v2228, %v2228
        %2237 = vadd.xlane.f32.xlu0 %v2229
        %v2238 = vpop.xlane.xlu0 %2237
        %2239 = vadd.xlane.f32.xlu0 %v2230
        %v2240 = vpop.xlane.xlu0 %2239
        %2241 = vadd.xlane.f32.xlu0 %v2231
        %v2242 = vpop.xlane.xlu0 %2241
        %2243 = vadd.xlane.f32.xlu0 %v2232
        %v2244 = vpop.xlane.xlu0 %2243
        %2245 = vadd.xlane.f32.xlu0 %v2233
        %v2246 = vpop.xlane.xlu0 %2245
        %2247 = vadd.xlane.f32.xlu0 %v2234
        %v2248 = vpop.xlane.xlu0 %2247
        %2249 = vadd.xlane.f32.xlu0 %v2235
        %v2250 = vpop.xlane.xlu0 %2249
        %2251 = vadd.xlane.f32.xlu0 %v2236
        %v2252 = vpop.xlane.xlu0 %2251
        %v2253 = vmul.f32 %v2238, %v610
        %v2254 = vmul.f32 %v2240, %v610
        %v2255 = vmul.f32 %v2242, %v610
        %v2256 = vmul.f32 %v2244, %v610
        %v2257 = vmul.f32 %v2246, %v610
        %v2258 = vmul.f32 %v2248, %v610
        %v2259 = vmul.f32 %v2250, %v610
        %v2260 = vmul.f32 %v2252, %v610
        %v2261 = vadd.f32 %v2253, 1e-05
        %v2262 = vadd.f32 %v2254, 1e-05
        %v2263 = vadd.f32 %v2255, 1e-05
        %v2264 = vadd.f32 %v2256, 1e-05
        %v2265 = vadd.f32 %v2257, 1e-05
        %v2266 = vadd.f32 %v2258, 1e-05
        %v2267 = vadd.f32 %v2259, 1e-05
        %v2268 = vadd.f32 %v2260, 1e-05
        %v2269 = vrsqrt.pop %v2261
        %v2270 = vrsqrt.pop %v2262
        %v2271 = vrsqrt.pop %v2263
        %v2272 = vrsqrt.pop %v2264
        %v2273 = vrsqrt.pop %v2265
        %v2274 = vrsqrt.pop %v2266
        %v2275 = vrsqrt.pop %v2267
        %v2276 = vrsqrt.pop %v2268
        %v2277 = vmul.f32 %v2221, %v2269
        %v2278 = vmul.f32 %v2222, %v2270
        %v2279 = vmul.f32 %v2223, %v2271
        %v2280 = vmul.f32 %v2224, %v2272
        %v2281 = vmul.f32 %v2225, %v2273
        %v2282 = vmul.f32 %v2226, %v2274
        %v2283 = vmul.f32 %v2227, %v2275
        %v2284 = vmul.f32 %v2228, %v2276
        %v2286 = vlaneseq
        %v2287 = vshrl.u32 %v2286, 7
        %v2288 = vsub.s32 0, %v2287
        %v2289 = vrot.slane %v2194, %v2288
        %v2291 = vmul.f32 %v2277, %v2289
        %v2292 = vmul.f32 %v2278, %v2289
        %v2293 = vmul.f32 %v2279, %v2289
        %v2294 = vmul.f32 %v2280, %v2289
        %v2295 = vmul.f32 %v2281, %v2289
        %v2296 = vmul.f32 %v2282, %v2289
        %v2297 = vmul.f32 %v2283, %v2289
        %v2298 = vmul.f32 %v2284, %v2289
        %v2300 = vlaneseq
        %v2301 = vshrl.u32 %v2300, 7
        %v2302 = vsub.s32 0, %v2301
        %v2303 = vrot.slane %v2196, %v2302
        %v2305 = vadd.f32 %v2291, %v2303
        %v2306 = vadd.f32 %v2292, %v2303
        %v2307 = vadd.f32 %v2293, %v2303
        %v2308 = vadd.f32 %v2294, %v2303
        %v2309 = vadd.f32 %v2295, %v2303
        %v2310 = vadd.f32 %v2296, %v2303
        %v2311 = vadd.f32 %v2297, %v2303
        %v2312 = vadd.f32 %v2298, %v2303
        %v2313 = vpack.c.bf16 %v2306, %v2305
        %v2314 = vpack.c.bf16 %v2308, %v2307
        %v2315 = vpack.c.bf16 %v2310, %v2309
        %v2316 = vpack.c.bf16 %v2312, %v2311
        %s2317 = smul.u32 %s38, 64
        %s2318 = smul.addr %s2317, 4
        %s2319 = scalar_lea.vmem [#allocation12], %s2318
        %v2320 = vld [vmem:[%s2319] sm:$0xff]
        %v2321 = vld [vmem:[%s2319 + $0x8] sm:$0xff]
        %v2322 = vld [vmem:[%s2319 + $0x10] sm:$0xff]
        %v2323 = vld [vmem:[%s2319 + $0x18] sm:$0xff]
        %v2324 = vld [vmem:[%s2319 + $0x20] sm:$0xff]
        %v2325 = vld [vmem:[%s2319 + $0x28] sm:$0xff]
        %v2326 = vld [vmem:[%s2319 + $0x30] sm:$0xff]
        %v2327 = vld [vmem:[%s2319 + $0x38] sm:$0xff]
        %v2328 = vld [vmem:[%s2319 + $0x40] sm:$0xff]
        %v2329 = vld [vmem:[%s2319 + $0x48] sm:$0xff]
        %v2330 = vld [vmem:[%s2319 + $0x50] sm:$0xff]
        %v2331 = vld [vmem:[%s2319 + $0x58] sm:$0xff]
        %v2332 = vld [vmem:[%s2319 + $0x60] sm:$0xff]
        %v2333 = vld [vmem:[%s2319 + $0x68] sm:$0xff]
        %v2334 = vld [vmem:[%s2319 + $0x70] sm:$0xff]
        %v2335 = vld [vmem:[%s2319 + $0x78] sm:$0xff]
        %v2336 = vld [vmem:[%s2319 + $0x80] sm:$0xff]
        %v2337 = vld [vmem:[%s2319 + $0x88] sm:$0xff]
        %v2338 = vld [vmem:[%s2319 + $0x90] sm:$0xff]
        %v2339 = vld [vmem:[%s2319 + $0x98] sm:$0xff]
        %v2340 = vld [vmem:[%s2319 + $0xa0] sm:$0xff]
        %v2341 = vld [vmem:[%s2319 + $0xa8] sm:$0xff]
        %v2342 = vld [vmem:[%s2319 + $0xb0] sm:$0xff]
        %v2343 = vld [vmem:[%s2319 + $0xb8] sm:$0xff]
        %v2344 = vld [vmem:[%s2319 + $0xc0] sm:$0xff]
        %v2345 = vld [vmem:[%s2319 + $0xc8] sm:$0xff]
        %v2346 = vld [vmem:[%s2319 + $0xd0] sm:$0xff]
        %v2347 = vld [vmem:[%s2319 + $0xd8] sm:$0xff]
        %v2348 = vld [vmem:[%s2319 + $0xe0] sm:$0xff]
        %v2349 = vld [vmem:[%s2319 + $0xe8] sm:$0xff]
        %v2350 = vld [vmem:[%s2319 + $0xf0] sm:$0xff]
        %v2351 = vld [vmem:[%s2319 + $0xf8] sm:$0xff]
        %s2352 = smul.u32 %s38, 4
        %s2353 = scalar_lea.vmem %s10, %s2352
        %v2354 = vld [vmem:[%s2353] sm:$0xf]
        %v2356 = vlaneseq
        %v2357 = vshrl.u32 %v2356, 7
        %v2358 = vsub.s32 0, %v2357
        %v2359 = vrot.slane %v2354, %v2358
        %v2360 = vlaneseq
        %v2361 = vshrl.u32 %v2360, 7
        %v2362 = vsub.s32 1, %v2361
        %v2363 = vrot.slane %v2354, %v2362
        %v2364 = vlaneseq
        %v2365 = vshrl.u32 %v2364, 7
        %v2366 = vsub.s32 2, %v2365
        %v2367 = vrot.slane %v2354, %v2366
        %v2368 = vlaneseq
        %v2369 = vshrl.u32 %v2368, 7
        %v2370 = vsub.s32 3, %v2369
        %v2371 = vrot.slane %v2354, %v2370
        %v2408 = vunpack.c.l.b16 %v2320
        %v2409 = vunpack.c.h.b16 %v2320
        %v2410 = vunpack.c.l.b16 %v2321
        %v2411 = vunpack.c.h.b16 %v2321
        %v2412 = vunpack.c.l.b16 %v2322
        %v2413 = vunpack.c.h.b16 %v2322
        %v2414 = vunpack.c.l.b16 %v2323
        %v2415 = vunpack.c.h.b16 %v2323
        %v2416 = vunpack.c.l.b16 %v2324
        %v2417 = vunpack.c.h.b16 %v2324
        %v2418 = vunpack.c.l.b16 %v2325
        %v2419 = vunpack.c.h.b16 %v2325
        %v2420 = vunpack.c.l.b16 %v2326
        %v2421 = vunpack.c.h.b16 %v2326
        %v2422 = vunpack.c.l.b16 %v2327
        %v2423 = vunpack.c.h.b16 %v2327
        %v2424 = vunpack.c.l.b16 %v2328
        %v2425 = vunpack.c.h.b16 %v2328
        %v2426 = vunpack.c.l.b16 %v2329
        %v2427 = vunpack.c.h.b16 %v2329
        %v2428 = vunpack.c.l.b16 %v2330
        %v2429 = vunpack.c.h.b16 %v2330
        %v2430 = vunpack.c.l.b16 %v2331
        %v2431 = vunpack.c.h.b16 %v2331
        %v2432 = vunpack.c.l.b16 %v2332
        %v2433 = vunpack.c.h.b16 %v2332
        %v2434 = vunpack.c.l.b16 %v2333
        %v2435 = vunpack.c.h.b16 %v2333
        %v2436 = vunpack.c.l.b16 %v2334
        %v2437 = vunpack.c.h.b16 %v2334
        %v2438 = vunpack.c.l.b16 %v2335
        %v2439 = vunpack.c.h.b16 %v2335
        %v2440 = vunpack.c.l.b16 %v2336
        %v2441 = vunpack.c.h.b16 %v2336
        %v2442 = vunpack.c.l.b16 %v2337
        %v2443 = vunpack.c.h.b16 %v2337
        %v2444 = vunpack.c.l.b16 %v2338
        %v2445 = vunpack.c.h.b16 %v2338
        %v2446 = vunpack.c.l.b16 %v2339
        %v2447 = vunpack.c.h.b16 %v2339
        %v2448 = vunpack.c.l.b16 %v2340
        %v2449 = vunpack.c.h.b16 %v2340
        %v2450 = vunpack.c.l.b16 %v2341
        %v2451 = vunpack.c.h.b16 %v2341
        %v2452 = vunpack.c.l.b16 %v2342
        %v2453 = vunpack.c.h.b16 %v2342
        %v2454 = vunpack.c.l.b16 %v2343
        %v2455 = vunpack.c.h.b16 %v2343
        %v2456 = vunpack.c.l.b16 %v2344
        %v2457 = vunpack.c.h.b16 %v2344
        %v2458 = vunpack.c.l.b16 %v2345
        %v2459 = vunpack.c.h.b16 %v2345
        %v2460 = vunpack.c.l.b16 %v2346
        %v2461 = vunpack.c.h.b16 %v2346
        %v2462 = vunpack.c.l.b16 %v2347
        %v2463 = vunpack.c.h.b16 %v2347
        %v2464 = vunpack.c.l.b16 %v2348
        %v2465 = vunpack.c.h.b16 %v2348
        %v2466 = vunpack.c.l.b16 %v2349
        %v2467 = vunpack.c.h.b16 %v2349
        %v2468 = vunpack.c.l.b16 %v2350
        %v2469 = vunpack.c.h.b16 %v2350
        %v2470 = vunpack.c.l.b16 %v2351
        %v2471 = vunpack.c.h.b16 %v2351
        %v2472 = vpack.c.b16 %v2412, %v2408
        %v2473 = vpack.c.b16 %v2413, %v2409
        %v2474 = vpack.c.b16 %v2414, %v2410
        %v2475 = vpack.c.b16 %v2415, %v2411
        %v2476 = vpack.c.b16 %v2420, %v2416
        %v2477 = vpack.c.b16 %v2421, %v2417
        %v2478 = vpack.c.b16 %v2422, %v2418
        %v2479 = vpack.c.b16 %v2423, %v2419
        %v2480 = vpack.c.b16 %v2428, %v2424
        %v2481 = vpack.c.b16 %v2429, %v2425
        %v2482 = vpack.c.b16 %v2430, %v2426
        %v2483 = vpack.c.b16 %v2431, %v2427
        %v2484 = vpack.c.b16 %v2436, %v2432
        %v2485 = vpack.c.b16 %v2437, %v2433
        %v2486 = vpack.c.b16 %v2438, %v2434
        %v2487 = vpack.c.b16 %v2439, %v2435
        %v2488 = vpack.c.b16 %v2444, %v2440
        %v2489 = vpack.c.b16 %v2445, %v2441
        %v2490 = vpack.c.b16 %v2446, %v2442
        %v2491 = vpack.c.b16 %v2447, %v2443
        %v2492 = vpack.c.b16 %v2452, %v2448
        %v2493 = vpack.c.b16 %v2453, %v2449
        %v2494 = vpack.c.b16 %v2454, %v2450
        %v2495 = vpack.c.b16 %v2455, %v2451
        %v2496 = vpack.c.b16 %v2460, %v2456
        %v2497 = vpack.c.b16 %v2461, %v2457
        %v2498 = vpack.c.b16 %v2462, %v2458
        %v2499 = vpack.c.b16 %v2463, %v2459
        %v2500 = vpack.c.b16 %v2468, %v2464
        %v2501 = vpack.c.b16 %v2469, %v2465
        %v2502 = vpack.c.b16 %v2470, %v2466
        %v2503 = vpack.c.b16 %v2471, %v2467
        %2536 = vmatprep.subr.bf16.mxu0 %v2473
        %2537 = vmatpush1.bf16.msra.mxu0 %v2472
        %2538 = vmatprep.subr.bf16.mxu0 %v2477
        %2539 = vmatpush1.bf16.msra.mxu0 %v2476
        %2540 = vmatprep.subr.bf16.mxu0 %v2481
        %2541 = vmatpush1.bf16.msra.mxu0 %v2480
        %2542 = vmatprep.subr.bf16.mxu0 %v2485
        %2543 = vmatpush1.bf16.msra.mxu0 %v2484
        %2544 = vmatprep.subr.bf16.mxu0 %v2489
        %2545 = vmatpush1.bf16.msra.mxu0 %v2488
        %2546 = vmatprep.subr.bf16.mxu0 %v2493
        %2547 = vmatpush1.bf16.msra.mxu0 %v2492
        %2548 = vmatprep.subr.bf16.mxu0 %v2497
        %2549 = vmatpush1.bf16.msra.mxu0 %v2496
        %2550 = vmatprep.subr.bf16.mxu0 %v2501
        %2551 = vmatpush1.bf16.msra.mxu0 %v2500
        %2552 = vmatprep.subr.bf16.mxu0 0
        %2553 = vmatpush1.bf16.msra.mxu0 0
        %2554 = vmatprep.subr.bf16.mxu0 0
        %2555 = vmatpush1.bf16.msra.mxu0 0
        %2556 = vmatprep.subr.bf16.mxu0 0
        %2557 = vmatpush1.bf16.msra.mxu0 0
        %2558 = vmatprep.subr.bf16.mxu0 0
        %2559 = vmatpush1.bf16.msra.mxu0 0
        %2560 = vmatprep.subr.bf16.mxu0 0
        %2561 = vmatpush1.bf16.msra.mxu0 0
        %2562 = vmatprep.subr.bf16.mxu0 0
        %2563 = vmatpush1.bf16.msra.mxu0 0
        %2564 = vmatprep.subr.bf16.mxu0 0
        %2565 = vmatpush1.bf16.msra.mxu0 0
        %2566 = vmatprep.subr.bf16.mxu0 0
        %2567 = vmatpush1.bf16.msra.mxu0 0
        %2568 = vmatprep.mubr.bf16.mxu0 0
        %2569 = vmatmul.mubr.bf16.gmra.mrb[0].mxu0 %v2313
        %v2570 = vpop.f32.mrb[0].mxu0
        %v2571 = vadd.f32 %v2359, %v2570
        %v2572 = vpop.f32.mrb[0].mxu0
        %v2573 = vadd.f32 %v2363, %v2572
        %v2574 = vpop.f32.mrb[0].mxu0
        %v2575 = vadd.f32 %v2359, %v2574
        %v2576 = vpop.f32.mrb[0].mxu0
        %v2577 = vadd.f32 %v2363, %v2576
        %2578 = vmatprep.mubr.bf16.mxu0 0
        %2579 = vmatmul.mubr.bf16.gmra.mrb[0].mxu0 %v2314
        %v2580 = vpop.f32.mrb[0].mxu0
        %v2581 = vadd.f32 %v2359, %v2580
        %v2582 = vpop.f32.mrb[0].mxu0
        %v2583 = vadd.f32 %v2363, %v2582
        %v2584 = vpop.f32.mrb[0].mxu0
        %v2585 = vadd.f32 %v2359, %v2584
        %v2586 = vpop.f32.mrb[0].mxu0
        %v2587 = vadd.f32 %v2363, %v2586
        %2588 = vmatprep.mubr.bf16.mxu0 0
        %2589 = vmatmul.mubr.bf16.gmra.mrb[0].mxu0 %v2315
        %v2590 = vpop.f32.mrb[0].mxu0
        %v2591 = vadd.f32 %v2359, %v2590
        %v2592 = vpop.f32.mrb[0].mxu0
        %v2593 = vadd.f32 %v2363, %v2592
        %v2594 = vpop.f32.mrb[0].mxu0
        %v2595 = vadd.f32 %v2359, %v2594
        %v2596 = vpop.f32.mrb[0].mxu0
        %v2597 = vadd.f32 %v2363, %v2596
        %2598 = vmatprep.mubr.bf16.mxu0 0
        %2599 = vmatmul.mubr.bf16.gmra.mrb[0].mxu0 %v2316
        %v2600 = vpop.f32.mrb[0].mxu0
        %v2601 = vadd.f32 %v2359, %v2600
        %v2602 = vpop.f32.mrb[0].mxu0
        %v2603 = vadd.f32 %v2363, %v2602
        %v2604 = vpop.f32.mrb[0].mxu0
        %v2605 = vadd.f32 %v2359, %v2604
        %v2606 = vpop.f32.mrb[0].mxu0
        %v2607 = vadd.f32 %v2363, %v2606
        %2608 = vdwg.mxu0
        %2609 = vmatprep.subr.bf16.mxu0 %v2475
        %2610 = vmatpush1.bf16.msra.mxu0 %v2474
        %2611 = vmatprep.subr.bf16.mxu0 %v2479
        %2612 = vmatpush1.bf16.msra.mxu0 %v2478
        %2613 = vmatprep.subr.bf16.mxu0 %v2483
        %2614 = vmatpush1.bf16.msra.mxu0 %v2482
        %2615 = vmatprep.subr.bf16.mxu0 %v2487
        %2616 = vmatpush1.bf16.msra.mxu0 %v2486
        %2617 = vmatprep.subr.bf16.mxu0 %v2491
        %2618 = vmatpush1.bf16.msra.mxu0 %v2490
        %2619 = vmatprep.subr.bf16.mxu0 %v2495
        %2620 = vmatpush1.bf16.msra.mxu0 %v2494
        %2621 = vmatprep.subr.bf16.mxu0 %v2499
        %2622 = vmatpush1.bf16.msra.mxu0 %v2498
        %2623 = vmatprep.subr.bf16.mxu0 %v2503
        %2624 = vmatpush1.bf16.msra.mxu0 %v2502
        %2625 = vmatprep.subr.bf16.mxu0 0
        %2626 = vmatpush1.bf16.msra.mxu0 0
        %2627 = vmatprep.subr.bf16.mxu0 0
        %2628 = vmatpush1.bf16.msra.mxu0 0
        %2629 = vmatprep.subr.bf16.mxu0 0
        %2630 = vmatpush1.bf16.msra.mxu0 0
        %2631 = vmatprep.subr.bf16.mxu0 0
        %2632 = vmatpush1.bf16.msra.mxu0 0
        %2633 = vmatprep.subr.bf16.mxu0 0
        %2634 = vmatpush1.bf16.msra.mxu0 0
        %2635 = vmatprep.subr.bf16.mxu0 0
        %2636 = vmatpush1.bf16.msra.mxu0 0
        %2637 = vmatprep.subr.bf16.mxu0 0
        %2638 = vmatpush1.bf16.msra.mxu0 0
        %2639 = vmatprep.subr.bf16.mxu0 0
        %2640 = vmatpush1.bf16.msra.mxu0 0
        %2641 = vmatprep.mubr.bf16.mxu0 0
        %2642 = vmatmul.mubr.bf16.gmra.mrb[0].mxu0 %v2313
        %v2643 = vpop.f32.mrb[0].mxu0
        %v2644 = vadd.f32 %v2367, %v2643
        %v2645 = vpop.f32.mrb[0].mxu0
        %v2646 = vadd.f32 %v2371, %v2645
        %v2647 = vpop.f32.mrb[0].mxu0
        %v2648 = vadd.f32 %v2367, %v2647
        %v2649 = vpop.f32.mrb[0].mxu0
        %v2650 = vadd.f32 %v2371, %v2649
        %2651 = vmatprep.mubr.bf16.mxu0 0
        %2652 = vmatmul.mubr.bf16.gmra.mrb[0].mxu0 %v2314
        %v2653 = vpop.f32.mrb[0].mxu0
        %v2654 = vadd.f32 %v2367, %v2653
        %v2655 = vpop.f32.mrb[0].mxu0
        %v2656 = vadd.f32 %v2371, %v2655
        %v2657 = vpop.f32.mrb[0].mxu0
        %v2658 = vadd.f32 %v2367, %v2657
        %v2659 = vpop.f32.mrb[0].mxu0
        %v2660 = vadd.f32 %v2371, %v2659
        %2661 = vmatprep.mubr.bf16.mxu0 0
        %2662 = vmatmul.mubr.bf16.gmra.mrb[0].mxu0 %v2315
        %v2663 = vpop.f32.mrb[0].mxu0
        %v2664 = vadd.f32 %v2367, %v2663
        %v2665 = vpop.f32.mrb[0].mxu0
        %v2666 = vadd.f32 %v2371, %v2665
        %v2667 = vpop.f32.mrb[0].mxu0
        %v2668 = vadd.f32 %v2367, %v2667
        %v2669 = vpop.f32.mrb[0].mxu0
        %v2670 = vadd.f32 %v2371, %v2669
        %2671 = vmatprep.mubr.bf16.mxu0 0
        %2672 = vmatmul.mubr.bf16.gmra.mrb[0].mxu0 %v2316
        %v2673 = vpop.f32.mrb[0].mxu0
        %v2674 = vadd.f32 %v2367, %v2673
        %v2675 = vpop.f32.mrb[0].mxu0
        %v2676 = vadd.f32 %v2371, %v2675
        %v2677 = vpop.f32.mrb[0].mxu0
        %v2678 = vadd.f32 %v2367, %v2677
        %v2679 = vpop.f32.mrb[0].mxu0
        %v2680 = vadd.f32 %v2371, %v2679
        %2681 = vdwg.mxu0
        %v2682 = vmax.f32 %v2571, 0.0
        %v2683 = vmax.f32 %v2573, 0.0
        %v2684 = vmax.f32 %v2644, 0.0
        %v2685 = vmax.f32 %v2646, 0.0
        %v2686 = vmax.f32 %v2575, 0.0
        %v2687 = vmax.f32 %v2577, 0.0
        %v2688 = vmax.f32 %v2648, 0.0
        %v2689 = vmax.f32 %v2650, 0.0
        %v2690 = vmax.f32 %v2581, 0.0
        %v2691 = vmax.f32 %v2583, 0.0
        %v2692 = vmax.f32 %v2654, 0.0
        %v2693 = vmax.f32 %v2656, 0.0
        %v2694 = vmax.f32 %v2585, 0.0
        %v2695 = vmax.f32 %v2587, 0.0
        %v2696 = vmax.f32 %v2658, 0.0
        %v2697 = vmax.f32 %v2660, 0.0
        %v2698 = vmax.f32 %v2591, 0.0
        %v2699 = vmax.f32 %v2593, 0.0
        %v2700 = vmax.f32 %v2664, 0.0
        %v2701 = vmax.f32 %v2666, 0.0
        %v2702 = vmax.f32 %v2595, 0.0
        %v2703 = vmax.f32 %v2597, 0.0
        %v2704 = vmax.f32 %v2668, 0.0
        %v2705 = vmax.f32 %v2670, 0.0
        %v2706 = vmax.f32 %v2601, 0.0
        %v2707 = vmax.f32 %v2603, 0.0
        %v2708 = vmax.f32 %v2674, 0.0
        %v2709 = vmax.f32 %v2676, 0.0
        %v2710 = vmax.f32 %v2605, 0.0
        %v2711 = vmax.f32 %v2607, 0.0
        %v2712 = vmax.f32 %v2678, 0.0
        %v2713 = vmax.f32 %v2680, 0.0
        %v2714 = vpack.c.bf16 %v2686, %v2682
        %v2715 = vpack.c.bf16 %v2687, %v2683
        %v2716 = vpack.c.bf16 %v2688, %v2684
        %v2717 = vpack.c.bf16 %v2689, %v2685
        %v2718 = vpack.c.bf16 %v2694, %v2690
        %v2719 = vpack.c.bf16 %v2695, %v2691
        %v2720 = vpack.c.bf16 %v2696, %v2692
        %v2721 = vpack.c.bf16 %v2697, %v2693
        %v2722 = vpack.c.bf16 %v2702, %v2698
        %v2723 = vpack.c.bf16 %v2703, %v2699
        %v2724 = vpack.c.bf16 %v2704, %v2700
        %v2725 = vpack.c.bf16 %v2705, %v2701
        %v2726 = vpack.c.bf16 %v2710, %v2706
        %v2727 = vpack.c.bf16 %v2711, %v2707
        %v2728 = vpack.c.bf16 %v2712, %v2708
        %v2729 = vpack.c.bf16 %v2713, %v2709
        %s2730 = smul.addr %s2317, 4
        %s2731 = scalar_lea.vmem [#allocation14], %s2730
        %v2732 = vld [vmem:[%s2731] sm:$0xf]
        %v2733 = vld [vmem:[%s2731 + $0x4] sm:$0xf]
        %v2734 = vld [vmem:[%s2731 + $0x8] sm:$0xf]
        %v2735 = vld [vmem:[%s2731 + $0xc] sm:$0xf]
        %v2736 = vld [vmem:[%s2731 + $0x10] sm:$0xf]
        %v2737 = vld [vmem:[%s2731 + $0x14] sm:$0xf]
        %v2738 = vld [vmem:[%s2731 + $0x18] sm:$0xf]
        %v2739 = vld [vmem:[%s2731 + $0x1c] sm:$0xf]
        %v2740 = vld [vmem:[%s2731 + $0x20] sm:$0xf]
        %v2741 = vld [vmem:[%s2731 + $0x24] sm:$0xf]
        %v2742 = vld [vmem:[%s2731 + $0x28] sm:$0xf]
        %v2743 = vld [vmem:[%s2731 + $0x2c] sm:$0xf]
        %v2744 = vld [vmem:[%s2731 + $0x30] sm:$0xf]
        %v2745 = vld [vmem:[%s2731 + $0x34] sm:$0xf]
        %v2746 = vld [vmem:[%s2731 + $0x38] sm:$0xf]
        %v2747 = vld [vmem:[%s2731 + $0x3c] sm:$0xf]
        %v2748 = vld [vmem:[%s2731 + $0x40] sm:$0xf]
        %v2749 = vld [vmem:[%s2731 + $0x44] sm:$0xf]
        %v2750 = vld [vmem:[%s2731 + $0x48] sm:$0xf]
        %v2751 = vld [vmem:[%s2731 + $0x4c] sm:$0xf]
        %v2752 = vld [vmem:[%s2731 + $0x50] sm:$0xf]
        %v2753 = vld [vmem:[%s2731 + $0x54] sm:$0xf]
        %v2754 = vld [vmem:[%s2731 + $0x58] sm:$0xf]
        %v2755 = vld [vmem:[%s2731 + $0x5c] sm:$0xf]
        %v2756 = vld [vmem:[%s2731 + $0x60] sm:$0xf]
        %v2757 = vld [vmem:[%s2731 + $0x64] sm:$0xf]
        %v2758 = vld [vmem:[%s2731 + $0x68] sm:$0xf]
        %v2759 = vld [vmem:[%s2731 + $0x6c] sm:$0xf]
        %v2760 = vld [vmem:[%s2731 + $0x70] sm:$0xf]
        %v2761 = vld [vmem:[%s2731 + $0x74] sm:$0xf]
        %v2762 = vld [vmem:[%s2731 + $0x78] sm:$0xf]
        %v2763 = vld [vmem:[%s2731 + $0x7c] sm:$0xf]
        %v2764 = vld [vmem:[%s2731 + $0x80] sm:$0xf]
        %v2765 = vld [vmem:[%s2731 + $0x84] sm:$0xf]
        %v2766 = vld [vmem:[%s2731 + $0x88] sm:$0xf]
        %v2767 = vld [vmem:[%s2731 + $0x8c] sm:$0xf]
        %v2768 = vld [vmem:[%s2731 + $0x90] sm:$0xf]
        %v2769 = vld [vmem:[%s2731 + $0x94] sm:$0xf]
        %v2770 = vld [vmem:[%s2731 + $0x98] sm:$0xf]
        %v2771 = vld [vmem:[%s2731 + $0x9c] sm:$0xf]
        %v2772 = vld [vmem:[%s2731 + $0xa0] sm:$0xf]
        %v2773 = vld [vmem:[%s2731 + $0xa4] sm:$0xf]
        %v2774 = vld [vmem:[%s2731 + $0xa8] sm:$0xf]
        %v2775 = vld [vmem:[%s2731 + $0xac] sm:$0xf]
        %v2776 = vld [vmem:[%s2731 + $0xb0] sm:$0xf]
        %v2777 = vld [vmem:[%s2731 + $0xb4] sm:$0xf]
        %v2778 = vld [vmem:[%s2731 + $0xb8] sm:$0xf]
        %v2779 = vld [vmem:[%s2731 + $0xbc] sm:$0xf]
        %v2780 = vld [vmem:[%s2731 + $0xc0] sm:$0xf]
        %v2781 = vld [vmem:[%s2731 + $0xc4] sm:$0xf]
        %v2782 = vld [vmem:[%s2731 + $0xc8] sm:$0xf]
        %v2783 = vld [vmem:[%s2731 + $0xcc] sm:$0xf]
        %v2784 = vld [vmem:[%s2731 + $0xd0] sm:$0xf]
        %v2785 = vld [vmem:[%s2731 + $0xd4] sm:$0xf]
        %v2786 = vld [vmem:[%s2731 + $0xd8] sm:$0xf]
        %v2787 = vld [vmem:[%s2731 + $0xdc] sm:$0xf]
        %v2788 = vld [vmem:[%s2731 + $0xe0] sm:$0xf]
        %v2789 = vld [vmem:[%s2731 + $0xe4] sm:$0xf]
        %v2790 = vld [vmem:[%s2731 + $0xe8] sm:$0xf]
        %v2791 = vld [vmem:[%s2731 + $0xec] sm:$0xf]
        %v2792 = vld [vmem:[%s2731 + $0xf0] sm:$0xf]
        %v2793 = vld [vmem:[%s2731 + $0xf4] sm:$0xf]
        %v2794 = vld [vmem:[%s2731 + $0xf8] sm:$0xf]
        %v2795 = vld [vmem:[%s2731 + $0xfc] sm:$0xf]
        %s2796 = scalar_lea.vmem %s12, %s38
        %v2797 = vld [vmem:[%s2796] sm:$0x1]
        %v2799 = vlaneseq
        %v2800 = vshrl.u32 %v2799, 7
        %v2801 = vsub.s32 0, %v2800
        %v2802 = vrot.slane %v2797, %v2801
        %v2868 = vunpack.c.l.b16 %v2732
        %v2869 = vunpack.c.l.b16 %v2733
        %v2870 = vunpack.c.l.b16 %v2734
        %v2871 = vunpack.c.l.b16 %v2735
        %v2872 = vunpack.c.l.b16 %v2736
        %v2873 = vunpack.c.l.b16 %v2737
        %v2874 = vunpack.c.l.b16 %v2738
        %v2875 = vunpack.c.l.b16 %v2739
        %v2876 = vunpack.c.l.b16 %v2740
        %v2877 = vunpack.c.l.b16 %v2741
        %v2878 = vunpack.c.l.b16 %v2742
        %v2879 = vunpack.c.l.b16 %v2743
        %v2880 = vunpack.c.l.b16 %v2744
        %v2881 = vunpack.c.l.b16 %v2745
        %v2882 = vunpack.c.l.b16 %v2746
        %v2883 = vunpack.c.l.b16 %v2747
        %v2884 = vunpack.c.l.b16 %v2748
        %v2885 = vunpack.c.l.b16 %v2749
        %v2886 = vunpack.c.l.b16 %v2750
        %v2887 = vunpack.c.l.b16 %v2751
        %v2888 = vunpack.c.l.b16 %v2752
        %v2889 = vunpack.c.l.b16 %v2753
        %v2890 = vunpack.c.l.b16 %v2754
        %v2891 = vunpack.c.l.b16 %v2755
        %v2892 = vunpack.c.l.b16 %v2756
        %v2893 = vunpack.c.l.b16 %v2757
        %v2894 = vunpack.c.l.b16 %v2758
        %v2895 = vunpack.c.l.b16 %v2759
        %v2896 = vunpack.c.l.b16 %v2760
        %v2897 = vunpack.c.l.b16 %v2761
        %v2898 = vunpack.c.l.b16 %v2762
        %v2899 = vunpack.c.l.b16 %v2763
        %v2900 = vunpack.c.l.b16 %v2764
        %v2901 = vunpack.c.l.b16 %v2765
        %v2902 = vunpack.c.l.b16 %v2766
        %v2903 = vunpack.c.l.b16 %v2767
        %v2904 = vunpack.c.l.b16 %v2768
        %v2905 = vunpack.c.l.b16 %v2769
        %v2906 = vunpack.c.l.b16 %v2770
        %v2907 = vunpack.c.l.b16 %v2771
        %v2908 = vunpack.c.l.b16 %v2772
        %v2909 = vunpack.c.l.b16 %v2773
        %v2910 = vunpack.c.l.b16 %v2774
        %v2911 = vunpack.c.l.b16 %v2775
        %v2912 = vunpack.c.l.b16 %v2776
        %v2913 = vunpack.c.l.b16 %v2777
        %v2914 = vunpack.c.l.b16 %v2778
        %v2915 = vunpack.c.l.b16 %v2779
        %v2916 = vunpack.c.l.b16 %v2780
        %v2917 = vunpack.c.l.b16 %v2781
        %v2918 = vunpack.c.l.b16 %v2782
        %v2919 = vunpack.c.l.b16 %v2783
        %v2920 = vunpack.c.l.b16 %v2784
        %v2921 = vunpack.c.l.b16 %v2785
        %v2922 = vunpack.c.l.b16 %v2786
        %v2923 = vunpack.c.l.b16 %v2787
        %v2924 = vunpack.c.l.b16 %v2788
        %v2925 = vunpack.c.l.b16 %v2789
        %v2926 = vunpack.c.l.b16 %v2790
        %v2927 = vunpack.c.l.b16 %v2791
        %v2928 = vunpack.c.l.b16 %v2792
        %v2929 = vunpack.c.l.b16 %v2793
        %v2930 = vunpack.c.l.b16 %v2794
        %v2931 = vunpack.c.l.b16 %v2795
        %v2932 = vpack.c.b16 %v2869, %v2868
        %v2933 = vpack.c.b16 %v2871, %v2870
        %v2934 = vpack.c.b16 %v2873, %v2872
        %v2935 = vpack.c.b16 %v2875, %v2874
        %v2936 = vpack.c.b16 %v2877, %v2876
        %v2937 = vpack.c.b16 %v2879, %v2878
        %v2938 = vpack.c.b16 %v2881, %v2880
        %v2939 = vpack.c.b16 %v2883, %v2882
        %v2940 = vpack.c.b16 %v2885, %v2884
        %v2941 = vpack.c.b16 %v2887, %v2886
        %v2942 = vpack.c.b16 %v2889, %v2888
        %v2943 = vpack.c.b16 %v2891, %v2890
        %v2944 = vpack.c.b16 %v2893, %v2892
        %v2945 = vpack.c.b16 %v2895, %v2894
        %v2946 = vpack.c.b16 %v2897, %v2896
        %v2947 = vpack.c.b16 %v2899, %v2898
        %v2948 = vpack.c.b16 %v2901, %v2900
        %v2949 = vpack.c.b16 %v2903, %v2902
        %v2950 = vpack.c.b16 %v2905, %v2904
        %v2951 = vpack.c.b16 %v2907, %v2906
        %v2952 = vpack.c.b16 %v2909, %v2908
        %v2953 = vpack.c.b16 %v2911, %v2910
        %v2954 = vpack.c.b16 %v2913, %v2912
        %v2955 = vpack.c.b16 %v2915, %v2914
        %v2956 = vpack.c.b16 %v2917, %v2916
        %v2957 = vpack.c.b16 %v2919, %v2918
        %v2958 = vpack.c.b16 %v2921, %v2920
        %v2959 = vpack.c.b16 %v2923, %v2922
        %v2960 = vpack.c.b16 %v2925, %v2924
        %v2961 = vpack.c.b16 %v2927, %v2926
        %v2962 = vpack.c.b16 %v2929, %v2928
        %v2963 = vpack.c.b16 %v2931, %v2930
        %2996 = vmatprep.subr.bf16.mxu0 0
        %2997 = vmatpush1.bf16.msra.mxu0 %v2932
        %2998 = vmatprep.subr.bf16.mxu0 0
        %2999 = vmatpush1.bf16.msra.mxu0 %v2933
        %3000 = vmatprep.subr.bf16.mxu0 0
        %3001 = vmatpush1.bf16.msra.mxu0 %v2934
        %3002 = vmatprep.subr.bf16.mxu0 0
        %3003 = vmatpush1.bf16.msra.mxu0 %v2935
        %3004 = vmatprep.subr.bf16.mxu0 0
        %3005 = vmatpush1.bf16.msra.mxu0 %v2936
        %3006 = vmatprep.subr.bf16.mxu0 0
        %3007 = vmatpush1.bf16.msra.mxu0 %v2937
        %3008 = vmatprep.subr.bf16.mxu0 0
        %3009 = vmatpush1.bf16.msra.mxu0 %v2938
        %3010 = vmatprep.subr.bf16.mxu0 0
        %3011 = vmatpush1.bf16.msra.mxu0 %v2939
        %3012 = vmatprep.subr.bf16.mxu0 0
        %3013 = vmatpush1.bf16.msra.mxu0 %v2940
        %3014 = vmatprep.subr.bf16.mxu0 0
        %3015 = vmatpush1.bf16.msra.mxu0 %v2941
        %3016 = vmatprep.subr.bf16.mxu0 0
        %3017 = vmatpush1.bf16.msra.mxu0 %v2942
        %3018 = vmatprep.subr.bf16.mxu0 0
        %3019 = vmatpush1.bf16.msra.mxu0 %v2943
        %3020 = vmatprep.subr.bf16.mxu0 0
        %3021 = vmatpush1.bf16.msra.mxu0 %v2944
        %3022 = vmatprep.subr.bf16.mxu0 0
        %3023 = vmatpush1.bf16.msra.mxu0 %v2945
        %3024 = vmatprep.subr.bf16.mxu0 0
        %3025 = vmatpush1.bf16.msra.mxu0 %v2946
        %3026 = vmatprep.subr.bf16.mxu0 0
        %3027 = vmatpush1.bf16.msra.mxu0 %v2947
        %3028 = vmatprep.mubr.bf16.mxu0 %v2715
        %3029 = vmatmul.mubr.bf16.gmra.mrb[0].mxu0 %v2714
        %v3030 = vpop.f32.mrb[0].mxu0
        %v3031 = vadd.f32 %v2802, %v3030
        %v3032 = vpop.f32.mrb[0].mxu0
        %v3033 = vpop.f32.mrb[0].mxu0
        %v3034 = vadd.f32 %v2802, %v3033
        %v3035 = vpop.f32.mrb[0].mxu0
        %3036 = vmatprep.mubr.bf16.mxu0 %v2719
        %3037 = vmatmul.mubr.bf16.gmra.mrb[0].mxu0 %v2718
        %v3038 = vpop.f32.mrb[0].mxu0
        %v3039 = vadd.f32 %v2802, %v3038
        %v3040 = vpop.f32.mrb[0].mxu0
        %v3041 = vpop.f32.mrb[0].mxu0
        %v3042 = vadd.f32 %v2802, %v3041
        %v3043 = vpop.f32.mrb[0].mxu0
        %3044 = vmatprep.mubr.bf16.mxu0 %v2723
        %3045 = vmatmul.mubr.bf16.gmra.mrb[0].mxu0 %v2722
        %v3046 = vpop.f32.mrb[0].mxu0
        %v3047 = vadd.f32 %v2802, %v3046
        %v3048 = vpop.f32.mrb[0].mxu0
        %v3049 = vpop.f32.mrb[0].mxu0
        %v3050 = vadd.f32 %v2802, %v3049
        %v3051 = vpop.f32.mrb[0].mxu0
        %3052 = vmatprep.mubr.bf16.mxu0 %v2727
        %3053 = vmatmul.mubr.bf16.gmra.mrb[0].mxu0 %v2726
        %v3054 = vpop.f32.mrb[0].mxu0
        %v3055 = vadd.f32 %v2802, %v3054
        %v3056 = vpop.f32.mrb[0].mxu0
        %v3057 = vpop.f32.mrb[0].mxu0
        %v3058 = vadd.f32 %v2802, %v3057
        %v3059 = vpop.f32.mrb[0].mxu0
        %3060 = vdwg.mxu0
        %3061 = vmatprep.subr.bf16.mxu0 0
        %3062 = vmatpush1.bf16.msra.mxu0 %v2948
        %3063 = vmatprep.subr.bf16.mxu0 0
        %3064 = vmatpush1.bf16.msra.mxu0 %v2949
        %3065 = vmatprep.subr.bf16.mxu0 0
        %3066 = vmatpush1.bf16.msra.mxu0 %v2950
        %3067 = vmatprep.subr.bf16.mxu0 0
        %3068 = vmatpush1.bf16.msra.mxu0 %v2951
        %3069 = vmatprep.subr.bf16.mxu0 0
        %3070 = vmatpush1.bf16.msra.mxu0 %v2952
        %3071 = vmatprep.subr.bf16.mxu0 0
        %3072 = vmatpush1.bf16.msra.mxu0 %v2953
        %3073 = vmatprep.subr.bf16.mxu0 0
        %3074 = vmatpush1.bf16.msra.mxu0 %v2954
        %3075 = vmatprep.subr.bf16.mxu0 0
        %3076 = vmatpush1.bf16.msra.mxu0 %v2955
        %3077 = vmatprep.subr.bf16.mxu0 0
        %3078 = vmatpush1.bf16.msra.mxu0 %v2956
        %3079 = vmatprep.subr.bf16.mxu0 0
        %3080 = vmatpush1.bf16.msra.mxu0 %v2957
        %3081 = vmatprep.subr.bf16.mxu0 0
        %3082 = vmatpush1.bf16.msra.mxu0 %v2958
        %3083 = vmatprep.subr.bf16.mxu0 0
        %3084 = vmatpush1.bf16.msra.mxu0 %v2959
        %3085 = vmatprep.subr.bf16.mxu0 0
        %3086 = vmatpush1.bf16.msra.mxu0 %v2960
        %3087 = vmatprep.subr.bf16.mxu0 0
        %3088 = vmatpush1.bf16.msra.mxu0 %v2961
        %3089 = vmatprep.subr.bf16.mxu0 0
        %3090 = vmatpush1.bf16.msra.mxu0 %v2962
        %3091 = vmatprep.subr.bf16.mxu0 0
        %3092 = vmatpush1.bf16.msra.mxu0 %v2963
        %3093 = vmatprep.mubr.bf16.mxu0 %v2717
        %3094 = vmatmul.mubr.bf16.gmra.mrb[0].mxu0 %v2716
        %v3095 = vpop.f32.mrb[0].mxu0
        %v3096 = vadd.f32 %v3031, %v3095
        %v3097 = vpop.f32.mrb[0].mxu0
        %v3098 = vpop.f32.mrb[0].mxu0
        %v3099 = vadd.f32 %v3034, %v3098
        %v3100 = vpop.f32.mrb[0].mxu0
        %3101 = vmatprep.mubr.bf16.mxu0 %v2721
        %3102 = vmatmul.mubr.bf16.gmra.mrb[0].mxu0 %v2720
        %v3103 = vpop.f32.mrb[0].mxu0
        %v3104 = vadd.f32 %v3039, %v3103
        %v3105 = vpop.f32.mrb[0].mxu0
        %v3106 = vpop.f32.mrb[0].mxu0
        %v3107 = vadd.f32 %v3042, %v3106
        %v3108 = vpop.f32.mrb[0].mxu0
        %3109 = vmatprep.mubr.bf16.mxu0 %v2725
        %3110 = vmatmul.mubr.bf16.gmra.mrb[0].mxu0 %v2724
        %v3111 = vpop.f32.mrb[0].mxu0
        %v3112 = vadd.f32 %v3047, %v3111
        %v3113 = vpop.f32.mrb[0].mxu0
        %v3114 = vpop.f32.mrb[0].mxu0
        %v3115 = vadd.f32 %v3050, %v3114
        %v3116 = vpop.f32.mrb[0].mxu0
        %3117 = vmatprep.mubr.bf16.mxu0 %v2729
        %3118 = vmatmul.mubr.bf16.gmra.mrb[0].mxu0 %v2728
        %v3119 = vpop.f32.mrb[0].mxu0
        %v3120 = vadd.f32 %v3055, %v3119
        %v3121 = vpop.f32.mrb[0].mxu0
        %v3122 = vpop.f32.mrb[0].mxu0
        %v3123 = vadd.f32 %v3058, %v3122
        %v3124 = vpop.f32.mrb[0].mxu0
        %3125 = vdwg.mxu0
        %v3126 = vadd.f32 %v2185, %v3096
        %v3127 = vadd.f32 %v2186, %v3099
        %v3128 = vadd.f32 %v2187, %v3104
        %v3129 = vadd.f32 %v2188, %v3107
        %v3130 = vadd.f32 %v2189, %v3112
        %v3131 = vadd.f32 %v2190, %v3115
        %v3132 = vadd.f32 %v2191, %v3120
        %v3133 = vadd.f32 %v2192, %v3123
        %3134 = vst [vmem:[#allocation2] sm:$0xff] %v3126
        %3135 = vst [vmem:[#allocation2 + $0x8] sm:$0xff] %v3127
        %3136 = vst [vmem:[#allocation2 + $0x10] sm:$0xff] %v3128
        %3137 = vst [vmem:[#allocation2 + $0x18] sm:$0xff] %v3129
        %3138 = vst [vmem:[#allocation2 + $0x20] sm:$0xff] %v3130
        %3139 = vst [vmem:[#allocation2 + $0x28] sm:$0xff] %v3131
        %3140 = vst [vmem:[#allocation2 + $0x30] sm:$0xff] %v3132
        %3141 = vst [vmem:[#allocation2 + $0x38] sm:$0xff] %v3133
        %p3142 = scmp.eq.s32.totalorder %s38, 1
        // Predicated region
        $region105: #{tpu_custom_call.1} parent=71 // pred_check
          %p3143 = pneg %p3142
        $region106: #{tpu_custom_call.1} parent=71 // pred_check_branch
          %3145 = sbr.rel (%p3143) target = $region108
        $region107: #{tpu_custom_call.1} parent=71 // pred_region
          %3146 = vst [vmem:[%s558] sm:$0xff] %v3126
          %3147 = vst [vmem:[%s558 + $0x8] sm:$0xff] %v3127
          %3148 = vst [vmem:[%s558 + $0x10] sm:$0xff] %v3128
          %3149 = vst [vmem:[%s558 + $0x18] sm:$0xff] %v3129
          %3150 = vst [vmem:[%s558 + $0x20] sm:$0xff] %v3130
          %3151 = vst [vmem:[%s558 + $0x28] sm:$0xff] %v3131
          %3152 = vst [vmem:[%s558 + $0x30] sm:$0xff] %v3132
          %3153 = vst [vmem:[%s558 + $0x38] sm:$0xff] %v3133
        $region108: #{tpu_custom_call.1} parent=71 // pred_fallthru
          _
        %s3154 = sand.u32 %s331, 1
        %s3155 = scalar_lea.sflag [#allocation5], %s3154
        %s3156 = sand.u32 %s331, 1
        %s3157 = smul.addr %s3156, 64
        %s3158 = scalar_lea.vmem [#allocation15], %s3157
        // Predicated region
        $region109: #{tpu_custom_call.1} parent=71 // pred_check
          %p3159 = pneg %p341
        $region110: #{tpu_custom_call.1} parent=71 // pred_check_branch
          %3161 = sbr.rel (%p3159) target = $region112
        $region111: #{tpu_custom_call.1} parent=71 // pred_region
          %s3162 = smul.u32 4, %s37
          %s3164 = ssub.s32 1024, 1024
          %3165 = vsyncadd %s3155, %s3164
          %s3166 = smul.addr %s3162, 2
          %s3167 = smul.addr %s3166, 128
          %s3168 = scalar_lea.hbm %s13, %s3167
          %s3169 = sshll.u32 %s3158, 4
          %s3170 = int_to_ptr.vmem [resolvable:$true] %s3169
          %3175 = dma.vmem_to_hbm [thread:$0]  %s3170, 1024, %s3168, %s3155, 128, 128, 8
        $region112: #{tpu_custom_call.1} parent=71 // pred_fallthru
          _
      $region72: #{tpu_custom_call.1} parent=5 // pred_fallthru
        _
      %p3176 = scmp.le.s32.totalorder 2, %s28
      // Predicated region
      $region113: #{tpu_custom_call.1} parent=5 // pred_check
        %p3177 = pneg %p3176
      $region114: #{tpu_custom_call.1} parent=5 // pred_check_branch
        %3179 = sbr.rel (%p3177) target = $region116
      $region115: #{tpu_custom_call.1} parent=5 // pred_region
        %s3180 = ssub.s32 %s28, 2
        // Predicated region
        $region117: #{tpu_custom_call.1} parent=115 // pred_check
          %p3181 = pneg %p347
        $region118: #{tpu_custom_call.1} parent=115 // pred_check_branch
          %3183 = sbr.rel (%p3181) target = $region120
        $region119: #{tpu_custom_call.1} parent=115 // pred_region
          %s3184 = sand.u32 %s332, 1
          %s3185 = scalar_lea.sflag [#allocation5], %s3184
          %s3186 = sand.u32 %s332, 1
          %s3187 = smul.addr %s3186, 64
          %s3188 = scalar_lea.vmem [#allocation15], %s3187
          %3189 = dma.done %s3185, 1024
        $region120: #{tpu_custom_call.1} parent=115 // pred_fallthru
          _
      $region116: #{tpu_custom_call.1} parent=5 // pred_fallthru
        _
    $region6: #{tpu_custom_call.1} parent=1 // loop_footer
      %s32 = sadd.s32 1, %s28
    $region7: #{tpu_custom_call.1} parent=1 // loop_footer_branch
      %27 = sbr.rel target = $region3
    $region8: #{tpu_custom_call.1} parent=1 // loop_exit
      _
    %3190 = vsyncpa [#allocation4], 1
    %s3191 = scalar_lea.sflag [#allocation4], 1
    %3192 = vsyncpa %s3191, 1
    %3193 = vsyncpa [#allocation7], 1
    %3194 = vsyncpa [#allocation10], 1
    %3195 = vsyncpa [#allocation13], 1
    %3196 = vsyncpa [#allocation5], 1
    %s3197 = scalar_lea.sflag [#allocation5], 1
    %3198 = vsyncpa %s3197, 1

</llo_original>
